<compile_context>
chip_gen: v6e
topology: v6e:2x2x1
jax: 0.10.0
libtpu: 0.0.40
codegen_flags: <defaults>
</compile_context>

<pallas_src>
import functools

import jax
import jax.numpy as jnp
import numpy as np
from jax.experimental import pallas as pl
from jax.experimental.pallas import tpu as pltpu

_EPS = 1e-5


# ----------------------------- kernel helpers --------------------------------


def _zero_halo(pad_ref, hp, wp):
    """Zero only the 1-pixel halo of the padded scratch (4 thin slabs).

    The scratch persists across grid steps, so this runs once (step 0); every
    step then overwrites just the interior.
    """
    c = pad_ref.shape[-1]
    dt = pad_ref.dtype
    pad_ref[0:1, :, :] = jnp.zeros((1, wp + 2, c), dt)
    pad_ref[hp + 1:hp + 2, :, :] = jnp.zeros((1, wp + 2, c), dt)
    pad_ref[1:hp + 1, 0:1, :] = jnp.zeros((hp, 1, c), dt)
    pad_ref[1:hp + 1, wp + 1:wp + 2, :] = jnp.zeros((hp, 1, c), dt)


def _conv3x3_bias(pad_ref, w_ref, b_ref, hp, wp, cin, cout):
    """3x3 'SAME' conv as nine accumulated MXU matmuls (no im2col matrix).

    pad_ref: (hp+2, wp+2, cin) f32 padded activation (halo already zero).
    w_ref:   (3, 3, cin, cout)  bf16 weights (HWIO).
    b_ref:   (1, cout)          f32 bias.
    Returns the pre-BN conv output as an (hp*wp, cout) f32 value.
    """
    m = hp * wp
    acc = jnp.zeros((m, cout), jnp.float32)
    for dy in range(3):
        for dx in range(3):
            tap = pad_ref[dy:dy + hp, dx:dx + wp, :]          # (hp, wp, cin)
            tap = tap.reshape(m, cin).astype(jnp.bfloat16)    # bf16 MXU operand
            acc = acc + jnp.dot(tap, w_ref[dy, dx],
                                preferred_element_type=jnp.float32)
    return acc + b_ref[...]


def _accumulate_bn_stats(stats_ref, z, m_tile):
    """Welford/Chan combine of this tile's (mean, M2) into stats_ref (2, C).

    stats_ref row 0 = running mean, row 1 = running sum of squared deviations;
    avoids the E[x^2] - E[x]^2 cancellation of the previous version.
    """
    step = pl.program_id(0)
    t_mean = jnp.sum(z, axis=0, keepdims=True) * (1.0 / m_tile)   # (1, C)
    d = z - t_mean
    t_m2 = jnp.sum(d * d, axis=0, keepdims=True)                   # (1, C)

    @pl.when(step == 0)
    def _():
        stats_ref[0:1, :] = t_mean
        stats_ref[1:2, :] = t_m2

    @pl.when(step > 0)
    def _():
        n_a = step.astype(jnp.float32) * float(m_tile)
        mean_a = stats_ref[0:1, :]
        m2_a = stats_ref[1:2, :]
        delta = t_mean - mean_a
        frac = float(m_tile) / (n_a + float(m_tile))
        stats_ref[0:1, :] = mean_a + delta * frac
        stats_ref[1:2, :] = m2_a + t_m2 + (delta * delta) * (n_a * frac)


# ------------------------------- kernels --------------------------------------


def _pool_conv_kernel(x_ref, w_ref, b_ref, z_ref, stats_ref, pad_ref,
                      *, hp, wp, cin, cout):
    """MaxPool2d(2) + Conv1 + bias for one batch tile; accumulates BN1 stats."""
    @pl.when(pl.program_id(0) == 0)
    def _():
        _zero_halo(pad_ref, hp, wp)

    # 2x2 max over the parity axes exposed by the wrapper reshape (VPU only,
    # lane-aligned Cin; no unaligned lane split of 2*Cin).
    x00 = x_ref[:, 0, :, 0, :]
    x01 = x_ref[:, 0, :, 1, :]
    x10 = x_ref[:, 1, :, 0, :]
    x11 = x_ref[:, 1, :, 1, :]
    pooled = jnp.maximum(jnp.maximum(x00, x01), jnp.maximum(x10, x11))

    pad_ref[1:hp + 1, 1:wp + 1, :] = pooled                 # interior only
    z = _conv3x3_bias(pad_ref, w_ref, b_ref, hp, wp, cin, cout)
    z_ref[...] = z.reshape(1, hp, wp, cout)
    _accumulate_bn_stats(stats_ref, z, hp * wp)


def _norm_conv_kernel(z_in_ref, sc_ref, sh_ref, w_ref, b_ref,
                      z_ref, stats_ref, pad_ref, *, hp, wp, cin, cout):
    """(BN1 + ReLU folded in) + Conv2 + bias for one batch tile; BN2 stats."""
    @pl.when(pl.program_id(0) == 0)
    def _():
        _zero_halo(pad_ref, hp, wp)

    a = z_in_ref[0]                                          # (hp, wp, cin) f32
    a = jnp.maximum(a * sc_ref[...] + sh_ref[...], 0.0)      # BN(prev) + ReLU
    pad_ref[1:hp + 1, 1:wp + 1, :] = a
    z = _conv3x3_bias(pad_ref, w_ref, b_ref, hp, wp, cin, cout)
    z_ref[...] = z.reshape(1, hp, wp, cout)
    _accumulate_bn_stats(stats_ref, z, hp * wp)


def _bn_relu_kernel(z_ref, sc_ref, sh_ref, o_ref):
    """Final BN2 + ReLU; lane-dense layout (last dim = Wp*Cout)."""
    o_ref[...] = jnp.maximum(z_ref[...] * sc_ref[...] + sh_ref[...], 0.0)


# ------------------------------- wrapper --------------------------------------


def init_down_dc_params(key, in_channels, out_channels):
    k1, k2, k3, k4 = jax.random.split(key, 4)
    # Conv weights stored HWIO (3, 3, Cin, Cout); deterministic synthetic init.
    return {
        "w1": 0.1 * jax.random.normal(k1, (3, 3, in_channels, out_channels),
                                      jnp.float32),
        "b1": 0.1 * jax.random.normal(k2, (out_channels,), jnp.float32),
        "g1": jnp.ones((out_channels,), jnp.float32),
        "be1": jnp.zeros((out_channels,), jnp.float32),
        "w2": 0.1 * jax.random.normal(k3, (3, 3, out_channels, out_channels),
                                      jnp.float32),
        "b2": 0.1 * jax.random.normal(k4, (out_channels,), jnp.float32),
        "g2": jnp.ones((out_channels,), jnp.float32),
        "be2": jnp.zeros((out_channels,), jnp.float32),
    }


def _bn_scale_shift(stats, gamma, beta, m_total, eps=_EPS):
    mean = stats[0]
    var = stats[1] / m_total                  # biased variance (training BN)
    scale = gamma * jax.lax.rsqrt(var + eps)
    shift = beta - mean * scale
    return scale, shift


@jax.jit
def down_dc_forward(x_nchw, params):
    N, Cin, H, W = x_nchw.shape
    Hp, Wp = H // 2, W // 2
    Cout = params["w1"].shape[-1]
    M = N * Hp * Wp                           # BN population size per channel

    # NCHW -> NHWC at the module boundary (drop if the model runs NHWC).
    x = jnp.transpose(x_nchw, (0, 2, 3, 1))
    # nn.MaxPool2d(2) floors odd spatial dims -> crop (no-op when even).
    x = x[:, :2 * Hp, :2 * Wp, :]
    # Free contiguous reshape exposing the 2x2 pooling window as parity axes.
    xp = x.reshape(N * Hp, 2, Wp, 2, Cin)

    # bf16 MXU operands (weights); bias / BN params stay f32.
    w1 = params["w1"].astype(jnp.bfloat16)                   # (3,3,Cin,Cout)
    w2 = params["w2"].astype(jnp.bfloat16)                   # (3,3,Cout,Cout)
    b1 = params["b1"].reshape(1, Cout)
    b2 = params["b2"].reshape(1, Cout)

    cp_arb = pltpu.CompilerParams(dimension_semantics=("arbitrary",),
                                  vmem_limit_bytes=32 * 1024 * 1024)
    cp_par = pltpu.CompilerParams(dimension_semantics=("parallel",),
                                  vmem_limit_bytes=32 * 1024 * 1024)

    # ---- Stage 1: pool + conv1 + bias, accumulate BN1 stats (batch-tiled) ---
    z1, stats1 = pl.pallas_call(
        functools.partial(_pool_conv_kernel, hp=Hp, wp=Wp, cin=Cin, cout=Cout),
        grid=(N,),
        in_specs=[
            pl.BlockSpec((Hp, 2, Wp, 2, Cin), lambda n: (n, 0, 0, 0, 0)),
            pl.BlockSpec((3, 3, Cin, Cout), lambda n: (0, 0, 0, 0)),
            pl.BlockSpec((1, Cout), lambda n: (0, 0)),
        ],
        out_specs=(
            pl.BlockSpec((1, Hp, Wp, Cout), lambda n: (n, 0, 0, 0)),
            pl.BlockSpec((2, Cout), lambda n: (0, 0)),        # stats accumulator
        ),
        out_shape=(
            jax.ShapeDtypeStruct((N, Hp, Wp, Cout), jnp.float32),
            jax.ShapeDtypeStruct((2, Cout), jnp.float32),
        ),
        scratch_shapes=[pltpu.VMEM((Hp + 2, Wp + 2, Cin), jnp.float32)],
        compiler_params=cp_arb,
    )(xp, w1, b1)

    sc1, sh1 = _bn_scale_shift(stats1, params["g1"], params["be1"], M)

    # ---- Stage 2: BN1+ReLU (folded) + conv2 + bias, accumulate BN2 stats ----
    z2, stats2 = pl.pallas_call(
        functools.partial(_norm_conv_kernel, hp=Hp, wp=Wp, cin=Cout, cout=Cout),
        grid=(N,),
        in_specs=[
            pl.BlockSpec((1, Hp, Wp, Cout), lambda n: (n, 0, 0, 0)),
            pl.BlockSpec((1, Cout), lambda n: (0, 0)),
            pl.BlockSpec((1, Cout), lambda n: (0, 0)),
            pl.BlockSpec((3, 3, Cout, Cout), lambda n: (0, 0, 0, 0)),
            pl.BlockSpec((1, Cout), lambda n: (0, 0)),
        ],
        out_specs=(
            pl.BlockSpec((1, Hp, Wp, Cout), lambda n: (n, 0, 0, 0)),
            pl.BlockSpec((2, Cout), lambda n: (0, 0)),
        ),
        out_shape=(
            jax.ShapeDtypeStruct((N, Hp, Wp, Cout), jnp.float32),
            jax.ShapeDtypeStruct((2, Cout), jnp.float32),
        ),
        scratch_shapes=[pltpu.VMEM((Hp + 2, Wp + 2, Cout), jnp.float32)],
        compiler_params=cp_arb,
    )(z1, sc1.reshape(1, Cout), sh1.reshape(1, Cout), w2, b2)

    sc2, sh2 = _bn_scale_shift(stats2, params["g2"], params["be2"], M)

    # ---- Stage 3: BN2 + ReLU; lane-dense output (last dim = Wp*Cout) --------
    sc2_t = jnp.tile(sc2, Wp).reshape(1, Wp * Cout)
    sh2_t = jnp.tile(sh2, Wp).reshape(1, Wp * Cout)
    y = pl.pallas_call(
        _bn_relu_kernel,
        grid=(N,),
        in_specs=[
            pl.BlockSpec((1, Hp, Wp * Cout), lambda n: (n, 0, 0)),
            pl.BlockSpec((1, Wp * Cout), lambda n: (0, 0)),
            pl.BlockSpec((1, Wp * Cout), lambda n: (0, 0)),
        ],
        out_specs=pl.BlockSpec((1, Hp, Wp * Cout), lambda n: (n, 0, 0)),
        out_shape=jax.ShapeDtypeStruct((N, Hp, Wp * Cout), jnp.float32),
        compiler_params=cp_par,
    )(z2.reshape(N, Hp, Wp * Cout), sc2_t, sh2_t)

    # (N, Hp, Wp*Cout) -> NHWC (free reshape) -> NCHW at module boundary.
    y = y.reshape(N, Hp, Wp, Cout)
    return jnp.transpose(y, (0, 3, 1, 2))


# ----------------------- pure-JAX reference (for checking) -------------------


def _reference_forward(x_nchw, params, eps=_EPS):
    x = jnp.transpose(x_nchw, (0, 2, 3, 1))                     # NHWC
    x = jax.lax.reduce_window(x, -jnp.inf, jax.lax.max,
                              (1, 2, 2, 1), (1, 2, 2, 1), "VALID")

    def block(h, w_hwio, b, g, be):
        y = jax.lax.conv_general_dilated(
            h, w_hwio, window_strides=(1, 1), padding="SAME",
            dimension_numbers=("NHWC", "HWIO", "NHWC"),
            precision=jax.lax.Precision.HIGHEST)
        y = y + b
        mean = jnp.mean(y, axis=(0, 1, 2), keepdims=True)
        var = jnp.mean((y - mean) ** 2, axis=(0, 1, 2), keepdims=True)
        y = (y - mean) * jax.lax.rsqrt(var + eps) * g + be
        return jnp.maximum(y, 0.0)

    x = block(x, params["w1"], params["b1"], params["g1"], params["be1"])
    x = block(x, params["w2"], params["b2"], params["g2"], params["be2"])
    return jnp.transpose(x, (0, 3, 1, 2))


if __name__ == "__main__":
    key = jax.random.PRNGKey(0)
    kx, kp = jax.random.split(key)

    N, C_IN, C_OUT, H, W = 2, 4, 8, 16, 16
    x = jax.random.normal(kx, (N, C_IN, H, W), jnp.float32)
    params = init_down_dc_params(kp, C_IN, C_OUT)

    out = jax.block_until_ready(down_dc_forward(x, params))

    assert out.shape == (N, C_OUT, H // 2, W // 2), out.shape
    assert out.dtype == jnp.float32

    ref = jax.block_until_ready(_reference_forward(x, params))
    # Tolerance relaxed vs. the f32 reference because the MXU matmuls are fed
    # bfloat16 operands (f32 accumulation / f32 BatchNorm statistics).
    np.testing.assert_allclose(np.asarray(out), np.asarray(ref),
                               rtol=5e-2, atol=5e-2)

    print("KERNEL_OK")
</pallas_src>

<mosaic_0001>
module attributes {stable_mosaic.version = 11 : i64} {
  func.func @_pool_conv_kernel(%arg0: i32, %arg1: memref<8x2x8x2x4xf32, #tpu.memory_space<vmem>>, %arg2: memref<3x3x4x8xbf16, #tpu.memory_space<vmem>>, %arg3: memref<1x8xf32, #tpu.memory_space<vmem>>, %arg4: memref<1x8x8x8xf32, #tpu.memory_space<vmem>>, %arg5: memref<2x8xf32, #tpu.memory_space<vmem>>, %arg6: memref<10x10x4xf32, #tpu.memory_space<vmem>>) attributes {dimension_semantics = [#tpu.dimension_semantics<arbitrary>], iteration_bounds = array<i64: 2>, scalar_prefetch = 0 : i64, scratch_operands = 1 : i64, tpu.core_type = #tpu.core_type<tc>, window_params = [{transform_indices = @transform_0, window_bounds = array<i64: 8, 2, 8, 2, 4>}, {pipeline_mode = #tpu.pipeline_mode<synchronous>, transform_indices = @transform_1, window_bounds = array<i64: 3, 3, 4, 8>}, {pipeline_mode = #tpu.pipeline_mode<synchronous>, transform_indices = @transform_2, window_bounds = array<i64: 1, 8>}, {transform_indices = @transform_3, window_bounds = array<i64: 1, 8, 8, 8>}, {pipeline_mode = #tpu.pipeline_mode<synchronous>, transform_indices = @transform_4, window_bounds = array<i64: 2, 8>}]} {
    %c0_i32 = arith.constant 0 : i32
    %0 = arith.cmpi eq, %arg0, %c0_i32 : i32
    %1 = arith.extui %0 : i1 to i32
    %c0_i32_0 = arith.constant 0 : i32
    %2 = arith.cmpi ne, %1, %c0_i32_0 : i32
    scf.if %2 {
      %cst_106 = arith.constant 0.000000e+00 : f32
      %99 = vector.broadcast %cst_106 : f32 to vector<1x10x4xf32>
      %c0_107 = arith.constant 0 : index
      %c0_108 = arith.constant 0 : index
      %c0_109 = arith.constant 0 : index
      %100 = vector.load %arg6[%c0_107, %c0_108, %c0_109] : memref<10x10x4xf32, #tpu.memory_space<vmem>>, vector<1x10x4xf32>
      tpu.vector_store %arg6[%c0_107, %c0_108, %c0_109], %99 {strides = array<i32>} : memref<10x10x4xf32, #tpu.memory_space<vmem>>, vector<1x10x4xf32>,
      %cst_110 = arith.constant 0.000000e+00 : f32
      %101 = vector.broadcast %cst_110 : f32 to vector<1x10x4xf32>
      %c9 = arith.constant 9 : index
      %c0_111 = arith.constant 0 : index
      %c0_112 = arith.constant 0 : index
      %102 = vector.load %arg6[%c9, %c0_111, %c0_112] : memref<10x10x4xf32, #tpu.memory_space<vmem>>, vector<1x10x4xf32>
      tpu.vector_store %arg6[%c9, %c0_111, %c0_112], %101 {strides = array<i32>} : memref<10x10x4xf32, #tpu.memory_space<vmem>>, vector<1x10x4xf32>,
      %cst_113 = arith.constant 0.000000e+00 : f32
      %103 = vector.broadcast %cst_113 : f32 to vector<8x1x4xf32>
      %c1_114 = arith.constant 1 : index
      %c0_115 = arith.constant 0 : index
      %c0_116 = arith.constant 0 : index
      %104 = vector.load %arg6[%c1_114, %c0_115, %c0_116] : memref<10x10x4xf32, #tpu.memory_space<vmem>>, vector<8x1x4xf32>
      tpu.vector_store %arg6[%c1_114, %c0_115, %c0_116], %103 {strides = array<i32>} : memref<10x10x4xf32, #tpu.memory_space<vmem>>, vector<8x1x4xf32>,
      %cst_117 = arith.constant 0.000000e+00 : f32
      %105 = vector.broadcast %cst_117 : f32 to vector<8x1x4xf32>
      %c1_118 = arith.constant 1 : index
      %c9_119 = arith.constant 9 : index
      %c0_120 = arith.constant 0 : index
      %106 = vector.load %arg6[%c1_118, %c9_119, %c0_120] : memref<10x10x4xf32, #tpu.memory_space<vmem>>, vector<8x1x4xf32>
      tpu.vector_store %arg6[%c1_118, %c9_119, %c0_120], %105 {strides = array<i32>} : memref<10x10x4xf32, #tpu.memory_space<vmem>>, vector<8x1x4xf32>,
    } else {
    }
    %c0 = arith.constant 0 : index
    %c0_1 = arith.constant 0 : index
    %c0_2 = arith.constant 0 : index
    %c0_3 = arith.constant 0 : index
    %c0_4 = arith.constant 0 : index
    %3 = vector.load %arg1[%c0, %c0_1, %c0_2, %c0_3, %c0_4] : memref<8x2x8x2x4xf32, #tpu.memory_space<vmem>>, vector<8x1x8x1x4xf32>
    %4 = vector.shape_cast %3 : vector<8x1x8x1x4xf32> to vector<8x8x4xf32>
    %c0_5 = arith.constant 0 : index
    %c0_6 = arith.constant 0 : index
    %c0_7 = arith.constant 0 : index
    %c1 = arith.constant 1 : index
    %c0_8 = arith.constant 0 : index
    %5 = vector.load %arg1[%c0_5, %c0_6, %c0_7, %c1, %c0_8] : memref<8x2x8x2x4xf32, #tpu.memory_space<vmem>>, vector<8x1x8x1x4xf32>
    %6 = vector.shape_cast %5 : vector<8x1x8x1x4xf32> to vector<8x8x4xf32>
    %c0_9 = arith.constant 0 : index
    %c1_10 = arith.constant 1 : index
    %c0_11 = arith.constant 0 : index
    %c0_12 = arith.constant 0 : index
    %c0_13 = arith.constant 0 : index
    %7 = vector.load %arg1[%c0_9, %c1_10, %c0_11, %c0_12, %c0_13] : memref<8x2x8x2x4xf32, #tpu.memory_space<vmem>>, vector<8x1x8x1x4xf32>
    %8 = vector.shape_cast %7 : vector<8x1x8x1x4xf32> to vector<8x8x4xf32>
    %c0_14 = arith.constant 0 : index
    %c1_15 = arith.constant 1 : index
    %c0_16 = arith.constant 0 : index
    %c1_17 = arith.constant 1 : index
    %c0_18 = arith.constant 0 : index
    %9 = vector.load %arg1[%c0_14, %c1_15, %c0_16, %c1_17, %c0_18] : memref<8x2x8x2x4xf32, #tpu.memory_space<vmem>>, vector<8x1x8x1x4xf32>
    %10 = vector.shape_cast %9 : vector<8x1x8x1x4xf32> to vector<8x8x4xf32>
    %11 = arith.maximumf %4, %6 : vector<8x8x4xf32>
    %12 = arith.maximumf %8, %10 : vector<8x8x4xf32>
    %13 = arith.maximumf %11, %12 : vector<8x8x4xf32>
    %c1_19 = arith.constant 1 : index
    %c1_20 = arith.constant 1 : index
    %c0_21 = arith.constant 0 : index
    %14 = vector.load %arg6[%c1_19, %c1_20, %c0_21] : memref<10x10x4xf32, #tpu.memory_space<vmem>>, vector<8x8x4xf32>
    tpu.vector_store %arg6[%c1_19, %c1_20, %c0_21], %13 {strides = array<i32>} : memref<10x10x4xf32, #tpu.memory_space<vmem>>, vector<8x8x4xf32>,
    %cst = arith.constant 0.000000e+00 : f32
    %15 = vector.broadcast %cst : f32 to vector<64x8xf32>
    %c0_22 = arith.constant 0 : index
    %c0_23 = arith.constant 0 : index
    %c0_24 = arith.constant 0 : index
    %16 = vector.load %arg6[%c0_22, %c0_23, %c0_24] : memref<10x10x4xf32, #tpu.memory_space<vmem>>, vector<8x8x4xf32>
    %17 = vector.shape_cast %16 : vector<8x8x4xf32> to vector<64x4xf32>
    %18 = arith.truncf %17 : vector<64x4xf32> to vector<64x4xbf16>
    %c0_25 = arith.constant 0 : index
    %c0_26 = arith.constant 0 : index
    %c0_27 = arith.constant 0 : index
    %c0_28 = arith.constant 0 : index
    %19 = vector.load %arg2[%c0_25, %c0_26, %c0_27, %c0_28] : memref<3x3x4x8xbf16, #tpu.memory_space<vmem>>, vector<1x1x4x8xbf16>
    %20 = vector.shape_cast %19 : vector<1x1x4x8xbf16> to vector<4x8xbf16>
    %cst_29 = arith.constant dense<0.000000e+00> : vector<64x8xf32>
    %21 = tpu.matmul %18, %20, %cst_29 {dimension_numbers = #tpu.dot_dimension_numbers<[1], [0], [0], [1], [0, 0, 1, 1], [], []>} : vector<64x4xbf16>, vector<4x8xbf16>, vector<64x8xf32> -> vector<64x8xf32>
    %22 = arith.addf %15, %21 : vector<64x8xf32>
    %c0_30 = arith.constant 0 : index
    %c1_31 = arith.constant 1 : index
    %c0_32 = arith.constant 0 : index
    %23 = vector.load %arg6[%c0_30, %c1_31, %c0_32] : memref<10x10x4xf32, #tpu.memory_space<vmem>>, vector<8x8x4xf32>
    %24 = vector.shape_cast %23 : vector<8x8x4xf32> to vector<64x4xf32>
    %25 = arith.truncf %24 : vector<64x4xf32> to vector<64x4xbf16>
    %c0_33 = arith.constant 0 : index
    %c1_34 = arith.constant 1 : index
    %c0_35 = arith.constant 0 : index
    %c0_36 = arith.constant 0 : index
    %26 = vector.load %arg2[%c0_33, %c1_34, %c0_35, %c0_36] : memref<3x3x4x8xbf16, #tpu.memory_space<vmem>>, vector<1x1x4x8xbf16>
    %27 = vector.shape_cast %26 : vector<1x1x4x8xbf16> to vector<4x8xbf16>
    %cst_37 = arith.constant dense<0.000000e+00> : vector<64x8xf32>
    %28 = tpu.matmul %25, %27, %cst_37 {dimension_numbers = #tpu.dot_dimension_numbers<[1], [0], [0], [1], [0, 0, 1, 1], [], []>} : vector<64x4xbf16>, vector<4x8xbf16>, vector<64x8xf32> -> vector<64x8xf32>
    %29 = arith.addf %22, %28 : vector<64x8xf32>
    %c0_38 = arith.constant 0 : index
    %c2 = arith.constant 2 : index
    %c0_39 = arith.constant 0 : index
    %30 = vector.load %arg6[%c0_38, %c2, %c0_39] : memref<10x10x4xf32, #tpu.memory_space<vmem>>, vector<8x8x4xf32>
    %31 = vector.shape_cast %30 : vector<8x8x4xf32> to vector<64x4xf32>
    %32 = arith.truncf %31 : vector<64x4xf32> to vector<64x4xbf16>
    %c0_40 = arith.constant 0 : index
    %c2_41 = arith.constant 2 : index
    %c0_42 = arith.constant 0 : index
    %c0_43 = arith.constant 0 : index
    %33 = vector.load %arg2[%c0_40, %c2_41, %c0_42, %c0_43] : memref<3x3x4x8xbf16, #tpu.memory_space<vmem>>, vector<1x1x4x8xbf16>
    %34 = vector.shape_cast %33 : vector<1x1x4x8xbf16> to vector<4x8xbf16>
    %cst_44 = arith.constant dense<0.000000e+00> : vector<64x8xf32>
    %35 = tpu.matmul %32, %34, %cst_44 {dimension_numbers = #tpu.dot_dimension_numbers<[1], [0], [0], [1], [0, 0, 1, 1], [], []>} : vector<64x4xbf16>, vector<4x8xbf16>, vector<64x8xf32> -> vector<64x8xf32>
    %36 = arith.addf %29, %35 : vector<64x8xf32>
    %c1_45 = arith.constant 1 : index
    %c0_46 = arith.constant 0 : index
    %c0_47 = arith.constant 0 : index
    %37 = vector.load %arg6[%c1_45, %c0_46, %c0_47] : memref<10x10x4xf32, #tpu.memory_space<vmem>>, vector<8x8x4xf32>
    %38 = vector.shape_cast %37 : vector<8x8x4xf32> to vector<64x4xf32>
    %39 = arith.truncf %38 : vector<64x4xf32> to vector<64x4xbf16>
    %c1_48 = arith.constant 1 : index
    %c0_49 = arith.constant 0 : index
    %c0_50 = arith.constant 0 : index
    %c0_51 = arith.constant 0 : index
    %40 = vector.load %arg2[%c1_48, %c0_49, %c0_50, %c0_51] : memref<3x3x4x8xbf16, #tpu.memory_space<vmem>>, vector<1x1x4x8xbf16>
    %41 = vector.shape_cast %40 : vector<1x1x4x8xbf16> to vector<4x8xbf16>
    %cst_52 = arith.constant dense<0.000000e+00> : vector<64x8xf32>
    %42 = tpu.matmul %39, %41, %cst_52 {dimension_numbers = #tpu.dot_dimension_numbers<[1], [0], [0], [1], [0, 0, 1, 1], [], []>} : vector<64x4xbf16>, vector<4x8xbf16>, vector<64x8xf32> -> vector<64x8xf32>
    %43 = arith.addf %36, %42 : vector<64x8xf32>
    %c1_53 = arith.constant 1 : index
    %c1_54 = arith.constant 1 : index
    %c0_55 = arith.constant 0 : index
    %44 = vector.load %arg6[%c1_53, %c1_54, %c0_55] : memref<10x10x4xf32, #tpu.memory_space<vmem>>, vector<8x8x4xf32>
    %45 = vector.shape_cast %44 : vector<8x8x4xf32> to vector<64x4xf32>
    %46 = arith.truncf %45 : vector<64x4xf32> to vector<64x4xbf16>
    %c1_56 = arith.constant 1 : index
    %c1_57 = arith.constant 1 : index
    %c0_58 = arith.constant 0 : index
    %c0_59 = arith.constant 0 : index
    %47 = vector.load %arg2[%c1_56, %c1_57, %c0_58, %c0_59] : memref<3x3x4x8xbf16, #tpu.memory_space<vmem>>, vector<1x1x4x8xbf16>
    %48 = vector.shape_cast %47 : vector<1x1x4x8xbf16> to vector<4x8xbf16>
    %cst_60 = arith.constant dense<0.000000e+00> : vector<64x8xf32>
    %49 = tpu.matmul %46, %48, %cst_60 {dimension_numbers = #tpu.dot_dimension_numbers<[1], [0], [0], [1], [0, 0, 1, 1], [], []>} : vector<64x4xbf16>, vector<4x8xbf16>, vector<64x8xf32> -> vector<64x8xf32>
    %50 = arith.addf %43, %49 : vector<64x8xf32>
    %c1_61 = arith.constant 1 : index
    %c2_62 = arith.constant 2 : index
    %c0_63 = arith.constant 0 : index
    %51 = vector.load %arg6[%c1_61, %c2_62, %c0_63] : memref<10x10x4xf32, #tpu.memory_space<vmem>>, vector<8x8x4xf32>
    %52 = vector.shape_cast %51 : vector<8x8x4xf32> to vector<64x4xf32>
    %53 = arith.truncf %52 : vector<64x4xf32> to vector<64x4xbf16>
    %c1_64 = arith.constant 1 : index
    %c2_65 = arith.constant 2 : index
    %c0_66 = arith.constant 0 : index
    %c0_67 = arith.constant 0 : index
    %54 = vector.load %arg2[%c1_64, %c2_65, %c0_66, %c0_67] : memref<3x3x4x8xbf16, #tpu.memory_space<vmem>>, vector<1x1x4x8xbf16>
    %55 = vector.shape_cast %54 : vector<1x1x4x8xbf16> to vector<4x8xbf16>
    %cst_68 = arith.constant dense<0.000000e+00> : vector<64x8xf32>
    %56 = tpu.matmul %53, %55, %cst_68 {dimension_numbers = #tpu.dot_dimension_numbers<[1], [0], [0], [1], [0, 0, 1, 1], [], []>} : vector<64x4xbf16>, vector<4x8xbf16>, vector<64x8xf32> -> vector<64x8xf32>
    %57 = arith.addf %50, %56 : vector<64x8xf32>
    %c2_69 = arith.constant 2 : index
    %c0_70 = arith.constant 0 : index
    %c0_71 = arith.constant 0 : index
    %58 = vector.load %arg6[%c2_69, %c0_70, %c0_71] : memref<10x10x4xf32, #tpu.memory_space<vmem>>, vector<8x8x4xf32>
    %59 = vector.shape_cast %58 : vector<8x8x4xf32> to vector<64x4xf32>
    %60 = arith.truncf %59 : vector<64x4xf32> to vector<64x4xbf16>
    %c2_72 = arith.constant 2 : index
    %c0_73 = arith.constant 0 : index
    %c0_74 = arith.constant 0 : index
    %c0_75 = arith.constant 0 : index
    %61 = vector.load %arg2[%c2_72, %c0_73, %c0_74, %c0_75] : memref<3x3x4x8xbf16, #tpu.memory_space<vmem>>, vector<1x1x4x8xbf16>
    %62 = vector.shape_cast %61 : vector<1x1x4x8xbf16> to vector<4x8xbf16>
    %cst_76 = arith.constant dense<0.000000e+00> : vector<64x8xf32>
    %63 = tpu.matmul %60, %62, %cst_76 {dimension_numbers = #tpu.dot_dimension_numbers<[1], [0], [0], [1], [0, 0, 1, 1], [], []>} : vector<64x4xbf16>, vector<4x8xbf16>, vector<64x8xf32> -> vector<64x8xf32>
    %64 = arith.addf %57, %63 : vector<64x8xf32>
    %c2_77 = arith.constant 2 : index
    %c1_78 = arith.constant 1 : index
    %c0_79 = arith.constant 0 : index
    %65 = vector.load %arg6[%c2_77, %c1_78, %c0_79] : memref<10x10x4xf32, #tpu.memory_space<vmem>>, vector<8x8x4xf32>
    %66 = vector.shape_cast %65 : vector<8x8x4xf32> to vector<64x4xf32>
    %67 = arith.truncf %66 : vector<64x4xf32> to vector<64x4xbf16>
    %c2_80 = arith.constant 2 : index
    %c1_81 = arith.constant 1 : index
    %c0_82 = arith.constant 0 : index
    %c0_83 = arith.constant 0 : index
    %68 = vector.load %arg2[%c2_80, %c1_81, %c0_82, %c0_83] : memref<3x3x4x8xbf16, #tpu.memory_space<vmem>>, vector<1x1x4x8xbf16>
    %69 = vector.shape_cast %68 : vector<1x1x4x8xbf16> to vector<4x8xbf16>
    %cst_84 = arith.constant dense<0.000000e+00> : vector<64x8xf32>
    %70 = tpu.matmul %67, %69, %cst_84 {dimension_numbers = #tpu.dot_dimension_numbers<[1], [0], [0], [1], [0, 0, 1, 1], [], []>} : vector<64x4xbf16>, vector<4x8xbf16>, vector<64x8xf32> -> vector<64x8xf32>
    %71 = arith.addf %64, %70 : vector<64x8xf32>
    %c2_85 = arith.constant 2 : index
    %c2_86 = arith.constant 2 : index
    %c0_87 = arith.constant 0 : index
    %72 = vector.load %arg6[%c2_85, %c2_86, %c0_87] : memref<10x10x4xf32, #tpu.memory_space<vmem>>, vector<8x8x4xf32>
    %73 = vector.shape_cast %72 : vector<8x8x4xf32> to vector<64x4xf32>
    %74 = arith.truncf %73 : vector<64x4xf32> to vector<64x4xbf16>
    %c2_88 = arith.constant 2 : index
    %c2_89 = arith.constant 2 : index
    %c0_90 = arith.constant 0 : index
    %c0_91 = arith.constant 0 : index
    %75 = vector.load %arg2[%c2_88, %c2_89, %c0_90, %c0_91] : memref<3x3x4x8xbf16, #tpu.memory_space<vmem>>, vector<1x1x4x8xbf16>
    %76 = vector.shape_cast %75 : vector<1x1x4x8xbf16> to vector<4x8xbf16>
    %cst_92 = arith.constant dense<0.000000e+00> : vector<64x8xf32>
    %77 = tpu.matmul %74, %76, %cst_92 {dimension_numbers = #tpu.dot_dimension_numbers<[1], [0], [0], [1], [0, 0, 1, 1], [], []>} : vector<64x4xbf16>, vector<4x8xbf16>, vector<64x8xf32> -> vector<64x8xf32>
    %78 = arith.addf %71, %77 : vector<64x8xf32>
    %c0_93 = arith.constant 0 : index
    %c0_94 = arith.constant 0 : index
    %79 = vector.load %arg3[%c0_93, %c0_94] : memref<1x8xf32, #tpu.memory_space<vmem>>, vector<1x8xf32>
    %80 = vector.broadcast %79 : vector<1x8xf32> to vector<64x8xf32>
    %81 = arith.addf %78, %80 : vector<64x8xf32>
    %82 = vector.shape_cast %81 : vector<64x8xf32> to vector<1x8x8x8xf32>
    %c0_95 = arith.constant 0 : index
    %c0_96 = arith.constant 0 : index
    %c0_97 = arith.constant 0 : index
    %c0_98 = arith.constant 0 : index
    %83 = vector.load %arg4[%c0_95, %c0_96, %c0_97, %c0_98] : memref<1x8x8x8xf32, #tpu.memory_space<vmem>>, vector<1x8x8x8xf32>
    tpu.vector_store %arg4[%c0_95, %c0_96, %c0_97, %c0_98], %82 {strides = array<i32>} : memref<1x8x8x8xf32, #tpu.memory_space<vmem>>, vector<1x8x8x8xf32>,
    %cst_99 = arith.constant dense<0.000000e+00> : vector<8xf32>
    %84 = vector.multi_reduction <add>, %81, %cst_99 [0] : vector<64x8xf32> to vector<8xf32>
    %85 = vector.shape_cast %84 : vector<8xf32> to vector<1x8xf32>
    %cst_100 = arith.constant 1.562500e-02 : f32
    %86 = vector.broadcast %cst_100 : f32 to vector<1x8xf32>
    %87 = arith.mulf %85, %86 : vector<1x8xf32>
    %88 = vector.broadcast %87 : vector<1x8xf32> to vector<64x8xf32>
    %89 = arith.subf %81, %88 : vector<64x8xf32>
    %90 = arith.mulf %89, %89 : vector<64x8xf32>
    %cst_101 = arith.constant dense<0.000000e+00> : vector<8xf32>
    %91 = vector.multi_reduction <add>, %90, %cst_101 [0] : vector<64x8xf32> to vector<8xf32>
    %92 = vector.shape_cast %91 : vector<8xf32> to vector<1x8xf32>
    %c0_i32_102 = arith.constant 0 : i32
    %93 = arith.cmpi eq, %arg0, %c0_i32_102 : i32
    %94 = arith.extui %93 : i1 to i32
    %c0_i32_103 = arith.constant 0 : i32
    %95 = arith.cmpi ne, %94, %c0_i32_103 : i32
    scf.if %95 {
      %c0_106 = arith.constant 0 : index
      %c0_107 = arith.constant 0 : index
      %99 = vector.load %arg5[%c0_106, %c0_107] : memref<2x8xf32, #tpu.memory_space<vmem>>, vector<1x8xf32>
      tpu.vector_store %arg5[%c0_106, %c0_107], %87 {strides = array<i32>} : memref<2x8xf32, #tpu.memory_space<vmem>>, vector<1x8xf32>,
      %c1_108 = arith.constant 1 : index
      %c0_109 = arith.constant 0 : index
      %100 = vector.load %arg5[%c1_108, %c0_109] : memref<2x8xf32, #tpu.memory_space<vmem>>, vector<1x8xf32>
      tpu.vector_store %arg5[%c1_108, %c0_109], %92 {strides = array<i32>} : memref<2x8xf32, #tpu.memory_space<vmem>>, vector<1x8xf32>,
    } else {
    }
    %c0_i32_104 = arith.constant 0 : i32
    %96 = arith.cmpi sgt, %arg0, %c0_i32_104 : i32
    %97 = arith.extui %96 : i1 to i32
    %c0_i32_105 = arith.constant 0 : i32
    %98 = arith.cmpi ne, %97, %c0_i32_105 : i32
    scf.if %98 {
      %99 = arith.sitofp %arg0 : i32 to f32
      %cst_106 = arith.constant 6.400000e+01 : f32
      %100 = arith.mulf %99, %cst_106 : f32
      %c0_107 = arith.constant 0 : index
      %c0_108 = arith.constant 0 : index
      %101 = vector.load %arg5[%c0_107, %c0_108] : memref<2x8xf32, #tpu.memory_space<vmem>>, vector<1x8xf32>
      %c1_109 = arith.constant 1 : index
      %c0_110 = arith.constant 0 : index
      %102 = vector.load %arg5[%c1_109, %c0_110] : memref<2x8xf32, #tpu.memory_space<vmem>>, vector<1x8xf32>
      %103 = arith.subf %87, %101 : vector<1x8xf32>
      %cst_111 = arith.constant 6.400000e+01 : f32
      %104 = arith.addf %100, %cst_111 : f32
      %cst_112 = arith.constant 6.400000e+01 : f32
      %105 = arith.divf %cst_112, %104 : f32
      %106 = vector.broadcast %105 : f32 to vector<1x8xf32>
      %107 = arith.mulf %103, %106 : vector<1x8xf32>
      %108 = arith.addf %101, %107 : vector<1x8xf32>
      %c0_113 = arith.constant 0 : index
      %c0_114 = arith.constant 0 : index
      %109 = vector.load %arg5[%c0_113, %c0_114] : memref<2x8xf32, #tpu.memory_space<vmem>>, vector<1x8xf32>
      tpu.vector_store %arg5[%c0_113, %c0_114], %108 {strides = array<i32>} : memref<2x8xf32, #tpu.memory_space<vmem>>, vector<1x8xf32>,
      %110 = arith.addf %102, %92 : vector<1x8xf32>
      %111 = arith.mulf %103, %103 : vector<1x8xf32>
      %112 = arith.mulf %100, %105 : f32
      %113 = vector.broadcast %112 : f32 to vector<1x8xf32>
      %114 = arith.mulf %111, %113 : vector<1x8xf32>
      %115 = arith.addf %110, %114 : vector<1x8xf32>
      %c1_115 = arith.constant 1 : index
      %c0_116 = arith.constant 0 : index
      %116 = vector.load %arg5[%c1_115, %c0_116] : memref<2x8xf32, #tpu.memory_space<vmem>>, vector<1x8xf32>
      tpu.vector_store %arg5[%c1_115, %c0_116], %115 {strides = array<i32>} : memref<2x8xf32, #tpu.memory_space<vmem>>, vector<1x8xf32>,
    } else {
    }
    return
  }
  func.func @transform_0(%arg0: i32) -> (i32, i32, i32, i32, i32) {
    %c0_i32 = arith.constant 0 : i32
    %c0_i32_0 = arith.constant 0 : i32
    %c0_i32_1 = arith.constant 0 : i32
    %c0_i32_2 = arith.constant 0 : i32
    %c0_i32_3 = arith.constant 0 : i32
    return %arg0, %c0_i32, %c0_i32_0, %c0_i32_1, %c0_i32_2 : i32, i32, i32, i32, i32
  }
  func.func @transform_1(%arg0: i32) -> (i32, i32, i32, i32) {
    %c0_i32 = arith.constant 0 : i32
    %c0_i32_0 = arith.constant 0 : i32
    %c0_i32_1 = arith.constant 0 : i32
    %c0_i32_2 = arith.constant 0 : i32
    %c0_i32_3 = arith.constant 0 : i32
    return %c0_i32, %c0_i32_0, %c0_i32_1, %c0_i32_2 : i32, i32, i32, i32
  }
  func.func @transform_2(%arg0: i32) -> (i32, i32) {
    %c0_i32 = arith.constant 0 : i32
    %c0_i32_0 = arith.constant 0 : i32
    %c0_i32_1 = arith.constant 0 : i32
    return %c0_i32, %c0_i32_0 : i32, i32
  }
  func.func @transform_3(%arg0: i32) -> (i32, i32, i32, i32) {
    %c0_i32 = arith.constant 0 : i32
    %c0_i32_0 = arith.constant 0 : i32
    %c0_i32_1 = arith.constant 0 : i32
    %c0_i32_2 = arith.constant 0 : i32
    return %arg0, %c0_i32, %c0_i32_0, %c0_i32_1 : i32, i32, i32, i32
  }
  func.func @transform_4(%arg0: i32) -> (i32, i32) {
    %c0_i32 = arith.constant 0 : i32
    %c0_i32_0 = arith.constant 0 : i32
    %c0_i32_1 = arith.constant 0 : i32
    return %c0_i32, %c0_i32_0 : i32, i32
  }
}

module attributes {stable_mosaic.version = 11 : i64} {
  func.func @_norm_conv_kernel(%arg0: i32, %arg1: memref<1x8x8x8xf32, #tpu.memory_space<vmem>>, %arg2: memref<1x8xf32, #tpu.memory_space<vmem>>, %arg3: memref<1x8xf32, #tpu.memory_space<vmem>>, %arg4: memref<3x3x8x8xbf16, #tpu.memory_space<vmem>>, %arg5: memref<1x8xf32, #tpu.memory_space<vmem>>, %arg6: memref<1x8x8x8xf32, #tpu.memory_space<vmem>>, %arg7: memref<2x8xf32, #tpu.memory_space<vmem>>, %arg8: memref<10x10x8xf32, #tpu.memory_space<vmem>>) attributes {dimension_semantics = [#tpu.dimension_semantics<arbitrary>], iteration_bounds = array<i64: 2>, scalar_prefetch = 0 : i64, scratch_operands = 1 : i64, tpu.core_type = #tpu.core_type<tc>, window_params = [{transform_indices = @transform_0, window_bounds = array<i64: 1, 8, 8, 8>}, {pipeline_mode = #tpu.pipeline_mode<synchronous>, transform_indices = @transform_1, window_bounds = array<i64: 1, 8>}, {pipeline_mode = #tpu.pipeline_mode<synchronous>, transform_indices = @transform_2, window_bounds = array<i64: 1, 8>}, {pipeline_mode = #tpu.pipeline_mode<synchronous>, transform_indices = @transform_3, window_bounds = array<i64: 3, 3, 8, 8>}, {pipeline_mode = #tpu.pipeline_mode<synchronous>, transform_indices = @transform_4, window_bounds = array<i64: 1, 8>}, {transform_indices = @transform_5, window_bounds = array<i64: 1, 8, 8, 8>}, {pipeline_mode = #tpu.pipeline_mode<synchronous>, transform_indices = @transform_6, window_bounds = array<i64: 2, 8>}]} {
    %c0_i32 = arith.constant 0 : i32
    %0 = arith.cmpi eq, %arg0, %c0_i32 : i32
    %1 = arith.extui %0 : i1 to i32
    %c0_i32_0 = arith.constant 0 : i32
    %2 = arith.cmpi ne, %1, %c0_i32_0 : i32
    scf.if %2 {
      %cst_95 = arith.constant 0.000000e+00 : f32
      %100 = vector.broadcast %cst_95 : f32 to vector<1x10x8xf32>
      %c0_96 = arith.constant 0 : index
      %c0_97 = arith.constant 0 : index
      %c0_98 = arith.constant 0 : index
      %101 = vector.load %arg8[%c0_96, %c0_97, %c0_98] : memref<10x10x8xf32, #tpu.memory_space<vmem>>, vector<1x10x8xf32>
      tpu.vector_store %arg8[%c0_96, %c0_97, %c0_98], %100 {strides = array<i32>} : memref<10x10x8xf32, #tpu.memory_space<vmem>>, vector<1x10x8xf32>,
      %cst_99 = arith.constant 0.000000e+00 : f32
      %102 = vector.broadcast %cst_99 : f32 to vector<1x10x8xf32>
      %c9 = arith.constant 9 : index
      %c0_100 = arith.constant 0 : index
      %c0_101 = arith.constant 0 : index
      %103 = vector.load %arg8[%c9, %c0_100, %c0_101] : memref<10x10x8xf32, #tpu.memory_space<vmem>>, vector<1x10x8xf32>
      tpu.vector_store %arg8[%c9, %c0_100, %c0_101], %102 {strides = array<i32>} : memref<10x10x8xf32, #tpu.memory_space<vmem>>, vector<1x10x8xf32>,
      %cst_102 = arith.constant 0.000000e+00 : f32
      %104 = vector.broadcast %cst_102 : f32 to vector<8x1x8xf32>
      %c1_103 = arith.constant 1 : index
      %c0_104 = arith.constant 0 : index
      %c0_105 = arith.constant 0 : index
      %105 = vector.load %arg8[%c1_103, %c0_104, %c0_105] : memref<10x10x8xf32, #tpu.memory_space<vmem>>, vector<8x1x8xf32>
      tpu.vector_store %arg8[%c1_103, %c0_104, %c0_105], %104 {strides = array<i32>} : memref<10x10x8xf32, #tpu.memory_space<vmem>>, vector<8x1x8xf32>,
      %cst_106 = arith.constant 0.000000e+00 : f32
      %106 = vector.broadcast %cst_106 : f32 to vector<8x1x8xf32>
      %c1_107 = arith.constant 1 : index
      %c9_108 = arith.constant 9 : index
      %c0_109 = arith.constant 0 : index
      %107 = vector.load %arg8[%c1_107, %c9_108, %c0_109] : memref<10x10x8xf32, #tpu.memory_space<vmem>>, vector<8x1x8xf32>
      tpu.vector_store %arg8[%c1_107, %c9_108, %c0_109], %106 {strides = array<i32>} : memref<10x10x8xf32, #tpu.memory_space<vmem>>, vector<8x1x8xf32>,
    } else {
    }
    %c0 = arith.constant 0 : index
    %c0_1 = arith.constant 0 : index
    %c0_2 = arith.constant 0 : index
    %c0_3 = arith.constant 0 : index
    %3 = vector.load %arg1[%c0, %c0_1, %c0_2, %c0_3] : memref<1x8x8x8xf32, #tpu.memory_space<vmem>>, vector<1x8x8x8xf32>
    %4 = vector.shape_cast %3 : vector<1x8x8x8xf32> to vector<8x8x8xf32>
    %c0_4 = arith.constant 0 : index
    %c0_5 = arith.constant 0 : index
    %5 = vector.load %arg2[%c0_4, %c0_5] : memref<1x8xf32, #tpu.memory_space<vmem>>, vector<1x8xf32>
    %6 = vector.shape_cast %5 : vector<1x8xf32> to vector<1x1x8xf32>
    %7 = vector.broadcast %6 : vector<1x1x8xf32> to vector<8x8x8xf32>
    %8 = arith.mulf %4, %7 : vector<8x8x8xf32>
    %c0_6 = arith.constant 0 : index
    %c0_7 = arith.constant 0 : index
    %9 = vector.load %arg3[%c0_6, %c0_7] : memref<1x8xf32, #tpu.memory_space<vmem>>, vector<1x8xf32>
    %10 = vector.shape_cast %9 : vector<1x8xf32> to vector<1x1x8xf32>
    %11 = vector.broadcast %10 : vector<1x1x8xf32> to vector<8x8x8xf32>
    %12 = arith.addf %8, %11 : vector<8x8x8xf32>
    %cst = arith.constant 0.000000e+00 : f32
    %13 = vector.broadcast %cst : f32 to vector<8x8x8xf32>
    %14 = arith.maximumf %12, %13 : vector<8x8x8xf32>
    %c1 = arith.constant 1 : index
    %c1_8 = arith.constant 1 : index
    %c0_9 = arith.constant 0 : index
    %15 = vector.load %arg8[%c1, %c1_8, %c0_9] : memref<10x10x8xf32, #tpu.memory_space<vmem>>, vector<8x8x8xf32>
    tpu.vector_store %arg8[%c1, %c1_8, %c0_9], %14 {strides = array<i32>} : memref<10x10x8xf32, #tpu.memory_space<vmem>>, vector<8x8x8xf32>,
    %cst_10 = arith.constant 0.000000e+00 : f32
    %16 = vector.broadcast %cst_10 : f32 to vector<64x8xf32>
    %c0_11 = arith.constant 0 : index
    %c0_12 = arith.constant 0 : index
    %c0_13 = arith.constant 0 : index
    %17 = vector.load %arg8[%c0_11, %c0_12, %c0_13] : memref<10x10x8xf32, #tpu.memory_space<vmem>>, vector<8x8x8xf32>
    %18 = vector.shape_cast %17 : vector<8x8x8xf32> to vector<64x8xf32>
    %19 = arith.truncf %18 : vector<64x8xf32> to vector<64x8xbf16>
    %c0_14 = arith.constant 0 : index
    %c0_15 = arith.constant 0 : index
    %c0_16 = arith.constant 0 : index
    %c0_17 = arith.constant 0 : index
    %20 = vector.load %arg4[%c0_14, %c0_15, %c0_16, %c0_17] : memref<3x3x8x8xbf16, #tpu.memory_space<vmem>>, vector<1x1x8x8xbf16>
    %21 = vector.shape_cast %20 : vector<1x1x8x8xbf16> to vector<8x8xbf16>
    %cst_18 = arith.constant dense<0.000000e+00> : vector<64x8xf32>
    %22 = tpu.matmul %19, %21, %cst_18 {dimension_numbers = #tpu.dot_dimension_numbers<[1], [0], [0], [1], [0, 0, 1, 1], [], []>} : vector<64x8xbf16>, vector<8x8xbf16>, vector<64x8xf32> -> vector<64x8xf32>
    %23 = arith.addf %16, %22 : vector<64x8xf32>
    %c0_19 = arith.constant 0 : index
    %c1_20 = arith.constant 1 : index
    %c0_21 = arith.constant 0 : index
    %24 = vector.load %arg8[%c0_19, %c1_20, %c0_21] : memref<10x10x8xf32, #tpu.memory_space<vmem>>, vector<8x8x8xf32>
    %25 = vector.shape_cast %24 : vector<8x8x8xf32> to vector<64x8xf32>
    %26 = arith.truncf %25 : vector<64x8xf32> to vector<64x8xbf16>
    %c0_22 = arith.constant 0 : index
    %c1_23 = arith.constant 1 : index
    %c0_24 = arith.constant 0 : index
    %c0_25 = arith.constant 0 : index
    %27 = vector.load %arg4[%c0_22, %c1_23, %c0_24, %c0_25] : memref<3x3x8x8xbf16, #tpu.memory_space<vmem>>, vector<1x1x8x8xbf16>
    %28 = vector.shape_cast %27 : vector<1x1x8x8xbf16> to vector<8x8xbf16>
    %cst_26 = arith.constant dense<0.000000e+00> : vector<64x8xf32>
    %29 = tpu.matmul %26, %28, %cst_26 {dimension_numbers = #tpu.dot_dimension_numbers<[1], [0], [0], [1], [0, 0, 1, 1], [], []>} : vector<64x8xbf16>, vector<8x8xbf16>, vector<64x8xf32> -> vector<64x8xf32>
    %30 = arith.addf %23, %29 : vector<64x8xf32>
    %c0_27 = arith.constant 0 : index
    %c2 = arith.constant 2 : index
    %c0_28 = arith.constant 0 : index
    %31 = vector.load %arg8[%c0_27, %c2, %c0_28] : memref<10x10x8xf32, #tpu.memory_space<vmem>>, vector<8x8x8xf32>
    %32 = vector.shape_cast %31 : vector<8x8x8xf32> to vector<64x8xf32>
    %33 = arith.truncf %32 : vector<64x8xf32> to vector<64x8xbf16>
    %c0_29 = arith.constant 0 : index
    %c2_30 = arith.constant 2 : index
    %c0_31 = arith.constant 0 : index
    %c0_32 = arith.constant 0 : index
    %34 = vector.load %arg4[%c0_29, %c2_30, %c0_31, %c0_32] : memref<3x3x8x8xbf16, #tpu.memory_space<vmem>>, vector<1x1x8x8xbf16>
    %35 = vector.shape_cast %34 : vector<1x1x8x8xbf16> to vector<8x8xbf16>
    %cst_33 = arith.constant dense<0.000000e+00> : vector<64x8xf32>
    %36 = tpu.matmul %33, %35, %cst_33 {dimension_numbers = #tpu.dot_dimension_numbers<[1], [0], [0], [1], [0, 0, 1, 1], [], []>} : vector<64x8xbf16>, vector<8x8xbf16>, vector<64x8xf32> -> vector<64x8xf32>
    %37 = arith.addf %30, %36 : vector<64x8xf32>
    %c1_34 = arith.constant 1 : index
    %c0_35 = arith.constant 0 : index
    %c0_36 = arith.constant 0 : index
    %38 = vector.load %arg8[%c1_34, %c0_35, %c0_36] : memref<10x10x8xf32, #tpu.memory_space<vmem>>, vector<8x8x8xf32>
    %39 = vector.shape_cast %38 : vector<8x8x8xf32> to vector<64x8xf32>
    %40 = arith.truncf %39 : vector<64x8xf32> to vector<64x8xbf16>
    %c1_37 = arith.constant 1 : index
    %c0_38 = arith.constant 0 : index
    %c0_39 = arith.constant 0 : index
    %c0_40 = arith.constant 0 : index
    %41 = vector.load %arg4[%c1_37, %c0_38, %c0_39, %c0_40] : memref<3x3x8x8xbf16, #tpu.memory_space<vmem>>, vector<1x1x8x8xbf16>
    %42 = vector.shape_cast %41 : vector<1x1x8x8xbf16> to vector<8x8xbf16>
    %cst_41 = arith.constant dense<0.000000e+00> : vector<64x8xf32>
    %43 = tpu.matmul %40, %42, %cst_41 {dimension_numbers = #tpu.dot_dimension_numbers<[1], [0], [0], [1], [0, 0, 1, 1], [], []>} : vector<64x8xbf16>, vector<8x8xbf16>, vector<64x8xf32> -> vector<64x8xf32>
    %44 = arith.addf %37, %43 : vector<64x8xf32>
    %c1_42 = arith.constant 1 : index
    %c1_43 = arith.constant 1 : index
    %c0_44 = arith.constant 0 : index
    %45 = vector.load %arg8[%c1_42, %c1_43, %c0_44] : memref<10x10x8xf32, #tpu.memory_space<vmem>>, vector<8x8x8xf32>
    %46 = vector.shape_cast %45 : vector<8x8x8xf32> to vector<64x8xf32>
    %47 = arith.truncf %46 : vector<64x8xf32> to vector<64x8xbf16>
    %c1_45 = arith.constant 1 : index
    %c1_46 = arith.constant 1 : index
    %c0_47 = arith.constant 0 : index
    %c0_48 = arith.constant 0 : index
    %48 = vector.load %arg4[%c1_45, %c1_46, %c0_47, %c0_48] : memref<3x3x8x8xbf16, #tpu.memory_space<vmem>>, vector<1x1x8x8xbf16>
    %49 = vector.shape_cast %48 : vector<1x1x8x8xbf16> to vector<8x8xbf16>
    %cst_49 = arith.constant dense<0.000000e+00> : vector<64x8xf32>
    %50 = tpu.matmul %47, %49, %cst_49 {dimension_numbers = #tpu.dot_dimension_numbers<[1], [0], [0], [1], [0, 0, 1, 1], [], []>} : vector<64x8xbf16>, vector<8x8xbf16>, vector<64x8xf32> -> vector<64x8xf32>
    %51 = arith.addf %44, %50 : vector<64x8xf32>
    %c1_50 = arith.constant 1 : index
    %c2_51 = arith.constant 2 : index
    %c0_52 = arith.constant 0 : index
    %52 = vector.load %arg8[%c1_50, %c2_51, %c0_52] : memref<10x10x8xf32, #tpu.memory_space<vmem>>, vector<8x8x8xf32>
    %53 = vector.shape_cast %52 : vector<8x8x8xf32> to vector<64x8xf32>
    %54 = arith.truncf %53 : vector<64x8xf32> to vector<64x8xbf16>
    %c1_53 = arith.constant 1 : index
    %c2_54 = arith.constant 2 : index
    %c0_55 = arith.constant 0 : index
    %c0_56 = arith.constant 0 : index
    %55 = vector.load %arg4[%c1_53, %c2_54, %c0_55, %c0_56] : memref<3x3x8x8xbf16, #tpu.memory_space<vmem>>, vector<1x1x8x8xbf16>
    %56 = vector.shape_cast %55 : vector<1x1x8x8xbf16> to vector<8x8xbf16>
    %cst_57 = arith.constant dense<0.000000e+00> : vector<64x8xf32>
    %57 = tpu.matmul %54, %56, %cst_57 {dimension_numbers = #tpu.dot_dimension_numbers<[1], [0], [0], [1], [0, 0, 1, 1], [], []>} : vector<64x8xbf16>, vector<8x8xbf16>, vector<64x8xf32> -> vector<64x8xf32>
    %58 = arith.addf %51, %57 : vector<64x8xf32>
    %c2_58 = arith.constant 2 : index
    %c0_59 = arith.constant 0 : index
    %c0_60 = arith.constant 0 : index
    %59 = vector.load %arg8[%c2_58, %c0_59, %c0_60] : memref<10x10x8xf32, #tpu.memory_space<vmem>>, vector<8x8x8xf32>
    %60 = vector.shape_cast %59 : vector<8x8x8xf32> to vector<64x8xf32>
    %61 = arith.truncf %60 : vector<64x8xf32> to vector<64x8xbf16>
    %c2_61 = arith.constant 2 : index
    %c0_62 = arith.constant 0 : index
    %c0_63 = arith.constant 0 : index
    %c0_64 = arith.constant 0 : index
    %62 = vector.load %arg4[%c2_61, %c0_62, %c0_63, %c0_64] : memref<3x3x8x8xbf16, #tpu.memory_space<vmem>>, vector<1x1x8x8xbf16>
    %63 = vector.shape_cast %62 : vector<1x1x8x8xbf16> to vector<8x8xbf16>
    %cst_65 = arith.constant dense<0.000000e+00> : vector<64x8xf32>
    %64 = tpu.matmul %61, %63, %cst_65 {dimension_numbers = #tpu.dot_dimension_numbers<[1], [0], [0], [1], [0, 0, 1, 1], [], []>} : vector<64x8xbf16>, vector<8x8xbf16>, vector<64x8xf32> -> vector<64x8xf32>
    %65 = arith.addf %58, %64 : vector<64x8xf32>
    %c2_66 = arith.constant 2 : index
    %c1_67 = arith.constant 1 : index
    %c0_68 = arith.constant 0 : index
    %66 = vector.load %arg8[%c2_66, %c1_67, %c0_68] : memref<10x10x8xf32, #tpu.memory_space<vmem>>, vector<8x8x8xf32>
    %67 = vector.shape_cast %66 : vector<8x8x8xf32> to vector<64x8xf32>
    %68 = arith.truncf %67 : vector<64x8xf32> to vector<64x8xbf16>
    %c2_69 = arith.constant 2 : index
    %c1_70 = arith.constant 1 : index
    %c0_71 = arith.constant 0 : index
    %c0_72 = arith.constant 0 : index
    %69 = vector.load %arg4[%c2_69, %c1_70, %c0_71, %c0_72] : memref<3x3x8x8xbf16, #tpu.memory_space<vmem>>, vector<1x1x8x8xbf16>
    %70 = vector.shape_cast %69 : vector<1x1x8x8xbf16> to vector<8x8xbf16>
    %cst_73 = arith.constant dense<0.000000e+00> : vector<64x8xf32>
    %71 = tpu.matmul %68, %70, %cst_73 {dimension_numbers = #tpu.dot_dimension_numbers<[1], [0], [0], [1], [0, 0, 1, 1], [], []>} : vector<64x8xbf16>, vector<8x8xbf16>, vector<64x8xf32> -> vector<64x8xf32>
    %72 = arith.addf %65, %71 : vector<64x8xf32>
    %c2_74 = arith.constant 2 : index
    %c2_75 = arith.constant 2 : index
    %c0_76 = arith.constant 0 : index
    %73 = vector.load %arg8[%c2_74, %c2_75, %c0_76] : memref<10x10x8xf32, #tpu.memory_space<vmem>>, vector<8x8x8xf32>
    %74 = vector.shape_cast %73 : vector<8x8x8xf32> to vector<64x8xf32>
    %75 = arith.truncf %74 : vector<64x8xf32> to vector<64x8xbf16>
    %c2_77 = arith.constant 2 : index
    %c2_78 = arith.constant 2 : index
    %c0_79 = arith.constant 0 : index
    %c0_80 = arith.constant 0 : index
    %76 = vector.load %arg4[%c2_77, %c2_78, %c0_79, %c0_80] : memref<3x3x8x8xbf16, #tpu.memory_space<vmem>>, vector<1x1x8x8xbf16>
    %77 = vector.shape_cast %76 : vector<1x1x8x8xbf16> to vector<8x8xbf16>
    %cst_81 = arith.constant dense<0.000000e+00> : vector<64x8xf32>
    %78 = tpu.matmul %75, %77, %cst_81 {dimension_numbers = #tpu.dot_dimension_numbers<[1], [0], [0], [1], [0, 0, 1, 1], [], []>} : vector<64x8xbf16>, vector<8x8xbf16>, vector<64x8xf32> -> vector<64x8xf32>
    %79 = arith.addf %72, %78 : vector<64x8xf32>
    %c0_82 = arith.constant 0 : index
    %c0_83 = arith.constant 0 : index
    %80 = vector.load %arg5[%c0_82, %c0_83] : memref<1x8xf32, #tpu.memory_space<vmem>>, vector<1x8xf32>
    %81 = vector.broadcast %80 : vector<1x8xf32> to vector<64x8xf32>
    %82 = arith.addf %79, %81 : vector<64x8xf32>
    %83 = vector.shape_cast %82 : vector<64x8xf32> to vector<1x8x8x8xf32>
    %c0_84 = arith.constant 0 : index
    %c0_85 = arith.constant 0 : index
    %c0_86 = arith.constant 0 : index
    %c0_87 = arith.constant 0 : index
    %84 = vector.load %arg6[%c0_84, %c0_85, %c0_86, %c0_87] : memref<1x8x8x8xf32, #tpu.memory_space<vmem>>, vector<1x8x8x8xf32>
    tpu.vector_store %arg6[%c0_84, %c0_85, %c0_86, %c0_87], %83 {strides = array<i32>} : memref<1x8x8x8xf32, #tpu.memory_space<vmem>>, vector<1x8x8x8xf32>,
    %cst_88 = arith.constant dense<0.000000e+00> : vector<8xf32>
    %85 = vector.multi_reduction <add>, %82, %cst_88 [0] : vector<64x8xf32> to vector<8xf32>
    %86 = vector.shape_cast %85 : vector<8xf32> to vector<1x8xf32>
    %cst_89 = arith.constant 1.562500e-02 : f32
    %87 = vector.broadcast %cst_89 : f32 to vector<1x8xf32>
    %88 = arith.mulf %86, %87 : vector<1x8xf32>
    %89 = vector.broadcast %88 : vector<1x8xf32> to vector<64x8xf32>
    %90 = arith.subf %82, %89 : vector<64x8xf32>
    %91 = arith.mulf %90, %90 : vector<64x8xf32>
    %cst_90 = arith.constant dense<0.000000e+00> : vector<8xf32>
    %92 = vector.multi_reduction <add>, %91, %cst_90 [0] : vector<64x8xf32> to vector<8xf32>
    %93 = vector.shape_cast %92 : vector<8xf32> to vector<1x8xf32>
    %c0_i32_91 = arith.constant 0 : i32
    %94 = arith.cmpi eq, %arg0, %c0_i32_91 : i32
    %95 = arith.extui %94 : i1 to i32
    %c0_i32_92 = arith.constant 0 : i32
    %96 = arith.cmpi ne, %95, %c0_i32_92 : i32
    scf.if %96 {
      %c0_95 = arith.constant 0 : index
      %c0_96 = arith.constant 0 : index
      %100 = vector.load %arg7[%c0_95, %c0_96] : memref<2x8xf32, #tpu.memory_space<vmem>>, vector<1x8xf32>
      tpu.vector_store %arg7[%c0_95, %c0_96], %88 {strides = array<i32>} : memref<2x8xf32, #tpu.memory_space<vmem>>, vector<1x8xf32>,
      %c1_97 = arith.constant 1 : index
      %c0_98 = arith.constant 0 : index
      %101 = vector.load %arg7[%c1_97, %c0_98] : memref<2x8xf32, #tpu.memory_space<vmem>>, vector<1x8xf32>
      tpu.vector_store %arg7[%c1_97, %c0_98], %93 {strides = array<i32>} : memref<2x8xf32, #tpu.memory_space<vmem>>, vector<1x8xf32>,
    } else {
    }
    %c0_i32_93 = arith.constant 0 : i32
    %97 = arith.cmpi sgt, %arg0, %c0_i32_93 : i32
    %98 = arith.extui %97 : i1 to i32
    %c0_i32_94 = arith.constant 0 : i32
    %99 = arith.cmpi ne, %98, %c0_i32_94 : i32
    scf.if %99 {
      %100 = arith.sitofp %arg0 : i32 to f32
      %cst_95 = arith.constant 6.400000e+01 : f32
      %101 = arith.mulf %100, %cst_95 : f32
      %c0_96 = arith.constant 0 : index
      %c0_97 = arith.constant 0 : index
      %102 = vector.load %arg7[%c0_96, %c0_97] : memref<2x8xf32, #tpu.memory_space<vmem>>, vector<1x8xf32>
      %c1_98 = arith.constant 1 : index
      %c0_99 = arith.constant 0 : index
      %103 = vector.load %arg7[%c1_98, %c0_99] : memref<2x8xf32, #tpu.memory_space<vmem>>, vector<1x8xf32>
      %104 = arith.subf %88, %102 : vector<1x8xf32>
      %cst_100 = arith.constant 6.400000e+01 : f32
      %105 = arith.addf %101, %cst_100 : f32
      %cst_101 = arith.constant 6.400000e+01 : f32
      %106 = arith.divf %cst_101, %105 : f32
      %107 = vector.broadcast %106 : f32 to vector<1x8xf32>
      %108 = arith.mulf %104, %107 : vector<1x8xf32>
      %109 = arith.addf %102, %108 : vector<1x8xf32>
      %c0_102 = arith.constant 0 : index
      %c0_103 = arith.constant 0 : index
      %110 = vector.load %arg7[%c0_102, %c0_103] : memref<2x8xf32, #tpu.memory_space<vmem>>, vector<1x8xf32>
      tpu.vector_store %arg7[%c0_102, %c0_103], %109 {strides = array<i32>} : memref<2x8xf32, #tpu.memory_space<vmem>>, vector<1x8xf32>,
      %111 = arith.addf %103, %93 : vector<1x8xf32>
      %112 = arith.mulf %104, %104 : vector<1x8xf32>
      %113 = arith.mulf %101, %106 : f32
      %114 = vector.broadcast %113 : f32 to vector<1x8xf32>
      %115 = arith.mulf %112, %114 : vector<1x8xf32>
      %116 = arith.addf %111, %115 : vector<1x8xf32>
      %c1_104 = arith.constant 1 : index
      %c0_105 = arith.constant 0 : index
      %117 = vector.load %arg7[%c1_104, %c0_105] : memref<2x8xf32, #tpu.memory_space<vmem>>, vector<1x8xf32>
      tpu.vector_store %arg7[%c1_104, %c0_105], %116 {strides = array<i32>} : memref<2x8xf32, #tpu.memory_space<vmem>>, vector<1x8xf32>,
    } else {
    }
    return
  }
  func.func @transform_0(%arg0: i32) -> (i32, i32, i32, i32) {
    %c0_i32 = arith.constant 0 : i32
    %c0_i32_0 = arith.constant 0 : i32
    %c0_i32_1 = arith.constant 0 : i32
    %c0_i32_2 = arith.constant 0 : i32
    return %arg0, %c0_i32, %c0_i32_0, %c0_i32_1 : i32, i32, i32, i32
  }
  func.func @transform_1(%arg0: i32) -> (i32, i32) {
    %c0_i32 = arith.constant 0 : i32
    %c0_i32_0 = arith.constant 0 : i32
    %c0_i32_1 = arith.constant 0 : i32
    return %c0_i32, %c0_i32_0 : i32, i32
  }
  func.func @transform_2(%arg0: i32) -> (i32, i32) {
    %c0_i32 = arith.constant 0 : i32
    %c0_i32_0 = arith.constant 0 : i32
    %c0_i32_1 = arith.constant 0 : i32
    return %c0_i32, %c0_i32_0 : i32, i32
  }
  func.func @transform_3(%arg0: i32) -> (i32, i32, i32, i32) {
    %c0_i32 = arith.constant 0 : i32
    %c0_i32_0 = arith.constant 0 : i32
    %c0_i32_1 = arith.constant 0 : i32
    %c0_i32_2 = arith.constant 0 : i32
    %c0_i32_3 = arith.constant 0 : i32
    return %c0_i32, %c0_i32_0, %c0_i32_1, %c0_i32_2 : i32, i32, i32, i32
  }
  func.func @transform_4(%arg0: i32) -> (i32, i32) {
    %c0_i32 = arith.constant 0 : i32
    %c0_i32_0 = arith.constant 0 : i32
    %c0_i32_1 = arith.constant 0 : i32
    return %c0_i32, %c0_i32_0 : i32, i32
  }
  func.func @transform_5(%arg0: i32) -> (i32, i32, i32, i32) {
    %c0_i32 = arith.constant 0 : i32
    %c0_i32_0 = arith.constant 0 : i32
    %c0_i32_1 = arith.constant 0 : i32
    %c0_i32_2 = arith.constant 0 : i32
    return %arg0, %c0_i32, %c0_i32_0, %c0_i32_1 : i32, i32, i32, i32
  }
  func.func @transform_6(%arg0: i32) -> (i32, i32) {
    %c0_i32 = arith.constant 0 : i32
    %c0_i32_0 = arith.constant 0 : i32
    %c0_i32_1 = arith.constant 0 : i32
    return %c0_i32, %c0_i32_0 : i32, i32
  }
}

module attributes {stable_mosaic.version = 11 : i64} {
  func.func @_bn_relu_kernel(%arg0: i32, %arg1: memref<1x8x64xf32, #tpu.memory_space<vmem>>, %arg2: memref<1x64xf32, #tpu.memory_space<vmem>>, %arg3: memref<1x64xf32, #tpu.memory_space<vmem>>, %arg4: memref<1x8x64xf32, #tpu.memory_space<vmem>>) attributes {dimension_semantics = [#tpu.dimension_semantics<parallel>], iteration_bounds = array<i64: 2>, scalar_prefetch = 0 : i64, scratch_operands = 0 : i64, tpu.core_type = #tpu.core_type<tc>, window_params = [{transform_indices = @transform_0, window_bounds = array<i64: 1, 8, 64>}, {pipeline_mode = #tpu.pipeline_mode<synchronous>, transform_indices = @transform_1, window_bounds = array<i64: 1, 64>}, {pipeline_mode = #tpu.pipeline_mode<synchronous>, transform_indices = @transform_2, window_bounds = array<i64: 1, 64>}, {transform_indices = @transform_3, window_bounds = array<i64: 1, 8, 64>}]} {
    %c0 = arith.constant 0 : index
    %c0_0 = arith.constant 0 : index
    %c0_1 = arith.constant 0 : index
    %0 = vector.load %arg1[%c0, %c0_0, %c0_1] : memref<1x8x64xf32, #tpu.memory_space<vmem>>, vector<1x8x64xf32>
    %c0_2 = arith.constant 0 : index
    %c0_3 = arith.constant 0 : index
    %1 = vector.load %arg2[%c0_2, %c0_3] : memref<1x64xf32, #tpu.memory_space<vmem>>, vector<1x64xf32>
    %2 = vector.shape_cast %1 : vector<1x64xf32> to vector<1x1x64xf32>
    %3 = vector.broadcast %2 : vector<1x1x64xf32> to vector<1x8x64xf32>
    %4 = arith.mulf %0, %3 : vector<1x8x64xf32>
    %c0_4 = arith.constant 0 : index
    %c0_5 = arith.constant 0 : index
    %5 = vector.load %arg3[%c0_4, %c0_5] : memref<1x64xf32, #tpu.memory_space<vmem>>, vector<1x64xf32>
    %6 = vector.shape_cast %5 : vector<1x64xf32> to vector<1x1x64xf32>
    %7 = vector.broadcast %6 : vector<1x1x64xf32> to vector<1x8x64xf32>
    %8 = arith.addf %4, %7 : vector<1x8x64xf32>
    %cst = arith.constant 0.000000e+00 : f32
    %9 = vector.broadcast %cst : f32 to vector<1x8x64xf32>
    %10 = arith.maximumf %8, %9 : vector<1x8x64xf32>
    %c0_6 = arith.constant 0 : index
    %c0_7 = arith.constant 0 : index
    %c0_8 = arith.constant 0 : index
    %11 = vector.load %arg4[%c0_6, %c0_7, %c0_8] : memref<1x8x64xf32, #tpu.memory_space<vmem>>, vector<1x8x64xf32>
    tpu.vector_store %arg4[%c0_6, %c0_7, %c0_8], %10 {strides = array<i32>} : memref<1x8x64xf32, #tpu.memory_space<vmem>>, vector<1x8x64xf32>,
    return
  }
  func.func @transform_0(%arg0: i32) -> (i32, i32, i32) {
    %c0_i32 = arith.constant 0 : i32
    %c0_i32_0 = arith.constant 0 : i32
    %c0_i32_1 = arith.constant 0 : i32
    return %arg0, %c0_i32, %c0_i32_0 : i32, i32, i32
  }
  func.func @transform_1(%arg0: i32) -> (i32, i32) {
    %c0_i32 = arith.constant 0 : i32
    %c0_i32_0 = arith.constant 0 : i32
    %c0_i32_1 = arith.constant 0 : i32
    return %c0_i32, %c0_i32_0 : i32, i32
  }
  func.func @transform_2(%arg0: i32) -> (i32, i32) {
    %c0_i32 = arith.constant 0 : i32
    %c0_i32_0 = arith.constant 0 : i32
    %c0_i32_1 = arith.constant 0 : i32
    return %c0_i32, %c0_i32_0 : i32, i32
  }
  func.func @transform_3(%arg0: i32) -> (i32, i32, i32) {
    %c0_i32 = arith.constant 0 : i32
    %c0_i32_0 = arith.constant 0 : i32
    %c0_i32_1 = arith.constant 0 : i32
    return %arg0, %c0_i32, %c0_i32_0 : i32, i32, i32
  }
}

</mosaic_0001>

<llo_original>
// kernel: tile.13
$region0: #{tile.13}
  #allocation0 [shape = 's32[1]{0}', space=sflag, size = 0x4, scoped, tag = 'scoped memory for tile.13']
  %s0 = inlined_call_operand.vmem [shape: f32[8], index: 0, kind: input, shape index: {}]
  %s1 = inlined_call_operand.vmem [shape: f32[8,8], index: 1, kind: output, shape index: {}]
  // Predicated region
  $region2: #{tile.13} parent=0 // pred_check
    _
  $region3: #{tile.13} parent=0 // pred_check_branch
    %3 = sbr.rel (0) target = $region5
  $region4: #{tile.13} parent=0 // pred_region
    _
  $region5: #{tile.13} parent=0 // pred_fallthru
    _
  %v4 = vld [vmem:[%s0] ss:$0 sm:$0xff]
  %5 = vst [vmem:[%s1] sm:$0xff] %v4

// kernel: tile.14
$region0: #{tile.14}
  %s0 = inlined_call_operand.vmem [shape: f32[8,8], index: 0, kind: input, shape index: {}]
  %s1 = inlined_call_operand.vmem [shape: f32[1,64], index: 1, kind: output, shape index: {}]
  $region1: #{tile.14} parent=0
    #allocation0 [shape = 'u8[4096]{0}', space=vmem, size = 0x1000, scoped, tag = 'scoped mem for output reshape']
    %v2 = vld [vmem:[%s0] sm:$0x1]
    %vm3 = vcmask 64512
    %4 = vst.msk [vmem:[#allocation0] sm:$0x1] %vm3, %v2
    %s5 = scalar_lea.vmem %s0, 7
    %v6 = vld [vmem:[%s5] sm:$0x1]
    %7 = vrot.lane.b32.xlu0 %v6, 56
    %v8 = vpop.permute.xlu0 %7
    %vm9 = vcmask 523712
    %10 = vst.msk [vmem:[#allocation0] sm:$0x1] %vm9, %v8
    %s11 = scalar_lea.vmem %s0, 6
    %v12 = vld [vmem:[%s11] sm:$0x1]
    %13 = vrot.lane.b32.xlu0 %v12, 48
    %v14 = vpop.permute.xlu0 %13
    %vm15 = vcmask 458112
    %16 = vst.msk [vmem:[#allocation0] sm:$0x1] %vm15, %v14
    %s17 = scalar_lea.vmem %s0, 5
    %v18 = vld [vmem:[%s17] sm:$0x1]
    %19 = vrot.lane.b32.xlu0 %v18, 40
    %v20 = vpop.permute.xlu0 %19
    %vm21 = vcmask 392512
    %22 = vst.msk [vmem:[#allocation0] sm:$0x1] %vm21, %v20
    %s23 = scalar_lea.vmem %s0, 4
    %v24 = vld [vmem:[%s23] sm:$0x1]
    %25 = vrot.lane.b32.xlu0 %v24, 32
    %v26 = vpop.permute.xlu0 %25
    %vm27 = vcmask 326912
    %28 = vst.msk [vmem:[#allocation0] sm:$0x1] %vm27, %v26
    %s29 = scalar_lea.vmem %s0, 3
    %v30 = vld [vmem:[%s29] sm:$0x1]
    %31 = vrot.lane.b32.xlu0 %v30, 24
    %v32 = vpop.permute.xlu0 %31
    %vm33 = vcmask 261312
    %34 = vst.msk [vmem:[#allocation0] sm:$0x1] %vm33, %v32
    %s35 = scalar_lea.vmem %s0, 2
    %v36 = vld [vmem:[%s35] sm:$0x1]
    %37 = vrot.lane.b32.xlu0 %v36, 16
    %v38 = vpop.permute.xlu0 %37
    %vm39 = vcmask 195712
    %40 = vst.msk [vmem:[#allocation0] sm:$0x1] %vm39, %v38
    %s41 = scalar_lea.vmem %s0, 1
    %v42 = vld [vmem:[%s41] sm:$0x1]
    %43 = vrot.lane.b32.xlu0 %v42, 8
    %v44 = vpop.permute.xlu0 %43
    %vm45 = vcmask 130112
    %46 = vst.msk [vmem:[#allocation0] sm:$0x1] %vm45, %v44
    %s48 = sshll.u32 1, 1
    %s49 = ssub.s32 %s48, 1
    %v51 = vld [vmem:[#allocation0] sm:%s49]
    %s52 = sshll.u32 1, 1
    %s53 = ssub.s32 %s52, 1
    %54 = vst [vmem:[%s1] sm:%s53] %v51

// kernel: down_dc_forward.5
$region0: #{down_dc_forward.5}
  #allocation0 [shape = 'u32[]', space=smem, size = 0x4, offset = 0x4, fixed_abs, tag = 'smem constant byte address 0x4 - core index']
  #allocation1 [shape = 'u32[144,128]{1,0:T(1,128)}', space=vmem, size = 0x12000, scoped, tag = 'internal scratch']
  %s0 = inlined_call_operand.vmem [shape: f32[2,8,64], index: 0, kind: input, shape index: {}]
  %s1 = inlined_call_operand.vmem [shape: f32[1,64], index: 1, kind: input, shape index: {}]
  %s2 = inlined_call_operand.vmem [shape: f32[1,64], index: 2, kind: input, shape index: {}]
  %s3 = inlined_call_operand.vmem [shape: f32[2,8,64], index: 3, kind: output, shape index: {}]
  %s4 = sld [smem:[#allocation0]]
  $region45: #{down_dc_forward.5} parent=0
    _
  %s6 = ssub.s32 1, %s4
  %s7 = scalar_select 0, %s6, %s4
  loop: start=0, step=1, limit=4
  $region2: #{down_dc_forward.5} parent=0 // loop_pre_header
    _
  $region3: #{down_dc_forward.5} parent=0 // loop_header
    %s9 = sphi 0, %s13
    %p10 = scmp.ge.s32.totalorder %s9, 4
    %s19 = sphi 0, %s21
    %s22 = sphi 0, %s19
    %s23 = sphi 0, %s22
    %s39 = sphi 0, %s23
    %s43 = sphi 0, %s43
    %s45 = sphi 0, %s43
    %s46 = sphi 0, %s45
    %s60 = sphi 0, %s46
    %s64 = sphi 0, %s64
    %s66 = sphi 0, %s64
    %s67 = sphi 0, %s66
    %s81 = sphi 0, %s67
    %s87 = sphi 0, %s89
    %s90 = sphi 0, %s87
    %s91 = sphi 0, %s90
    %s107 = sphi 0, %s91
  $region4: #{down_dc_forward.5} parent=0 // loop_header_branch
    %12 = sbr.rel (%p10) target = $region8
  $region5: #{down_dc_forward.5} parent=0 // loop_body
    %s14 = ssub.s32 %s9, 1
    %s15 = ssub.s32 %s9, 2
    %s16 = sadd.s32 %s9, 1
    %s17 = ssub.s32 %s9, %s16
    %p18 = scmp.eq.s32.totalorder %s17, 0
    %s20 = sadd.s32 %s19, 1
    %s21 = scalar_select %p18, %s19, %s20
    %p24 = pneg %p18
    %p25 = scmp.eq.s32.totalorder %s9, 1
    %p26 = por %p24, %p25
    %p27 = scmp.ne.s32.totalorder %s19, %s22
    %p28 = scmp.eq.s32.totalorder %s9, 0
    %p29 = por %p27, %p28
    %p30 = scmp.ne.s32.totalorder %s19, %s22
    %p31 = scmp.eq.s32.totalorder %s14, 1
    %p32 = por %p30, %p31
    %p33 = scmp.ne.s32.totalorder %s22, %s23
    %p34 = scmp.eq.s32.totalorder %s14, 0
    %p35 = por %p33, %p34
    %p36 = scmp.ne.s32.totalorder %s22, %s23
    %p37 = scmp.eq.s32.totalorder %s15, 1
    %p38 = por %p36, %p37
    %p40 = scmp.ne.s32.totalorder %s23, %s39
    %p41 = scmp.eq.s32.totalorder %s15, 0
    %p42 = por %p40, %p41
    %s44 = sadd.s32 %s43, 1
    %p47 = scmp.eq.s32.totalorder %s9, 1
    %p48 = scmp.ne.s32.totalorder %s43, %s45
    %p49 = scmp.eq.s32.totalorder %s9, 0
    %p50 = por %p48, %p49
    %p51 = scmp.ne.s32.totalorder %s43, %s45
    %p52 = scmp.eq.s32.totalorder %s14, 1
    %p53 = por %p51, %p52
    %p54 = scmp.ne.s32.totalorder %s45, %s46
    %p55 = scmp.eq.s32.totalorder %s14, 0
    %p56 = por %p54, %p55
    %p57 = scmp.ne.s32.totalorder %s45, %s46
    %p58 = scmp.eq.s32.totalorder %s15, 1
    %p59 = por %p57, %p58
    %p61 = scmp.ne.s32.totalorder %s46, %s60
    %p62 = scmp.eq.s32.totalorder %s15, 0
    %p63 = por %p61, %p62
    %s65 = sadd.s32 %s64, 1
    %p68 = scmp.eq.s32.totalorder %s9, 1
    %p69 = scmp.ne.s32.totalorder %s64, %s66
    %p70 = scmp.eq.s32.totalorder %s9, 0
    %p71 = por %p69, %p70
    %p72 = scmp.ne.s32.totalorder %s64, %s66
    %p73 = scmp.eq.s32.totalorder %s14, 1
    %p74 = por %p72, %p73
    %p75 = scmp.ne.s32.totalorder %s66, %s67
    %p76 = scmp.eq.s32.totalorder %s14, 0
    %p77 = por %p75, %p76
    %p78 = scmp.ne.s32.totalorder %s66, %s67
    %p79 = scmp.eq.s32.totalorder %s15, 1
    %p80 = por %p78, %p79
    %p82 = scmp.ne.s32.totalorder %s67, %s81
    %p83 = scmp.eq.s32.totalorder %s15, 0
    %p84 = por %p82, %p83
    %s85 = ssub.s32 %s9, %s16
    %p86 = scmp.eq.s32.totalorder %s85, 0
    %s88 = sadd.s32 %s87, 1
    %s89 = scalar_select %p86, %s87, %s88
    %p92 = pneg %p86
    %p93 = scmp.eq.s32.totalorder %s9, 1
    %p94 = por %p92, %p93
    %p95 = scmp.ne.s32.totalorder %s87, %s90
    %p96 = scmp.eq.s32.totalorder %s9, 0
    %p97 = por %p95, %p96
    %p98 = scmp.ne.s32.totalorder %s87, %s90
    %p99 = scmp.eq.s32.totalorder %s14, 1
    %p100 = por %p98, %p99
    %p101 = scmp.ne.s32.totalorder %s90, %s91
    %p102 = scmp.eq.s32.totalorder %s14, 0
    %p103 = por %p101, %p102
    %p104 = scmp.ne.s32.totalorder %s90, %s91
    %p105 = scmp.eq.s32.totalorder %s15, 1
    %p106 = por %p104, %p105
    %p108 = scmp.ne.s32.totalorder %s91, %s107
    %p109 = scmp.eq.s32.totalorder %s15, 0
    %p110 = por %p108, %p109
    %p111 = scmp.le.s32.totalorder 1, %s9
    %p112 = scmp.lt.s32.totalorder %s9, 3
    %p113 = pnand %p111, %p112
    %p114 = pneg %p113
    // Predicated region
    $region9: #{down_dc_forward.5} parent=5 // pred_check
      _
    $region10: #{down_dc_forward.5} parent=5 // pred_check_branch
      %116 = sbr.rel (%p113) target = $region12
    $region11: #{down_dc_forward.5} parent=5 // pred_region
      %s117 = ssub.s32 %s9, 1
      // Predicated region
      $region13: #{down_dc_forward.5} parent=11 // pred_check
        %p118 = pneg %p56
      $region14: #{down_dc_forward.5} parent=11 // pred_check_branch
        %120 = sbr.rel (%p118) target = $region16
      $region15: #{down_dc_forward.5} parent=11 // pred_region
        _
      $region16: #{down_dc_forward.5} parent=11 // pred_fallthru
        _
      // Predicated region
      $region17: #{down_dc_forward.5} parent=11 // pred_check
        %p121 = pneg %p77
      $region18: #{down_dc_forward.5} parent=11 // pred_check_branch
        %123 = sbr.rel (%p121) target = $region20
      $region19: #{down_dc_forward.5} parent=11 // pred_region
        _
      $region20: #{down_dc_forward.5} parent=11 // pred_fallthru
        _
    $region12: #{down_dc_forward.5} parent=5 // pred_fallthru
      _
    %p124 = scmp.lt.s32.totalorder %s9, 2
    // Predicated region
    $region21: #{down_dc_forward.5} parent=5 // pred_check
      %p125 = pneg %p124
    $region22: #{down_dc_forward.5} parent=5 // pred_check_branch
      %127 = sbr.rel (%p125) target = $region24
    $region23: #{down_dc_forward.5} parent=5 // pred_region
      // Predicated region
      $region25: #{down_dc_forward.5} parent=23 // pred_check
        %p128 = pneg %p29
      $region26: #{down_dc_forward.5} parent=23 // pred_check_branch
        %130 = sbr.rel (%p128) target = $region28
      $region27: #{down_dc_forward.5} parent=23 // pred_region
        %p131 = scmp.lt.s32.totalorder %s9, 1
        %s132 = scalar_select %p131, %s9, 1
        %s133 = smul.addr %s132, 8
        %s134 = scalar_lea.vmem %s0, %s133
      $region28: #{down_dc_forward.5} parent=23 // pred_fallthru
        _
    $region24: #{down_dc_forward.5} parent=5 // pred_fallthru
      _
    %p135 = scmp.le.s32.totalorder 1, %s9
    %p136 = scmp.lt.s32.totalorder %s9, 3
    %p137 = pnand %p135, %p136
    %p138 = pneg %p137
    // Predicated region
    $region29: #{down_dc_forward.5} parent=5 // pred_check
      _
    $region30: #{down_dc_forward.5} parent=5 // pred_check_branch
      %140 = sbr.rel (%p137) target = $region32
    $region31: #{down_dc_forward.5} parent=5 // pred_region
      %s141 = ssub.s32 %s9, 1
      %p142 = scmp.lt.s32.totalorder %s14, 1
      %s143 = scalar_select %p142, %s14, 1
      %s144 = smul.addr %s143, 8
      %s145 = scalar_lea.vmem %s0, %s144
      %p146 = pneg %p35
      %p147 = pneg %p32
      %p148 = pneg %p56
      %p149 = pneg %p53
      %p150 = pneg %p77
      %p151 = pneg %p74
      %p152 = pneg %p103
      %p153 = pneg %p100
      %p154 = scmp.lt.s32.totalorder %s14, 1
      %s155 = scalar_select %p154, %s14, 1
      %s156 = smul.addr %s155, 8
      %s157 = scalar_lea.vmem %s3, %s156
      %p158 = scmp.lt.s32.totalorder %s14, 1
      %s159 = scalar_select %p158, %s14, 1
      %s160 = smul.addr %s159, 8
      %s161 = scalar_lea.vmem %s0, %s160
      %p162 = scmp.lt.s32.totalorder %s14, 1
      %s163 = scalar_select %p162, %s14, 1
      %s164 = smul.addr %s163, 8
      %s165 = scalar_lea.vmem %s3, %s164
      %v166 = vld [vmem:[%s161] sm:$0xff]
      %v167 = vld [vmem:[%s1] sm:$0x1]
      %v169 = vlaneseq
      %v170 = vshrl.u32 %v169, 7
      %v171 = vsub.s32 0, %v170
      %v172 = vrot.slane %v167, %v171
      %v174 = vmul.f32 %v166, %v172
      %v175 = vld [vmem:[%s2] sm:$0x1]
      %v177 = vlaneseq
      %v178 = vshrl.u32 %v177, 7
      %v179 = vsub.s32 0, %v178
      %v180 = vrot.slane %v175, %v179
      %v182 = vadd.f32 %v174, %v180
      %v183 = vmax.f32 %v182, 0.0
      %vm184 = vcmask 523264
      %185 = vst.msk [vmem:[%s165] sm:$0xff] %vm184, %v183
      %p186 = scmp.lt.s32.totalorder %s14, 1
      %s187 = scalar_select %p186, %s14, 1
      %s188 = smul.addr %s187, 8
      %s189 = scalar_lea.vmem %s3, %s188
      // Predicated region
      $region33: #{down_dc_forward.5} parent=31 // pred_check
        %p190 = pneg %p100
      $region34: #{down_dc_forward.5} parent=31 // pred_check_branch
        %192 = sbr.rel (%p190) target = $region36
      $region35: #{down_dc_forward.5} parent=31 // pred_region
        _
      $region36: #{down_dc_forward.5} parent=31 // pred_fallthru
        _
    $region32: #{down_dc_forward.5} parent=5 // pred_fallthru
      _
    %p193 = scmp.le.s32.totalorder 2, %s9
    // Predicated region
    $region37: #{down_dc_forward.5} parent=5 // pred_check
      %p194 = pneg %p193
    $region38: #{down_dc_forward.5} parent=5 // pred_check_branch
      %196 = sbr.rel (%p194) target = $region40
    $region39: #{down_dc_forward.5} parent=5 // pred_region
      %s197 = ssub.s32 %s9, 2
      // Predicated region
      $region41: #{down_dc_forward.5} parent=39 // pred_check
        %p198 = pneg %p106
      $region42: #{down_dc_forward.5} parent=39 // pred_check_branch
        %200 = sbr.rel (%p198) target = $region44
      $region43: #{down_dc_forward.5} parent=39 // pred_region
        %p201 = scmp.lt.s32.totalorder %s15, 1
        %s202 = scalar_select %p201, %s15, 1
        %s203 = smul.addr %s202, 8
        %s204 = scalar_lea.vmem %s3, %s203
      $region44: #{down_dc_forward.5} parent=39 // pred_fallthru
        _
    $region40: #{down_dc_forward.5} parent=5 // pred_fallthru
      _
  $region6: #{down_dc_forward.5} parent=0 // loop_footer
    %s13 = sadd.s32 1, %s9
  $region7: #{down_dc_forward.5} parent=0 // loop_footer_branch
    %8 = sbr.rel target = $region3
  $region8: #{down_dc_forward.5} parent=0 // loop_exit
    _

// kernel: down_dc_forward.4
$region0: #{down_dc_forward.4}
  #allocation0 [shape = 'u32[]', space=smem, size = 0x4, offset = 0x4, fixed_abs, tag = 'smem constant byte address 0x4 - core index']
  #allocation1 [shape = 'u32[144,128]{1,0:T(1,128)}', space=vmem, size = 0x12000, scoped, tag = 'internal scratch']
  #allocation2 [shape = 'f32[10,10,8]{2,1,0:T(8,128)}', space=vmem, size = 0x14000, scoped, tag = 'scratch operand']
  %s0 = inlined_call_operand.vmem [shape: f32[2,8,8,8], index: 0, kind: input, shape index: {}]
  %s1 = inlined_call_operand.vmem [shape: f32[1,8], index: 1, kind: input, shape index: {}]
  %s2 = inlined_call_operand.vmem [shape: f32[1,8], index: 2, kind: input, shape index: {}]
  %s3 = inlined_call_operand.vmem [shape: bf16[3,3,8,8], index: 3, kind: input, shape index: {}]
  %s4 = inlined_call_operand.vmem [shape: f32[1,8], index: 4, kind: input, shape index: {}]
  %s5 = inlined_call_operand.vmem [shape: f32[2,8,8,8], index: 5, kind: output, shape index: {0}]
  %s6 = inlined_call_operand.vmem [shape: f32[2,8], index: 6, kind: output, shape index: {1}]
  %7 = xla_tuple %s5, %s6
  %s8 = sld [smem:[#allocation0]]
  $region73: #{down_dc_forward.4} parent=0
    _
  %s10 = ssub.s32 1, %s8
  %s11 = scalar_select 0, %s10, %s8
  loop: start=0, step=1, limit=4
  $region2: #{down_dc_forward.4} parent=0 // loop_pre_header
    _
  $region3: #{down_dc_forward.4} parent=0 // loop_header
    %s13 = sphi 0, %s17
    %p14 = scmp.ge.s32.totalorder %s13, 4
    %s23 = sphi 0, %s25
    %s26 = sphi 0, %s23
    %s27 = sphi 0, %s26
    %s43 = sphi 0, %s27
    %s47 = sphi 0, %s47
    %s49 = sphi 0, %s47
    %s50 = sphi 0, %s49
    %s64 = sphi 0, %s50
    %s68 = sphi 0, %s68
    %s70 = sphi 0, %s68
    %s71 = sphi 0, %s70
    %s85 = sphi 0, %s71
    %s89 = sphi 0, %s89
    %s91 = sphi 0, %s89
    %s92 = sphi 0, %s91
    %s106 = sphi 0, %s92
    %s110 = sphi 0, %s110
    %s112 = sphi 0, %s110
    %s113 = sphi 0, %s112
    %s127 = sphi 0, %s113
    %s133 = sphi 0, %s135
    %s136 = sphi 0, %s133
    %s137 = sphi 0, %s136
    %s153 = sphi 0, %s137
    %s157 = sphi 0, %s157
    %s159 = sphi 0, %s157
    %s160 = sphi 0, %s159
    %s174 = sphi 0, %s160
  $region4: #{down_dc_forward.4} parent=0 // loop_header_branch
    %16 = sbr.rel (%p14) target = $region8
  $region5: #{down_dc_forward.4} parent=0 // loop_body
    %s18 = ssub.s32 %s13, 1
    %s19 = ssub.s32 %s13, 2
    %s20 = sadd.s32 %s13, 1
    %s21 = ssub.s32 %s13, %s20
    %p22 = scmp.eq.s32.totalorder %s21, 0
    %s24 = sadd.s32 %s23, 1
    %s25 = scalar_select %p22, %s23, %s24
    %p28 = pneg %p22
    %p29 = scmp.eq.s32.totalorder %s13, 1
    %p30 = por %p28, %p29
    %p31 = scmp.ne.s32.totalorder %s23, %s26
    %p32 = scmp.eq.s32.totalorder %s13, 0
    %p33 = por %p31, %p32
    %p34 = scmp.ne.s32.totalorder %s23, %s26
    %p35 = scmp.eq.s32.totalorder %s18, 1
    %p36 = por %p34, %p35
    %p37 = scmp.ne.s32.totalorder %s26, %s27
    %p38 = scmp.eq.s32.totalorder %s18, 0
    %p39 = por %p37, %p38
    %p40 = scmp.ne.s32.totalorder %s26, %s27
    %p41 = scmp.eq.s32.totalorder %s19, 1
    %p42 = por %p40, %p41
    %p44 = scmp.ne.s32.totalorder %s27, %s43
    %p45 = scmp.eq.s32.totalorder %s19, 0
    %p46 = por %p44, %p45
    %s48 = sadd.s32 %s47, 1
    %p51 = scmp.eq.s32.totalorder %s13, 1
    %p52 = scmp.ne.s32.totalorder %s47, %s49
    %p53 = scmp.eq.s32.totalorder %s13, 0
    %p54 = por %p52, %p53
    %p55 = scmp.ne.s32.totalorder %s47, %s49
    %p56 = scmp.eq.s32.totalorder %s18, 1
    %p57 = por %p55, %p56
    %p58 = scmp.ne.s32.totalorder %s49, %s50
    %p59 = scmp.eq.s32.totalorder %s18, 0
    %p60 = por %p58, %p59
    %p61 = scmp.ne.s32.totalorder %s49, %s50
    %p62 = scmp.eq.s32.totalorder %s19, 1
    %p63 = por %p61, %p62
    %p65 = scmp.ne.s32.totalorder %s50, %s64
    %p66 = scmp.eq.s32.totalorder %s19, 0
    %p67 = por %p65, %p66
    %s69 = sadd.s32 %s68, 1
    %p72 = scmp.eq.s32.totalorder %s13, 1
    %p73 = scmp.ne.s32.totalorder %s68, %s70
    %p74 = scmp.eq.s32.totalorder %s13, 0
    %p75 = por %p73, %p74
    %p76 = scmp.ne.s32.totalorder %s68, %s70
    %p77 = scmp.eq.s32.totalorder %s18, 1
    %p78 = por %p76, %p77
    %p79 = scmp.ne.s32.totalorder %s70, %s71
    %p80 = scmp.eq.s32.totalorder %s18, 0
    %p81 = por %p79, %p80
    %p82 = scmp.ne.s32.totalorder %s70, %s71
    %p83 = scmp.eq.s32.totalorder %s19, 1
    %p84 = por %p82, %p83
    %p86 = scmp.ne.s32.totalorder %s71, %s85
    %p87 = scmp.eq.s32.totalorder %s19, 0
    %p88 = por %p86, %p87
    %s90 = sadd.s32 %s89, 1
    %p93 = scmp.eq.s32.totalorder %s13, 1
    %p94 = scmp.ne.s32.totalorder %s89, %s91
    %p95 = scmp.eq.s32.totalorder %s13, 0
    %p96 = por %p94, %p95
    %p97 = scmp.ne.s32.totalorder %s89, %s91
    %p98 = scmp.eq.s32.totalorder %s18, 1
    %p99 = por %p97, %p98
    %p100 = scmp.ne.s32.totalorder %s91, %s92
    %p101 = scmp.eq.s32.totalorder %s18, 0
    %p102 = por %p100, %p101
    %p103 = scmp.ne.s32.totalorder %s91, %s92
    %p104 = scmp.eq.s32.totalorder %s19, 1
    %p105 = por %p103, %p104
    %p107 = scmp.ne.s32.totalorder %s92, %s106
    %p108 = scmp.eq.s32.totalorder %s19, 0
    %p109 = por %p107, %p108
    %s111 = sadd.s32 %s110, 1
    %p114 = scmp.eq.s32.totalorder %s13, 1
    %p115 = scmp.ne.s32.totalorder %s110, %s112
    %p116 = scmp.eq.s32.totalorder %s13, 0
    %p117 = por %p115, %p116
    %p118 = scmp.ne.s32.totalorder %s110, %s112
    %p119 = scmp.eq.s32.totalorder %s18, 1
    %p120 = por %p118, %p119
    %p121 = scmp.ne.s32.totalorder %s112, %s113
    %p122 = scmp.eq.s32.totalorder %s18, 0
    %p123 = por %p121, %p122
    %p124 = scmp.ne.s32.totalorder %s112, %s113
    %p125 = scmp.eq.s32.totalorder %s19, 1
    %p126 = por %p124, %p125
    %p128 = scmp.ne.s32.totalorder %s113, %s127
    %p129 = scmp.eq.s32.totalorder %s19, 0
    %p130 = por %p128, %p129
    %s131 = ssub.s32 %s13, %s20
    %p132 = scmp.eq.s32.totalorder %s131, 0
    %s134 = sadd.s32 %s133, 1
    %s135 = scalar_select %p132, %s133, %s134
    %p138 = pneg %p132
    %p139 = scmp.eq.s32.totalorder %s13, 1
    %p140 = por %p138, %p139
    %p141 = scmp.ne.s32.totalorder %s133, %s136
    %p142 = scmp.eq.s32.totalorder %s13, 0
    %p143 = por %p141, %p142
    %p144 = scmp.ne.s32.totalorder %s133, %s136
    %p145 = scmp.eq.s32.totalorder %s18, 1
    %p146 = por %p144, %p145
    %p147 = scmp.ne.s32.totalorder %s136, %s137
    %p148 = scmp.eq.s32.totalorder %s18, 0
    %p149 = por %p147, %p148
    %p150 = scmp.ne.s32.totalorder %s136, %s137
    %p151 = scmp.eq.s32.totalorder %s19, 1
    %p152 = por %p150, %p151
    %p154 = scmp.ne.s32.totalorder %s137, %s153
    %p155 = scmp.eq.s32.totalorder %s19, 0
    %p156 = por %p154, %p155
    %s158 = sadd.s32 %s157, 1
    %p161 = scmp.eq.s32.totalorder %s13, 1
    %p162 = scmp.ne.s32.totalorder %s157, %s159
    %p163 = scmp.eq.s32.totalorder %s13, 0
    %p164 = por %p162, %p163
    %p165 = scmp.ne.s32.totalorder %s157, %s159
    %p166 = scmp.eq.s32.totalorder %s18, 1
    %p167 = por %p165, %p166
    %p168 = scmp.ne.s32.totalorder %s159, %s160
    %p169 = scmp.eq.s32.totalorder %s18, 0
    %p170 = por %p168, %p169
    %p171 = scmp.ne.s32.totalorder %s159, %s160
    %p172 = scmp.eq.s32.totalorder %s19, 1
    %p173 = por %p171, %p172
    %p175 = scmp.ne.s32.totalorder %s160, %s174
    %p176 = scmp.eq.s32.totalorder %s19, 0
    %p177 = por %p175, %p176
    %p178 = scmp.le.s32.totalorder 1, %s13
    %p179 = scmp.lt.s32.totalorder %s13, 3
    %p180 = pnand %p178, %p179
    %p181 = pneg %p180
    // Predicated region
    $region9: #{down_dc_forward.4} parent=5 // pred_check
      _
    $region10: #{down_dc_forward.4} parent=5 // pred_check_branch
      %183 = sbr.rel (%p180) target = $region12
    $region11: #{down_dc_forward.4} parent=5 // pred_region
      %s184 = ssub.s32 %s13, 1
      // Predicated region
      $region13: #{down_dc_forward.4} parent=11 // pred_check
        %p185 = pneg %p60
      $region14: #{down_dc_forward.4} parent=11 // pred_check_branch
        %187 = sbr.rel (%p185) target = $region16
      $region15: #{down_dc_forward.4} parent=11 // pred_region
        _
      $region16: #{down_dc_forward.4} parent=11 // pred_fallthru
        _
      // Predicated region
      $region17: #{down_dc_forward.4} parent=11 // pred_check
        %p188 = pneg %p81
      $region18: #{down_dc_forward.4} parent=11 // pred_check_branch
        %190 = sbr.rel (%p188) target = $region20
      $region19: #{down_dc_forward.4} parent=11 // pred_region
        _
      $region20: #{down_dc_forward.4} parent=11 // pred_fallthru
        _
      // Predicated region
      $region21: #{down_dc_forward.4} parent=11 // pred_check
        %p191 = pneg %p102
      $region22: #{down_dc_forward.4} parent=11 // pred_check_branch
        %193 = sbr.rel (%p191) target = $region24
      $region23: #{down_dc_forward.4} parent=11 // pred_region
        _
      $region24: #{down_dc_forward.4} parent=11 // pred_fallthru
        _
      // Predicated region
      $region25: #{down_dc_forward.4} parent=11 // pred_check
        %p194 = pneg %p123
      $region26: #{down_dc_forward.4} parent=11 // pred_check_branch
        %196 = sbr.rel (%p194) target = $region28
      $region27: #{down_dc_forward.4} parent=11 // pred_region
        _
      $region28: #{down_dc_forward.4} parent=11 // pred_fallthru
        _
    $region12: #{down_dc_forward.4} parent=5 // pred_fallthru
      _
    %p197 = scmp.lt.s32.totalorder %s13, 2
    // Predicated region
    $region29: #{down_dc_forward.4} parent=5 // pred_check
      %p198 = pneg %p197
    $region30: #{down_dc_forward.4} parent=5 // pred_check_branch
      %200 = sbr.rel (%p198) target = $region32
    $region31: #{down_dc_forward.4} parent=5 // pred_region
      // Predicated region
      $region33: #{down_dc_forward.4} parent=31 // pred_check
        %p201 = pneg %p33
      $region34: #{down_dc_forward.4} parent=31 // pred_check_branch
        %203 = sbr.rel (%p201) target = $region36
      $region35: #{down_dc_forward.4} parent=31 // pred_region
        %p204 = scmp.lt.s32.totalorder %s13, 1
        %s205 = scalar_select %p204, %s13, 1
        %s206 = smul.addr %s205, 8
        %s207 = smul.addr %s206, 8
        %s208 = scalar_lea.vmem %s0, %s207
      $region36: #{down_dc_forward.4} parent=31 // pred_fallthru
        _
    $region32: #{down_dc_forward.4} parent=5 // pred_fallthru
      _
    %p209 = scmp.le.s32.totalorder 1, %s13
    %p210 = scmp.lt.s32.totalorder %s13, 3
    %p211 = pnand %p209, %p210
    %p212 = pneg %p211
    // Predicated region
    $region37: #{down_dc_forward.4} parent=5 // pred_check
      _
    $region38: #{down_dc_forward.4} parent=5 // pred_check_branch
      %214 = sbr.rel (%p211) target = $region40
    $region39: #{down_dc_forward.4} parent=5 // pred_region
      %s215 = ssub.s32 %s13, 1
      %p216 = scmp.lt.s32.totalorder %s18, 1
      %s217 = scalar_select %p216, %s18, 1
      %s218 = smul.addr %s217, 8
      %s219 = smul.addr %s218, 8
      %s220 = scalar_lea.vmem %s0, %s219
      %p221 = pneg %p39
      %p222 = pneg %p36
      %p223 = pneg %p60
      %p224 = pneg %p57
      %p225 = pneg %p81
      %p226 = pneg %p78
      %p227 = pneg %p102
      %p228 = pneg %p99
      %p229 = pneg %p123
      %p230 = pneg %p120
      %p231 = pneg %p149
      %p232 = pneg %p146
      %p233 = scmp.lt.s32.totalorder %s18, 1
      %s234 = scalar_select %p233, %s18, 1
      %s235 = smul.addr %s234, 8
      %s236 = smul.addr %s235, 8
      %s237 = scalar_lea.vmem %s5, %s236
      %p238 = pneg %p170
      %p239 = pneg %p167
      %p240 = scmp.lt.s32.totalorder %s18, 1
      %s241 = scalar_select %p240, %s18, 1
      %s242 = smul.addr %s241, 8
      %s243 = smul.addr %s242, 8
      %s244 = scalar_lea.vmem %s0, %s243
      %p245 = scmp.lt.s32.totalorder %s18, 1
      %s246 = scalar_select %p245, %s18, 1
      %s247 = smul.addr %s246, 8
      %s248 = smul.addr %s247, 8
      %s249 = scalar_lea.vmem %s5, %s248
      %p251 = scmp.eq.s32.totalorder %s18, 0
      // Predicated region
      $region41: #{down_dc_forward.4} parent=39 // pred_check
        %p252 = pneg %p251
      $region42: #{down_dc_forward.4} parent=39 // pred_check_branch
        %254 = sbr.rel (%p252) target = $region44
      $region43: #{down_dc_forward.4} parent=39 // pred_region
        %vm255 = vcmask 64512
        %256 = vst.msk [vmem:[#allocation2] sm:$0xff] %vm255, 0.0
        %vm257 = vcmask 58368
        %258 = vst.msk [vmem:[#allocation2 + $0x8] sm:$0x3] %vm257, 0.0
        %s259 = scalar_lea.vmem [#allocation2], 144
        %260 = vst.msk [vmem:[%s259] sm:$0xff] %vm255, 0.0
        %261 = vst.msk [vmem:[%s259 + $0x8] sm:$0x3] %vm257, 0.0
        %s262 = scalar_lea.vmem [#allocation2], 16
        %vm263 = vcmask 57344
        %264 = vst.msk [vmem:[%s262] sm:$0x1] %vm263, 0.0
        %265 = vst.msk [vmem:[%s262 + $0x10] sm:$0x1] %vm263, 0.0
        %266 = vst.msk [vmem:[%s262 + $0x20] sm:$0x1] %vm263, 0.0
        %267 = vst.msk [vmem:[%s262 + $0x30] sm:$0x1] %vm263, 0.0
        %268 = vst.msk [vmem:[%s262 + $0x40] sm:$0x1] %vm263, 0.0
        %269 = vst.msk [vmem:[%s262 + $0x50] sm:$0x1] %vm263, 0.0
        %270 = vst.msk [vmem:[%s262 + $0x60] sm:$0x1] %vm263, 0.0
        %271 = vst.msk [vmem:[%s262 + $0x70] sm:$0x1] %vm263, 0.0
        %272 = vst.msk [vmem:[%s262 + $0x9] sm:$0x1] %vm263, 0.0
        %273 = vst.msk [vmem:[%s262 + $0x19] sm:$0x1] %vm263, 0.0
        %274 = vst.msk [vmem:[%s262 + $0x29] sm:$0x1] %vm263, 0.0
        %275 = vst.msk [vmem:[%s262 + $0x39] sm:$0x1] %vm263, 0.0
        %276 = vst.msk [vmem:[%s262 + $0x49] sm:$0x1] %vm263, 0.0
        %277 = vst.msk [vmem:[%s262 + $0x59] sm:$0x1] %vm263, 0.0
        %278 = vst.msk [vmem:[%s262 + $0x69] sm:$0x1] %vm263, 0.0
        %279 = vst.msk [vmem:[%s262 + $0x79] sm:$0x1] %vm263, 0.0
      $region44: #{down_dc_forward.4} parent=39 // pred_fallthru
        _
      %v280 = vld [vmem:[%s244] sm:$0xff]
      %v281 = vld [vmem:[%s244 + $0x8] sm:$0xff]
      %v282 = vld [vmem:[%s244 + $0x10] sm:$0xff]
      %v283 = vld [vmem:[%s244 + $0x18] sm:$0xff]
      %v284 = vld [vmem:[%s244 + $0x20] sm:$0xff]
      %v285 = vld [vmem:[%s244 + $0x28] sm:$0xff]
      %v286 = vld [vmem:[%s244 + $0x30] sm:$0xff]
      %v287 = vld [vmem:[%s244 + $0x38] sm:$0xff]
      %v288 = vld [vmem:[%s1] sm:$0x1]
      %v290 = vlaneseq
      %v291 = vshrl.u32 %v290, 7
      %v292 = vsub.s32 0, %v291
      %v293 = vrot.slane %v288, %v292
      %v295 = vmul.f32 %v280, %v293
      %v296 = vmul.f32 %v281, %v293
      %v297 = vmul.f32 %v282, %v293
      %v298 = vmul.f32 %v283, %v293
      %v299 = vmul.f32 %v284, %v293
      %v300 = vmul.f32 %v285, %v293
      %v301 = vmul.f32 %v286, %v293
      %v302 = vmul.f32 %v287, %v293
      %v303 = vld [vmem:[%s2] sm:$0x1]
      %v305 = vlaneseq
      %v306 = vshrl.u32 %v305, 7
      %v307 = vsub.s32 0, %v306
      %v308 = vrot.slane %v303, %v307
      %v310 = vadd.f32 %v295, %v308
      %v311 = vadd.f32 %v296, %v308
      %v312 = vadd.f32 %v297, %v308
      %v313 = vadd.f32 %v298, %v308
      %v314 = vadd.f32 %v299, %v308
      %v315 = vadd.f32 %v300, %v308
      %v316 = vadd.f32 %v301, %v308
      %v317 = vadd.f32 %v302, %v308
      %v318 = vmax.f32 %v310, 0.0
      %v319 = vmax.f32 %v311, 0.0
      %v320 = vmax.f32 %v312, 0.0
      %v321 = vmax.f32 %v313, 0.0
      %v322 = vmax.f32 %v314, 0.0
      %v323 = vmax.f32 %v315, 0.0
      %v324 = vmax.f32 %v316, 0.0
      %v325 = vmax.f32 %v317, 0.0
      %s326 = scalar_lea.vmem [#allocation2], 16
      %vm327 = vcmask 64512
      %328 = vst.msk [vmem:[%s326 + $0x1] sm:$0xff] %vm327, %v318
      %329 = vst.msk [vmem:[%s326 + $0x11] sm:$0xff] %vm327, %v319
      %330 = vst.msk [vmem:[%s326 + $0x21] sm:$0xff] %vm327, %v320
      %331 = vst.msk [vmem:[%s326 + $0x31] sm:$0xff] %vm327, %v321
      %332 = vst.msk [vmem:[%s326 + $0x41] sm:$0xff] %vm327, %v322
      %333 = vst.msk [vmem:[%s326 + $0x51] sm:$0xff] %vm327, %v323
      %334 = vst.msk [vmem:[%s326 + $0x61] sm:$0xff] %vm327, %v324
      %335 = vst.msk [vmem:[%s326 + $0x71] sm:$0xff] %vm327, %v325
      %v336 = vld [vmem:[#allocation2] sm:$0xff]
      %v337 = vld [vmem:[#allocation2 + $0x10] sm:$0xff]
      %v338 = vld [vmem:[#allocation2 + $0x20] sm:$0xff]
      %v339 = vld [vmem:[#allocation2 + $0x30] sm:$0xff]
      %v340 = vld [vmem:[#allocation2 + $0x40] sm:$0xff]
      %v341 = vld [vmem:[#allocation2 + $0x50] sm:$0xff]
      %v342 = vld [vmem:[#allocation2 + $0x60] sm:$0xff]
      %v343 = vld [vmem:[#allocation2 + $0x70] sm:$0xff]
      %v344 = vpack.c.bf16 %v337, %v336
      %v345 = vpack.c.bf16 %v339, %v338
      %v346 = vpack.c.bf16 %v341, %v340
      %v347 = vpack.c.bf16 %v343, %v342
      %v348 = vld [vmem:[%s3] sm:$0xf]
      %v349 = vld [vmem:[#allocation2 + $0x1] sm:$0xff]
      %v350 = vld [vmem:[#allocation2 + $0x11] sm:$0xff]
      %v351 = vld [vmem:[#allocation2 + $0x21] sm:$0xff]
      %v352 = vld [vmem:[#allocation2 + $0x31] sm:$0xff]
      %v353 = vld [vmem:[#allocation2 + $0x41] sm:$0xff]
      %v354 = vld [vmem:[#allocation2 + $0x51] sm:$0xff]
      %v355 = vld [vmem:[#allocation2 + $0x61] sm:$0xff]
      %v356 = vld [vmem:[#allocation2 + $0x71] sm:$0xff]
      %v357 = vpack.c.bf16 %v350, %v349
      %v358 = vpack.c.bf16 %v352, %v351
      %v359 = vpack.c.bf16 %v354, %v353
      %v360 = vpack.c.bf16 %v356, %v355
      %s361 = scalar_lea.vmem %s3, 4
      %v362 = vld [vmem:[%s361] sm:$0xf]
      %v364 = vsel %vm327, %v357, 0
      %v367 = vsel %vm327, %v358, 0
      %v370 = vsel %vm327, %v359, 0
      %v373 = vsel %vm327, %v360, 0
      %vm375 = vcmask 1043456
      %v377 = vsel %vm375, %v362, 0
      %379 = vmatprep.subr.bf16.mxu0 0
      %380 = vmatpush1.bf16.msra.mxu0 0
      %381 = vmatprep.subr.bf16.mxu0 0
      %382 = vmatpush1.bf16.msra.mxu0 0
      %383 = vmatprep.subr.bf16.mxu0 0
      %384 = vmatpush1.bf16.msra.mxu0 0
      %385 = vmatprep.subr.bf16.mxu0 0
      %386 = vmatpush1.bf16.msra.mxu0 0
      %387 = vmatprep.subr.bf16.mxu0 0
      %388 = vmatpush1.bf16.msra.mxu0 0
      %389 = vmatprep.subr.bf16.mxu0 0
      %390 = vmatpush1.bf16.msra.mxu0 0
      %391 = vmatprep.subr.bf16.mxu0 0
      %392 = vmatpush1.bf16.msra.mxu0 0
      %393 = vmatprep.subr.bf16.mxu0 0
      %394 = vmatpush1.bf16.msra.mxu0 %v377
      %395 = vmatprep.subr.bf16.mxu0 0
      %396 = vmatpush2.bf16.msra.mxu0 0
      %397 = vmatprep.subr.bf16.mxu0 0
      %398 = vmatpush2.bf16.msra.mxu0 0
      %399 = vmatprep.subr.bf16.mxu0 0
      %400 = vmatpush2.bf16.msra.mxu0 0
      %401 = vmatprep.subr.bf16.mxu0 0
      %402 = vmatpush2.bf16.msra.mxu0 0
      %403 = vmatprep.subr.bf16.mxu0 0
      %404 = vmatpush2.bf16.msra.mxu0 0
      %405 = vmatprep.subr.bf16.mxu0 0
      %406 = vmatpush2.bf16.msra.mxu0 0
      %407 = vmatprep.subr.bf16.mxu0 0
      %408 = vmatpush2.bf16.msra.mxu0 0
      %409 = vmatprep.subr.bf16.mxu0 0
      %410 = vmatpush2.bf16.msra.mxu0 0
      %411 = vmatprep.mubr.bf16.mxu0 0
      %412 = vmatmul.mubr.bf16.gmra.mxu0 %v364
      %v413 = vpop.f32.mrf.mxu0
      %v414 = vadd.f32 0.0, %v413
      %v415 = vpop.f32.mrf.mxu0
      %v416 = vpop.f32.mrf.mxu0
      %v417 = vadd.f32 0.0, %v416
      %v418 = vpop.f32.mrf.mxu0
      %419 = vmatprep.mubr.bf16.mxu0 0
      %420 = vmatmul.mubr.bf16.gmra.mxu0 %v367
      %v421 = vpop.f32.mrf.mxu0
      %v422 = vadd.f32 0.0, %v421
      %v423 = vpop.f32.mrf.mxu0
      %v424 = vpop.f32.mrf.mxu0
      %v425 = vadd.f32 0.0, %v424
      %v426 = vpop.f32.mrf.mxu0
      %427 = vmatprep.mubr.bf16.mxu0 0
      %428 = vmatmul.mubr.bf16.gmra.mxu0 %v370
      %v429 = vpop.f32.mrf.mxu0
      %v430 = vadd.f32 0.0, %v429
      %v431 = vpop.f32.mrf.mxu0
      %v432 = vpop.f32.mrf.mxu0
      %v433 = vadd.f32 0.0, %v432
      %v434 = vpop.f32.mrf.mxu0
      %435 = vmatprep.mubr.bf16.mxu0 0
      %436 = vmatmul.mubr.bf16.gmra.mxu0 %v373
      %v437 = vpop.f32.mrf.mxu0
      %v438 = vadd.f32 0.0, %v437
      %v439 = vpop.f32.mrf.mxu0
      %v440 = vpop.f32.mrf.mxu0
      %v441 = vadd.f32 0.0, %v440
      %v442 = vpop.f32.mrf.mxu0
      %443 = vdwg.mxu0
      %v445 = vsel %vm327, %v344, 0
      %v448 = vsel %vm327, %v345, 0
      %v451 = vsel %vm327, %v346, 0
      %v454 = vsel %vm327, %v347, 0
      %v457 = vsel %vm375, %v348, 0
      %459 = vmatprep.subr.bf16.mxu0 0
      %460 = vmatpush1.bf16.msra.mxu0 0
      %461 = vmatprep.subr.bf16.mxu0 0
      %462 = vmatpush1.bf16.msra.mxu0 0
      %463 = vmatprep.subr.bf16.mxu0 0
      %464 = vmatpush1.bf16.msra.mxu0 0
      %465 = vmatprep.subr.bf16.mxu0 0
      %466 = vmatpush1.bf16.msra.mxu0 0
      %467 = vmatprep.subr.bf16.mxu0 0
      %468 = vmatpush1.bf16.msra.mxu0 0
      %469 = vmatprep.subr.bf16.mxu0 0
      %470 = vmatpush1.bf16.msra.mxu0 0
      %471 = vmatprep.subr.bf16.mxu0 0
      %472 = vmatpush1.bf16.msra.mxu0 0
      %473 = vmatprep.subr.bf16.mxu0 0
      %474 = vmatpush1.bf16.msra.mxu0 %v457
      %475 = vmatprep.subr.bf16.mxu0 0
      %476 = vmatpush2.bf16.msra.mxu0 0
      %477 = vmatprep.subr.bf16.mxu0 0
      %478 = vmatpush2.bf16.msra.mxu0 0
      %479 = vmatprep.subr.bf16.mxu0 0
      %480 = vmatpush2.bf16.msra.mxu0 0
      %481 = vmatprep.subr.bf16.mxu0 0
      %482 = vmatpush2.bf16.msra.mxu0 0
      %483 = vmatprep.subr.bf16.mxu0 0
      %484 = vmatpush2.bf16.msra.mxu0 0
      %485 = vmatprep.subr.bf16.mxu0 0
      %486 = vmatpush2.bf16.msra.mxu0 0
      %487 = vmatprep.subr.bf16.mxu0 0
      %488 = vmatpush2.bf16.msra.mxu0 0
      %489 = vmatprep.subr.bf16.mxu0 0
      %490 = vmatpush2.bf16.msra.mxu0 0
      %491 = vmatprep.mubr.bf16.mxu0 0
      %492 = vmatmul.mubr.bf16.gmra.mxu0 %v445
      %v493 = vpop.f32.mrf.mxu0
      %v494 = vadd.f32 %v414, %v493
      %v495 = vpop.f32.mrf.mxu0
      %v496 = vpop.f32.mrf.mxu0
      %v497 = vadd.f32 %v417, %v496
      %v498 = vpop.f32.mrf.mxu0
      %499 = vmatprep.mubr.bf16.mxu0 0
      %500 = vmatmul.mubr.bf16.gmra.mxu0 %v448
      %v501 = vpop.f32.mrf.mxu0
      %v502 = vadd.f32 %v422, %v501
      %v503 = vpop.f32.mrf.mxu0
      %v504 = vpop.f32.mrf.mxu0
      %v505 = vadd.f32 %v425, %v504
      %v506 = vpop.f32.mrf.mxu0
      %507 = vmatprep.mubr.bf16.mxu0 0
      %508 = vmatmul.mubr.bf16.gmra.mxu0 %v451
      %v509 = vpop.f32.mrf.mxu0
      %v510 = vadd.f32 %v430, %v509
      %v511 = vpop.f32.mrf.mxu0
      %v512 = vpop.f32.mrf.mxu0
      %v513 = vadd.f32 %v433, %v512
      %v514 = vpop.f32.mrf.mxu0
      %515 = vmatprep.mubr.bf16.mxu0 0
      %516 = vmatmul.mubr.bf16.gmra.mxu0 %v454
      %v517 = vpop.f32.mrf.mxu0
      %v518 = vadd.f32 %v438, %v517
      %v519 = vpop.f32.mrf.mxu0
      %v520 = vpop.f32.mrf.mxu0
      %v521 = vadd.f32 %v441, %v520
      %v522 = vpop.f32.mrf.mxu0
      %523 = vdwg.mxu0
      %v524 = vld [vmem:[#allocation2 + $0x2] sm:$0xff]
      %v525 = vld [vmem:[#allocation2 + $0x12] sm:$0xff]
      %v526 = vld [vmem:[#allocation2 + $0x22] sm:$0xff]
      %v527 = vld [vmem:[#allocation2 + $0x32] sm:$0xff]
      %v528 = vld [vmem:[#allocation2 + $0x42] sm:$0xff]
      %v529 = vld [vmem:[#allocation2 + $0x52] sm:$0xff]
      %v530 = vld [vmem:[#allocation2 + $0x62] sm:$0xff]
      %v531 = vld [vmem:[#allocation2 + $0x72] sm:$0xff]
      %v532 = vpack.c.bf16 %v525, %v524
      %v533 = vpack.c.bf16 %v527, %v526
      %v534 = vpack.c.bf16 %v529, %v528
      %v535 = vpack.c.bf16 %v531, %v530
      %s536 = scalar_lea.vmem %s3, 8
      %v537 = vld [vmem:[%s536] sm:$0xf]
      %v539 = vsel %vm327, %v532, 0
      %v542 = vsel %vm327, %v533, 0
      %v545 = vsel %vm327, %v534, 0
      %v548 = vsel %vm327, %v535, 0
      %v551 = vsel %vm375, %v537, 0
      %553 = vmatprep.subr.bf16.mxu0 0
      %554 = vmatpush1.bf16.msra.mxu0 0
      %555 = vmatprep.subr.bf16.mxu0 0
      %556 = vmatpush1.bf16.msra.mxu0 0
      %557 = vmatprep.subr.bf16.mxu0 0
      %558 = vmatpush1.bf16.msra.mxu0 0
      %559 = vmatprep.subr.bf16.mxu0 0
      %560 = vmatpush1.bf16.msra.mxu0 0
      %561 = vmatprep.subr.bf16.mxu0 0
      %562 = vmatpush1.bf16.msra.mxu0 0
      %563 = vmatprep.subr.bf16.mxu0 0
      %564 = vmatpush1.bf16.msra.mxu0 0
      %565 = vmatprep.subr.bf16.mxu0 0
      %566 = vmatpush1.bf16.msra.mxu0 0
      %567 = vmatprep.subr.bf16.mxu0 0
      %568 = vmatpush1.bf16.msra.mxu0 %v551
      %569 = vmatprep.subr.bf16.mxu0 0
      %570 = vmatpush2.bf16.msra.mxu0 0
      %571 = vmatprep.subr.bf16.mxu0 0
      %572 = vmatpush2.bf16.msra.mxu0 0
      %573 = vmatprep.subr.bf16.mxu0 0
      %574 = vmatpush2.bf16.msra.mxu0 0
      %575 = vmatprep.subr.bf16.mxu0 0
      %576 = vmatpush2.bf16.msra.mxu0 0
      %577 = vmatprep.subr.bf16.mxu0 0
      %578 = vmatpush2.bf16.msra.mxu0 0
      %579 = vmatprep.subr.bf16.mxu0 0
      %580 = vmatpush2.bf16.msra.mxu0 0
      %581 = vmatprep.subr.bf16.mxu0 0
      %582 = vmatpush2.bf16.msra.mxu0 0
      %583 = vmatprep.subr.bf16.mxu0 0
      %584 = vmatpush2.bf16.msra.mxu0 0
      %585 = vmatprep.mubr.bf16.mxu0 0
      %586 = vmatmul.mubr.bf16.gmra.mxu0 %v539
      %v587 = vpop.f32.mrf.mxu0
      %v588 = vadd.f32 0.0, %v587
      %v589 = vpop.f32.mrf.mxu0
      %v590 = vpop.f32.mrf.mxu0
      %v591 = vadd.f32 0.0, %v590
      %v592 = vpop.f32.mrf.mxu0
      %593 = vmatprep.mubr.bf16.mxu0 0
      %594 = vmatmul.mubr.bf16.gmra.mxu0 %v542
      %v595 = vpop.f32.mrf.mxu0
      %v596 = vadd.f32 0.0, %v595
      %v597 = vpop.f32.mrf.mxu0
      %v598 = vpop.f32.mrf.mxu0
      %v599 = vadd.f32 0.0, %v598
      %v600 = vpop.f32.mrf.mxu0
      %601 = vmatprep.mubr.bf16.mxu0 0
      %602 = vmatmul.mubr.bf16.gmra.mxu0 %v545
      %v603 = vpop.f32.mrf.mxu0
      %v604 = vadd.f32 0.0, %v603
      %v605 = vpop.f32.mrf.mxu0
      %v606 = vpop.f32.mrf.mxu0
      %v607 = vadd.f32 0.0, %v606
      %v608 = vpop.f32.mrf.mxu0
      %609 = vmatprep.mubr.bf16.mxu0 0
      %610 = vmatmul.mubr.bf16.gmra.mxu0 %v548
      %v611 = vpop.f32.mrf.mxu0
      %v612 = vadd.f32 0.0, %v611
      %v613 = vpop.f32.mrf.mxu0
      %v614 = vpop.f32.mrf.mxu0
      %v615 = vadd.f32 0.0, %v614
      %v616 = vpop.f32.mrf.mxu0
      %617 = vdwg.mxu0
      %v618 = vadd.f32 %v494, %v588
      %v619 = vadd.f32 %v497, %v591
      %v620 = vadd.f32 %v502, %v596
      %v621 = vadd.f32 %v505, %v599
      %v622 = vadd.f32 %v510, %v604
      %v623 = vadd.f32 %v513, %v607
      %v624 = vadd.f32 %v518, %v612
      %v625 = vadd.f32 %v521, %v615
      %v626 = vld [vmem:[%s326] sm:$0xff]
      %v627 = vld [vmem:[%s326 + $0x10] sm:$0xff]
      %v628 = vld [vmem:[%s326 + $0x20] sm:$0xff]
      %v629 = vld [vmem:[%s326 + $0x30] sm:$0xff]
      %v630 = vld [vmem:[%s326 + $0x40] sm:$0xff]
      %v631 = vld [vmem:[%s326 + $0x50] sm:$0xff]
      %v632 = vld [vmem:[%s326 + $0x60] sm:$0xff]
      %v633 = vld [vmem:[%s326 + $0x70] sm:$0xff]
      %v634 = vpack.c.bf16 %v627, %v626
      %v635 = vpack.c.bf16 %v629, %v628
      %v636 = vpack.c.bf16 %v631, %v630
      %v637 = vpack.c.bf16 %v633, %v632
      %s638 = scalar_lea.vmem %s3, 12
      %v639 = vld [vmem:[%s638] sm:$0xf]
      %v641 = vsel %vm327, %v634, 0
      %v644 = vsel %vm327, %v635, 0
      %v647 = vsel %vm327, %v636, 0
      %v650 = vsel %vm327, %v637, 0
      %v653 = vsel %vm375, %v639, 0
      %655 = vmatprep.subr.bf16.mxu0 0
      %656 = vmatpush1.bf16.msra.mxu0 0
      %657 = vmatprep.subr.bf16.mxu0 0
      %658 = vmatpush1.bf16.msra.mxu0 0
      %659 = vmatprep.subr.bf16.mxu0 0
      %660 = vmatpush1.bf16.msra.mxu0 0
      %661 = vmatprep.subr.bf16.mxu0 0
      %662 = vmatpush1.bf16.msra.mxu0 0
      %663 = vmatprep.subr.bf16.mxu0 0
      %664 = vmatpush1.bf16.msra.mxu0 0
      %665 = vmatprep.subr.bf16.mxu0 0
      %666 = vmatpush1.bf16.msra.mxu0 0
      %667 = vmatprep.subr.bf16.mxu0 0
      %668 = vmatpush1.bf16.msra.mxu0 0
      %669 = vmatprep.subr.bf16.mxu0 0
      %670 = vmatpush1.bf16.msra.mxu0 %v653
      %671 = vmatprep.subr.bf16.mxu0 0
      %672 = vmatpush2.bf16.msra.mxu0 0
      %673 = vmatprep.subr.bf16.mxu0 0
      %674 = vmatpush2.bf16.msra.mxu0 0
      %675 = vmatprep.subr.bf16.mxu0 0
      %676 = vmatpush2.bf16.msra.mxu0 0
      %677 = vmatprep.subr.bf16.mxu0 0
      %678 = vmatpush2.bf16.msra.mxu0 0
      %679 = vmatprep.subr.bf16.mxu0 0
      %680 = vmatpush2.bf16.msra.mxu0 0
      %681 = vmatprep.subr.bf16.mxu0 0
      %682 = vmatpush2.bf16.msra.mxu0 0
      %683 = vmatprep.subr.bf16.mxu0 0
      %684 = vmatpush2.bf16.msra.mxu0 0
      %685 = vmatprep.subr.bf16.mxu0 0
      %686 = vmatpush2.bf16.msra.mxu0 0
      %687 = vmatprep.mubr.bf16.mxu0 0
      %688 = vmatmul.mubr.bf16.gmra.mxu0 %v641
      %v689 = vpop.f32.mrf.mxu0
      %v690 = vadd.f32 0.0, %v689
      %v691 = vpop.f32.mrf.mxu0
      %v692 = vpop.f32.mrf.mxu0
      %v693 = vadd.f32 0.0, %v692
      %v694 = vpop.f32.mrf.mxu0
      %695 = vmatprep.mubr.bf16.mxu0 0
      %696 = vmatmul.mubr.bf16.gmra.mxu0 %v644
      %v697 = vpop.f32.mrf.mxu0
      %v698 = vadd.f32 0.0, %v697
      %v699 = vpop.f32.mrf.mxu0
      %v700 = vpop.f32.mrf.mxu0
      %v701 = vadd.f32 0.0, %v700
      %v702 = vpop.f32.mrf.mxu0
      %703 = vmatprep.mubr.bf16.mxu0 0
      %704 = vmatmul.mubr.bf16.gmra.mxu0 %v647
      %v705 = vpop.f32.mrf.mxu0
      %v706 = vadd.f32 0.0, %v705
      %v707 = vpop.f32.mrf.mxu0
      %v708 = vpop.f32.mrf.mxu0
      %v709 = vadd.f32 0.0, %v708
      %v710 = vpop.f32.mrf.mxu0
      %711 = vmatprep.mubr.bf16.mxu0 0
      %712 = vmatmul.mubr.bf16.gmra.mxu0 %v650
      %v713 = vpop.f32.mrf.mxu0
      %v714 = vadd.f32 0.0, %v713
      %v715 = vpop.f32.mrf.mxu0
      %v716 = vpop.f32.mrf.mxu0
      %v717 = vadd.f32 0.0, %v716
      %v718 = vpop.f32.mrf.mxu0
      %719 = vdwg.mxu0
      %v720 = vadd.f32 %v618, %v690
      %v721 = vadd.f32 %v619, %v693
      %v722 = vadd.f32 %v620, %v698
      %v723 = vadd.f32 %v621, %v701
      %v724 = vadd.f32 %v622, %v706
      %v725 = vadd.f32 %v623, %v709
      %v726 = vadd.f32 %v624, %v714
      %v727 = vadd.f32 %v625, %v717
      %v728 = vld [vmem:[%s326 + $0x1] sm:$0xff]
      %v729 = vld [vmem:[%s326 + $0x11] sm:$0xff]
      %v730 = vld [vmem:[%s326 + $0x21] sm:$0xff]
      %v731 = vld [vmem:[%s326 + $0x31] sm:$0xff]
      %v732 = vld [vmem:[%s326 + $0x41] sm:$0xff]
      %v733 = vld [vmem:[%s326 + $0x51] sm:$0xff]
      %v734 = vld [vmem:[%s326 + $0x61] sm:$0xff]
      %v735 = vld [vmem:[%s326 + $0x71] sm:$0xff]
      %v736 = vpack.c.bf16 %v729, %v728
      %v737 = vpack.c.bf16 %v731, %v730
      %v738 = vpack.c.bf16 %v733, %v732
      %v739 = vpack.c.bf16 %v735, %v734
      %s740 = scalar_lea.vmem %s3, 16
      %v741 = vld [vmem:[%s740] sm:$0xf]
      %v743 = vsel %vm327, %v736, 0
      %v746 = vsel %vm327, %v737, 0
      %v749 = vsel %vm327, %v738, 0
      %v752 = vsel %vm327, %v739, 0
      %v755 = vsel %vm375, %v741, 0
      %757 = vmatprep.subr.bf16.mxu0 0
      %758 = vmatpush1.bf16.msra.mxu0 0
      %759 = vmatprep.subr.bf16.mxu0 0
      %760 = vmatpush1.bf16.msra.mxu0 0
      %761 = vmatprep.subr.bf16.mxu0 0
      %762 = vmatpush1.bf16.msra.mxu0 0
      %763 = vmatprep.subr.bf16.mxu0 0
      %764 = vmatpush1.bf16.msra.mxu0 0
      %765 = vmatprep.subr.bf16.mxu0 0
      %766 = vmatpush1.bf16.msra.mxu0 0
      %767 = vmatprep.subr.bf16.mxu0 0
      %768 = vmatpush1.bf16.msra.mxu0 0
      %769 = vmatprep.subr.bf16.mxu0 0
      %770 = vmatpush1.bf16.msra.mxu0 0
      %771 = vmatprep.subr.bf16.mxu0 0
      %772 = vmatpush1.bf16.msra.mxu0 %v755
      %773 = vmatprep.subr.bf16.mxu0 0
      %774 = vmatpush2.bf16.msra.mxu0 0
      %775 = vmatprep.subr.bf16.mxu0 0
      %776 = vmatpush2.bf16.msra.mxu0 0
      %777 = vmatprep.subr.bf16.mxu0 0
      %778 = vmatpush2.bf16.msra.mxu0 0
      %779 = vmatprep.subr.bf16.mxu0 0
      %780 = vmatpush2.bf16.msra.mxu0 0
      %781 = vmatprep.subr.bf16.mxu0 0
      %782 = vmatpush2.bf16.msra.mxu0 0
      %783 = vmatprep.subr.bf16.mxu0 0
      %784 = vmatpush2.bf16.msra.mxu0 0
      %785 = vmatprep.subr.bf16.mxu0 0
      %786 = vmatpush2.bf16.msra.mxu0 0
      %787 = vmatprep.subr.bf16.mxu0 0
      %788 = vmatpush2.bf16.msra.mxu0 0
      %789 = vmatprep.mubr.bf16.mxu0 0
      %790 = vmatmul.mubr.bf16.gmra.mxu0 %v743
      %v791 = vpop.f32.mrf.mxu0
      %v792 = vadd.f32 0.0, %v791
      %v793 = vpop.f32.mrf.mxu0
      %v794 = vpop.f32.mrf.mxu0
      %v795 = vadd.f32 0.0, %v794
      %v796 = vpop.f32.mrf.mxu0
      %797 = vmatprep.mubr.bf16.mxu0 0
      %798 = vmatmul.mubr.bf16.gmra.mxu0 %v746
      %v799 = vpop.f32.mrf.mxu0
      %v800 = vadd.f32 0.0, %v799
      %v801 = vpop.f32.mrf.mxu0
      %v802 = vpop.f32.mrf.mxu0
      %v803 = vadd.f32 0.0, %v802
      %v804 = vpop.f32.mrf.mxu0
      %805 = vmatprep.mubr.bf16.mxu0 0
      %806 = vmatmul.mubr.bf16.gmra.mxu0 %v749
      %v807 = vpop.f32.mrf.mxu0
      %v808 = vadd.f32 0.0, %v807
      %v809 = vpop.f32.mrf.mxu0
      %v810 = vpop.f32.mrf.mxu0
      %v811 = vadd.f32 0.0, %v810
      %v812 = vpop.f32.mrf.mxu0
      %813 = vmatprep.mubr.bf16.mxu0 0
      %814 = vmatmul.mubr.bf16.gmra.mxu0 %v752
      %v815 = vpop.f32.mrf.mxu0
      %v816 = vadd.f32 0.0, %v815
      %v817 = vpop.f32.mrf.mxu0
      %v818 = vpop.f32.mrf.mxu0
      %v819 = vadd.f32 0.0, %v818
      %v820 = vpop.f32.mrf.mxu0
      %821 = vdwg.mxu0
      %v822 = vadd.f32 %v720, %v792
      %v823 = vadd.f32 %v721, %v795
      %v824 = vadd.f32 %v722, %v800
      %v825 = vadd.f32 %v723, %v803
      %v826 = vadd.f32 %v724, %v808
      %v827 = vadd.f32 %v725, %v811
      %v828 = vadd.f32 %v726, %v816
      %v829 = vadd.f32 %v727, %v819
      %v830 = vld [vmem:[%s326 + $0x2] sm:$0xff]
      %v831 = vld [vmem:[%s326 + $0x12] sm:$0xff]
      %v832 = vld [vmem:[%s326 + $0x22] sm:$0xff]
      %v833 = vld [vmem:[%s326 + $0x32] sm:$0xff]
      %v834 = vld [vmem:[%s326 + $0x42] sm:$0xff]
      %v835 = vld [vmem:[%s326 + $0x52] sm:$0xff]
      %v836 = vld [vmem:[%s326 + $0x62] sm:$0xff]
      %v837 = vld [vmem:[%s326 + $0x72] sm:$0xff]
      %v838 = vpack.c.bf16 %v831, %v830
      %v839 = vpack.c.bf16 %v833, %v832
      %v840 = vpack.c.bf16 %v835, %v834
      %v841 = vpack.c.bf16 %v837, %v836
      %s842 = scalar_lea.vmem %s3, 20
      %v843 = vld [vmem:[%s842] sm:$0xf]
      %v845 = vsel %vm327, %v838, 0
      %v848 = vsel %vm327, %v839, 0
      %v851 = vsel %vm327, %v840, 0
      %v854 = vsel %vm327, %v841, 0
      %v857 = vsel %vm375, %v843, 0
      %859 = vmatprep.subr.bf16.mxu0 0
      %860 = vmatpush1.bf16.msra.mxu0 0
      %861 = vmatprep.subr.bf16.mxu0 0
      %862 = vmatpush1.bf16.msra.mxu0 0
      %863 = vmatprep.subr.bf16.mxu0 0
      %864 = vmatpush1.bf16.msra.mxu0 0
      %865 = vmatprep.subr.bf16.mxu0 0
      %866 = vmatpush1.bf16.msra.mxu0 0
      %867 = vmatprep.subr.bf16.mxu0 0
      %868 = vmatpush1.bf16.msra.mxu0 0
      %869 = vmatprep.subr.bf16.mxu0 0
      %870 = vmatpush1.bf16.msra.mxu0 0
      %871 = vmatprep.subr.bf16.mxu0 0
      %872 = vmatpush1.bf16.msra.mxu0 0
      %873 = vmatprep.subr.bf16.mxu0 0
      %874 = vmatpush1.bf16.msra.mxu0 %v857
      %875 = vmatprep.subr.bf16.mxu0 0
      %876 = vmatpush2.bf16.msra.mxu0 0
      %877 = vmatprep.subr.bf16.mxu0 0
      %878 = vmatpush2.bf16.msra.mxu0 0
      %879 = vmatprep.subr.bf16.mxu0 0
      %880 = vmatpush2.bf16.msra.mxu0 0
      %881 = vmatprep.subr.bf16.mxu0 0
      %882 = vmatpush2.bf16.msra.mxu0 0
      %883 = vmatprep.subr.bf16.mxu0 0
      %884 = vmatpush2.bf16.msra.mxu0 0
      %885 = vmatprep.subr.bf16.mxu0 0
      %886 = vmatpush2.bf16.msra.mxu0 0
      %887 = vmatprep.subr.bf16.mxu0 0
      %888 = vmatpush2.bf16.msra.mxu0 0
      %889 = vmatprep.subr.bf16.mxu0 0
      %890 = vmatpush2.bf16.msra.mxu0 0
      %891 = vmatprep.mubr.bf16.mxu0 0
      %892 = vmatmul.mubr.bf16.gmra.mxu0 %v845
      %v893 = vpop.f32.mrf.mxu0
      %v894 = vadd.f32 0.0, %v893
      %v895 = vpop.f32.mrf.mxu0
      %v896 = vpop.f32.mrf.mxu0
      %v897 = vadd.f32 0.0, %v896
      %v898 = vpop.f32.mrf.mxu0
      %899 = vmatprep.mubr.bf16.mxu0 0
      %900 = vmatmul.mubr.bf16.gmra.mxu0 %v848
      %v901 = vpop.f32.mrf.mxu0
      %v902 = vadd.f32 0.0, %v901
      %v903 = vpop.f32.mrf.mxu0
      %v904 = vpop.f32.mrf.mxu0
      %v905 = vadd.f32 0.0, %v904
      %v906 = vpop.f32.mrf.mxu0
      %907 = vmatprep.mubr.bf16.mxu0 0
      %908 = vmatmul.mubr.bf16.gmra.mxu0 %v851
      %v909 = vpop.f32.mrf.mxu0
      %v910 = vadd.f32 0.0, %v909
      %v911 = vpop.f32.mrf.mxu0
      %v912 = vpop.f32.mrf.mxu0
      %v913 = vadd.f32 0.0, %v912
      %v914 = vpop.f32.mrf.mxu0
      %915 = vmatprep.mubr.bf16.mxu0 0
      %916 = vmatmul.mubr.bf16.gmra.mxu0 %v854
      %v917 = vpop.f32.mrf.mxu0
      %v918 = vadd.f32 0.0, %v917
      %v919 = vpop.f32.mrf.mxu0
      %v920 = vpop.f32.mrf.mxu0
      %v921 = vadd.f32 0.0, %v920
      %v922 = vpop.f32.mrf.mxu0
      %923 = vdwg.mxu0
      %v924 = vadd.f32 %v822, %v894
      %v925 = vadd.f32 %v823, %v897
      %v926 = vadd.f32 %v824, %v902
      %v927 = vadd.f32 %v825, %v905
      %v928 = vadd.f32 %v826, %v910
      %v929 = vadd.f32 %v827, %v913
      %v930 = vadd.f32 %v828, %v918
      %v931 = vadd.f32 %v829, %v921
      %s932 = scalar_lea.vmem [#allocation2], 32
      %v933 = vld [vmem:[%s932] sm:$0xff]
      %v934 = vld [vmem:[%s932 + $0x10] sm:$0xff]
      %v935 = vld [vmem:[%s932 + $0x20] sm:$0xff]
      %v936 = vld [vmem:[%s932 + $0x30] sm:$0xff]
      %v937 = vld [vmem:[%s932 + $0x40] sm:$0xff]
      %v938 = vld [vmem:[%s932 + $0x50] sm:$0xff]
      %v939 = vld [vmem:[%s932 + $0x60] sm:$0xff]
      %v940 = vld [vmem:[%s932 + $0x70] sm:$0xff]
      %v941 = vpack.c.bf16 %v934, %v933
      %v942 = vpack.c.bf16 %v936, %v935
      %v943 = vpack.c.bf16 %v938, %v937
      %v944 = vpack.c.bf16 %v940, %v939
      %s945 = scalar_lea.vmem %s3, 24
      %v946 = vld [vmem:[%s945] sm:$0xf]
      %v948 = vsel %vm327, %v941, 0
      %v951 = vsel %vm327, %v942, 0
      %v954 = vsel %vm327, %v943, 0
      %v957 = vsel %vm327, %v944, 0
      %v960 = vsel %vm375, %v946, 0
      %962 = vmatprep.subr.bf16.mxu0 0
      %963 = vmatpush1.bf16.msra.mxu0 0
      %964 = vmatprep.subr.bf16.mxu0 0
      %965 = vmatpush1.bf16.msra.mxu0 0
      %966 = vmatprep.subr.bf16.mxu0 0
      %967 = vmatpush1.bf16.msra.mxu0 0
      %968 = vmatprep.subr.bf16.mxu0 0
      %969 = vmatpush1.bf16.msra.mxu0 0
      %970 = vmatprep.subr.bf16.mxu0 0
      %971 = vmatpush1.bf16.msra.mxu0 0
      %972 = vmatprep.subr.bf16.mxu0 0
      %973 = vmatpush1.bf16.msra.mxu0 0
      %974 = vmatprep.subr.bf16.mxu0 0
      %975 = vmatpush1.bf16.msra.mxu0 0
      %976 = vmatprep.subr.bf16.mxu0 0
      %977 = vmatpush1.bf16.msra.mxu0 %v960
      %978 = vmatprep.subr.bf16.mxu0 0
      %979 = vmatpush2.bf16.msra.mxu0 0
      %980 = vmatprep.subr.bf16.mxu0 0
      %981 = vmatpush2.bf16.msra.mxu0 0
      %982 = vmatprep.subr.bf16.mxu0 0
      %983 = vmatpush2.bf16.msra.mxu0 0
      %984 = vmatprep.subr.bf16.mxu0 0
      %985 = vmatpush2.bf16.msra.mxu0 0
      %986 = vmatprep.subr.bf16.mxu0 0
      %987 = vmatpush2.bf16.msra.mxu0 0
      %988 = vmatprep.subr.bf16.mxu0 0
      %989 = vmatpush2.bf16.msra.mxu0 0
      %990 = vmatprep.subr.bf16.mxu0 0
      %991 = vmatpush2.bf16.msra.mxu0 0
      %992 = vmatprep.subr.bf16.mxu0 0
      %993 = vmatpush2.bf16.msra.mxu0 0
      %994 = vmatprep.mubr.bf16.mxu0 0
      %995 = vmatmul.mubr.bf16.gmra.mxu0 %v948
      %v996 = vpop.f32.mrf.mxu0
      %v997 = vadd.f32 0.0, %v996
      %v998 = vpop.f32.mrf.mxu0
      %v999 = vpop.f32.mrf.mxu0
      %v1000 = vadd.f32 0.0, %v999
      %v1001 = vpop.f32.mrf.mxu0
      %1002 = vmatprep.mubr.bf16.mxu0 0
      %1003 = vmatmul.mubr.bf16.gmra.mxu0 %v951
      %v1004 = vpop.f32.mrf.mxu0
      %v1005 = vadd.f32 0.0, %v1004
      %v1006 = vpop.f32.mrf.mxu0
      %v1007 = vpop.f32.mrf.mxu0
      %v1008 = vadd.f32 0.0, %v1007
      %v1009 = vpop.f32.mrf.mxu0
      %1010 = vmatprep.mubr.bf16.mxu0 0
      %1011 = vmatmul.mubr.bf16.gmra.mxu0 %v954
      %v1012 = vpop.f32.mrf.mxu0
      %v1013 = vadd.f32 0.0, %v1012
      %v1014 = vpop.f32.mrf.mxu0
      %v1015 = vpop.f32.mrf.mxu0
      %v1016 = vadd.f32 0.0, %v1015
      %v1017 = vpop.f32.mrf.mxu0
      %1018 = vmatprep.mubr.bf16.mxu0 0
      %1019 = vmatmul.mubr.bf16.gmra.mxu0 %v957
      %v1020 = vpop.f32.mrf.mxu0
      %v1021 = vadd.f32 0.0, %v1020
      %v1022 = vpop.f32.mrf.mxu0
      %v1023 = vpop.f32.mrf.mxu0
      %v1024 = vadd.f32 0.0, %v1023
      %v1025 = vpop.f32.mrf.mxu0
      %1026 = vdwg.mxu0
      %v1027 = vadd.f32 %v924, %v997
      %v1028 = vadd.f32 %v925, %v1000
      %v1029 = vadd.f32 %v926, %v1005
      %v1030 = vadd.f32 %v927, %v1008
      %v1031 = vadd.f32 %v928, %v1013
      %v1032 = vadd.f32 %v929, %v1016
      %v1033 = vadd.f32 %v930, %v1021
      %v1034 = vadd.f32 %v931, %v1024
      %v1035 = vld [vmem:[%s932 + $0x1] sm:$0xff]
      %v1036 = vld [vmem:[%s932 + $0x11] sm:$0xff]
      %v1037 = vld [vmem:[%s932 + $0x21] sm:$0xff]
      %v1038 = vld [vmem:[%s932 + $0x31] sm:$0xff]
      %v1039 = vld [vmem:[%s932 + $0x41] sm:$0xff]
      %v1040 = vld [vmem:[%s932 + $0x51] sm:$0xff]
      %v1041 = vld [vmem:[%s932 + $0x61] sm:$0xff]
      %v1042 = vld [vmem:[%s932 + $0x71] sm:$0xff]
      %v1043 = vpack.c.bf16 %v1036, %v1035
      %v1044 = vpack.c.bf16 %v1038, %v1037
      %v1045 = vpack.c.bf16 %v1040, %v1039
      %v1046 = vpack.c.bf16 %v1042, %v1041
      %s1047 = scalar_lea.vmem %s3, 28
      %v1048 = vld [vmem:[%s1047] sm:$0xf]
      %v1050 = vsel %vm327, %v1043, 0
      %v1053 = vsel %vm327, %v1044, 0
      %v1056 = vsel %vm327, %v1045, 0
      %v1059 = vsel %vm327, %v1046, 0
      %v1062 = vsel %vm375, %v1048, 0
      %1064 = vmatprep.subr.bf16.mxu0 0
      %1065 = vmatpush1.bf16.msra.mxu0 0
      %1066 = vmatprep.subr.bf16.mxu0 0
      %1067 = vmatpush1.bf16.msra.mxu0 0
      %1068 = vmatprep.subr.bf16.mxu0 0
      %1069 = vmatpush1.bf16.msra.mxu0 0
      %1070 = vmatprep.subr.bf16.mxu0 0
      %1071 = vmatpush1.bf16.msra.mxu0 0
      %1072 = vmatprep.subr.bf16.mxu0 0
      %1073 = vmatpush1.bf16.msra.mxu0 0
      %1074 = vmatprep.subr.bf16.mxu0 0
      %1075 = vmatpush1.bf16.msra.mxu0 0
      %1076 = vmatprep.subr.bf16.mxu0 0
      %1077 = vmatpush1.bf16.msra.mxu0 0
      %1078 = vmatprep.subr.bf16.mxu0 0
      %1079 = vmatpush1.bf16.msra.mxu0 %v1062
      %1080 = vmatprep.subr.bf16.mxu0 0
      %1081 = vmatpush2.bf16.msra.mxu0 0
      %1082 = vmatprep.subr.bf16.mxu0 0
      %1083 = vmatpush2.bf16.msra.mxu0 0
      %1084 = vmatprep.subr.bf16.mxu0 0
      %1085 = vmatpush2.bf16.msra.mxu0 0
      %1086 = vmatprep.subr.bf16.mxu0 0
      %1087 = vmatpush2.bf16.msra.mxu0 0
      %1088 = vmatprep.subr.bf16.mxu0 0
      %1089 = vmatpush2.bf16.msra.mxu0 0
      %1090 = vmatprep.subr.bf16.mxu0 0
      %1091 = vmatpush2.bf16.msra.mxu0 0
      %1092 = vmatprep.subr.bf16.mxu0 0
      %1093 = vmatpush2.bf16.msra.mxu0 0
      %1094 = vmatprep.subr.bf16.mxu0 0
      %1095 = vmatpush2.bf16.msra.mxu0 0
      %1096 = vmatprep.mubr.bf16.mxu0 0
      %1097 = vmatmul.mubr.bf16.gmra.mxu0 %v1050
      %v1098 = vpop.f32.mrf.mxu0
      %v1099 = vadd.f32 0.0, %v1098
      %v1100 = vpop.f32.mrf.mxu0
      %v1101 = vpop.f32.mrf.mxu0
      %v1102 = vadd.f32 0.0, %v1101
      %v1103 = vpop.f32.mrf.mxu0
      %1104 = vmatprep.mubr.bf16.mxu0 0
      %1105 = vmatmul.mubr.bf16.gmra.mxu0 %v1053
      %v1106 = vpop.f32.mrf.mxu0
      %v1107 = vadd.f32 0.0, %v1106
      %v1108 = vpop.f32.mrf.mxu0
      %v1109 = vpop.f32.mrf.mxu0
      %v1110 = vadd.f32 0.0, %v1109
      %v1111 = vpop.f32.mrf.mxu0
      %1112 = vmatprep.mubr.bf16.mxu0 0
      %1113 = vmatmul.mubr.bf16.gmra.mxu0 %v1056
      %v1114 = vpop.f32.mrf.mxu0
      %v1115 = vadd.f32 0.0, %v1114
      %v1116 = vpop.f32.mrf.mxu0
      %v1117 = vpop.f32.mrf.mxu0
      %v1118 = vadd.f32 0.0, %v1117
      %v1119 = vpop.f32.mrf.mxu0
      %1120 = vmatprep.mubr.bf16.mxu0 0
      %1121 = vmatmul.mubr.bf16.gmra.mxu0 %v1059
      %v1122 = vpop.f32.mrf.mxu0
      %v1123 = vadd.f32 0.0, %v1122
      %v1124 = vpop.f32.mrf.mxu0
      %v1125 = vpop.f32.mrf.mxu0
      %v1126 = vadd.f32 0.0, %v1125
      %v1127 = vpop.f32.mrf.mxu0
      %1128 = vdwg.mxu0
      %v1129 = vadd.f32 %v1027, %v1099
      %v1130 = vadd.f32 %v1028, %v1102
      %v1131 = vadd.f32 %v1029, %v1107
      %v1132 = vadd.f32 %v1030, %v1110
      %v1133 = vadd.f32 %v1031, %v1115
      %v1134 = vadd.f32 %v1032, %v1118
      %v1135 = vadd.f32 %v1033, %v1123
      %v1136 = vadd.f32 %v1034, %v1126
      %v1137 = vld [vmem:[%s932 + $0x2] sm:$0xff]
      %v1138 = vld [vmem:[%s932 + $0x12] sm:$0xff]
      %v1139 = vld [vmem:[%s932 + $0x22] sm:$0xff]
      %v1140 = vld [vmem:[%s932 + $0x32] sm:$0xff]
      %v1141 = vld [vmem:[%s932 + $0x42] sm:$0xff]
      %v1142 = vld [vmem:[%s932 + $0x52] sm:$0xff]
      %v1143 = vld [vmem:[%s932 + $0x62] sm:$0xff]
      %v1144 = vld [vmem:[%s932 + $0x72] sm:$0xff]
      %v1145 = vpack.c.bf16 %v1138, %v1137
      %v1146 = vpack.c.bf16 %v1140, %v1139
      %v1147 = vpack.c.bf16 %v1142, %v1141
      %v1148 = vpack.c.bf16 %v1144, %v1143
      %s1149 = scalar_lea.vmem %s3, 32
      %v1150 = vld [vmem:[%s1149] sm:$0xf]
      %v1152 = vsel %vm327, %v1145, 0
      %v1155 = vsel %vm327, %v1146, 0
      %v1158 = vsel %vm327, %v1147, 0
      %v1161 = vsel %vm327, %v1148, 0
      %v1164 = vsel %vm375, %v1150, 0
      %1166 = vmatprep.subr.bf16.mxu0 0
      %1167 = vmatpush1.bf16.msra.mxu0 0
      %1168 = vmatprep.subr.bf16.mxu0 0
      %1169 = vmatpush1.bf16.msra.mxu0 0
      %1170 = vmatprep.subr.bf16.mxu0 0
      %1171 = vmatpush1.bf16.msra.mxu0 0
      %1172 = vmatprep.subr.bf16.mxu0 0
      %1173 = vmatpush1.bf16.msra.mxu0 0
      %1174 = vmatprep.subr.bf16.mxu0 0
      %1175 = vmatpush1.bf16.msra.mxu0 0
      %1176 = vmatprep.subr.bf16.mxu0 0
      %1177 = vmatpush1.bf16.msra.mxu0 0
      %1178 = vmatprep.subr.bf16.mxu0 0
      %1179 = vmatpush1.bf16.msra.mxu0 0
      %1180 = vmatprep.subr.bf16.mxu0 0
      %1181 = vmatpush1.bf16.msra.mxu0 %v1164
      %1182 = vmatprep.subr.bf16.mxu0 0
      %1183 = vmatpush2.bf16.msra.mxu0 0
      %1184 = vmatprep.subr.bf16.mxu0 0
      %1185 = vmatpush2.bf16.msra.mxu0 0
      %1186 = vmatprep.subr.bf16.mxu0 0
      %1187 = vmatpush2.bf16.msra.mxu0 0
      %1188 = vmatprep.subr.bf16.mxu0 0
      %1189 = vmatpush2.bf16.msra.mxu0 0
      %1190 = vmatprep.subr.bf16.mxu0 0
      %1191 = vmatpush2.bf16.msra.mxu0 0
      %1192 = vmatprep.subr.bf16.mxu0 0
      %1193 = vmatpush2.bf16.msra.mxu0 0
      %1194 = vmatprep.subr.bf16.mxu0 0
      %1195 = vmatpush2.bf16.msra.mxu0 0
      %1196 = vmatprep.subr.bf16.mxu0 0
      %1197 = vmatpush2.bf16.msra.mxu0 0
      %1198 = vmatprep.mubr.bf16.mxu0 0
      %1199 = vmatmul.mubr.bf16.gmra.mxu0 %v1152
      %v1200 = vpop.f32.mrf.mxu0
      %v1201 = vadd.f32 0.0, %v1200
      %v1202 = vpop.f32.mrf.mxu0
      %v1203 = vpop.f32.mrf.mxu0
      %v1204 = vadd.f32 0.0, %v1203
      %v1205 = vpop.f32.mrf.mxu0
      %1206 = vmatprep.mubr.bf16.mxu0 0
      %1207 = vmatmul.mubr.bf16.gmra.mxu0 %v1155
      %v1208 = vpop.f32.mrf.mxu0
      %v1209 = vadd.f32 0.0, %v1208
      %v1210 = vpop.f32.mrf.mxu0
      %v1211 = vpop.f32.mrf.mxu0
      %v1212 = vadd.f32 0.0, %v1211
      %v1213 = vpop.f32.mrf.mxu0
      %1214 = vmatprep.mubr.bf16.mxu0 0
      %1215 = vmatmul.mubr.bf16.gmra.mxu0 %v1158
      %v1216 = vpop.f32.mrf.mxu0
      %v1217 = vadd.f32 0.0, %v1216
      %v1218 = vpop.f32.mrf.mxu0
      %v1219 = vpop.f32.mrf.mxu0
      %v1220 = vadd.f32 0.0, %v1219
      %v1221 = vpop.f32.mrf.mxu0
      %1222 = vmatprep.mubr.bf16.mxu0 0
      %1223 = vmatmul.mubr.bf16.gmra.mxu0 %v1161
      %v1224 = vpop.f32.mrf.mxu0
      %v1225 = vadd.f32 0.0, %v1224
      %v1226 = vpop.f32.mrf.mxu0
      %v1227 = vpop.f32.mrf.mxu0
      %v1228 = vadd.f32 0.0, %v1227
      %v1229 = vpop.f32.mrf.mxu0
      %1230 = vdwg.mxu0
      %v1231 = vadd.f32 %v1129, %v1201
      %v1232 = vadd.f32 %v1130, %v1204
      %v1233 = vadd.f32 %v1131, %v1209
      %v1234 = vadd.f32 %v1132, %v1212
      %v1235 = vadd.f32 %v1133, %v1217
      %v1236 = vadd.f32 %v1134, %v1220
      %v1237 = vadd.f32 %v1135, %v1225
      %v1238 = vadd.f32 %v1136, %v1228
      %v1239 = vld [vmem:[%s4] sm:$0x1]
      %v1241 = vlaneseq
      %v1242 = vshrl.u32 %v1241, 7
      %v1243 = vsub.s32 0, %v1242
      %v1244 = vrot.slane %v1239, %v1243
      %v1246 = vadd.f32 %v1231, %v1244
      %v1247 = vadd.f32 %v1232, %v1244
      %v1248 = vadd.f32 %v1233, %v1244
      %v1249 = vadd.f32 %v1234, %v1244
      %v1250 = vadd.f32 %v1235, %v1244
      %v1251 = vadd.f32 %v1236, %v1244
      %v1252 = vadd.f32 %v1237, %v1244
      %v1253 = vadd.f32 %v1238, %v1244
      %1254 = vst.msk [vmem:[%s249] sm:$0xff] %vm327, %v1246
      %1255 = vst.msk [vmem:[%s249 + $0x8] sm:$0xff] %vm327, %v1247
      %1256 = vst.msk [vmem:[%s249 + $0x10] sm:$0xff] %vm327, %v1248
      %1257 = vst.msk [vmem:[%s249 + $0x18] sm:$0xff] %vm327, %v1249
      %1258 = vst.msk [vmem:[%s249 + $0x20] sm:$0xff] %vm327, %v1250
      %1259 = vst.msk [vmem:[%s249 + $0x28] sm:$0xff] %vm327, %v1251
      %1260 = vst.msk [vmem:[%s249 + $0x30] sm:$0xff] %vm327, %v1252
      %1261 = vst.msk [vmem:[%s249 + $0x38] sm:$0xff] %vm327, %v1253
      %v1262 = vsel %vm327, %v1246, 0.0
      %v1263 = vsel %vm327, %v1247, 0.0
      %v1264 = vadd.f32 %v1262, %v1263
      %v1265 = vsel %vm327, %v1248, 0.0
      %v1266 = vadd.f32 %v1264, %v1265
      %v1267 = vsel %vm327, %v1249, 0.0
      %v1268 = vadd.f32 %v1266, %v1267
      %v1269 = vsel %vm327, %v1250, 0.0
      %v1270 = vadd.f32 %v1268, %v1269
      %v1271 = vsel %vm327, %v1251, 0.0
      %v1272 = vadd.f32 %v1270, %v1271
      %v1273 = vsel %vm327, %v1252, 0.0
      %v1274 = vadd.f32 %v1272, %v1273
      %v1275 = vsel %vm327, %v1253, 0.0
      %v1276 = vadd.f32 %v1274, %v1275
      %v1277 = vrot.slane %v1276, 4
      %v1278 = vadd.f32 %v1276, %v1277
      %v1279 = vrot.slane %v1278, 2
      %v1280 = vadd.f32 %v1278, %v1279
      %v1281 = vrot.slane %v1280, 1
      %v1282 = vadd.f32 %v1280, %v1281
      %v1283 = vmul.f32 %v1282, 0.015625
      %v1284 = vsub.f32 %v1246, %v1283
      %v1285 = vsub.f32 %v1247, %v1283
      %v1286 = vsub.f32 %v1248, %v1283
      %v1287 = vsub.f32 %v1249, %v1283
      %v1288 = vsub.f32 %v1250, %v1283
      %v1289 = vsub.f32 %v1251, %v1283
      %v1290 = vsub.f32 %v1252, %v1283
      %v1291 = vsub.f32 %v1253, %v1283
      %v1292 = vmul.f32 %v1284, %v1284
      %v1293 = vmul.f32 %v1285, %v1285
      %v1294 = vmul.f32 %v1286, %v1286
      %v1295 = vmul.f32 %v1287, %v1287
      %v1296 = vmul.f32 %v1288, %v1288
      %v1297 = vmul.f32 %v1289, %v1289
      %v1298 = vmul.f32 %v1290, %v1290
      %v1299 = vmul.f32 %v1291, %v1291
      %v1300 = vsel %vm327, %v1292, 0.0
      %v1301 = vsel %vm327, %v1293, 0.0
      %v1302 = vadd.f32 %v1300, %v1301
      %v1303 = vsel %vm327, %v1294, 0.0
      %v1304 = vadd.f32 %v1302, %v1303
      %v1305 = vsel %vm327, %v1295, 0.0
      %v1306 = vadd.f32 %v1304, %v1305
      %v1307 = vsel %vm327, %v1296, 0.0
      %v1308 = vadd.f32 %v1306, %v1307
      %v1309 = vsel %vm327, %v1297, 0.0
      %v1310 = vadd.f32 %v1308, %v1309
      %v1311 = vsel %vm327, %v1298, 0.0
      %v1312 = vadd.f32 %v1310, %v1311
      %v1313 = vsel %vm327, %v1299, 0.0
      %v1314 = vadd.f32 %v1312, %v1313
      %v1315 = vrot.slane %v1314, 4
      %v1316 = vadd.f32 %v1314, %v1315
      %v1317 = vrot.slane %v1316, 2
      %v1318 = vadd.f32 %v1316, %v1317
      %v1319 = vrot.slane %v1318, 1
      %v1320 = vadd.f32 %v1318, %v1319
      // Predicated region
      $region45: #{down_dc_forward.4} parent=39 // pred_check
        %p1321 = pneg %p251
      $region46: #{down_dc_forward.4} parent=39 // pred_check_branch
        %1323 = sbr.rel (%p1321) target = $region48
      $region47: #{down_dc_forward.4} parent=39 // pred_region
        %vm1324 = vcmask 57344
        %1325 = vst.msk [vmem:[%s6] sm:$0x1] %vm1324, %v1283
        %1326 = vst.msk [vmem:[%s6 + $0x1] sm:$0x1] %vm1324, %v1320
      $region48: #{down_dc_forward.4} parent=39 // pred_fallthru
        _
      %p1327 = scmp.gt.s32.totalorder %s18, 0
      // Predicated region
      $region49: #{down_dc_forward.4} parent=39 // pred_check
        %p1328 = pneg %p1327
      $region50: #{down_dc_forward.4} parent=39 // pred_check_branch
        %1330 = sbr.rel (%p1328) target = $region52
      $region51: #{down_dc_forward.4} parent=39 // pred_region
        %s1331 = scvt.s32.f32 %s18
        %s1332 = smul.f32 %s1331, 64.0
        %v1333 = vld [vmem:[%s6] sm:$0x1]
        %v1334 = vld [vmem:[%s6 + $0x1] sm:$0x1]
        %v1335 = vsub.f32 %v1283, %v1333
        %s1336 = sadd.f32 %s1332, 64.0
        %v1337 = vstv %s1336
        %v1338 = vrcp.pop %v1337
        %s1339 = vtos %v1338
        %s1340 = smul.f32 64.0, %s1339
        %v1341 = vstv %s1340
        %v1342 = vmul.f32 %v1335, %v1341
        %v1343 = vadd.f32 %v1333, %v1342
        %vm1344 = vcmask 57344
        %1345 = vst.msk [vmem:[%s6] sm:$0x1] %vm1344, %v1343
        %v1346 = vadd.f32 %v1334, %v1320
        %v1347 = vmul.f32 %v1335, %v1335
        %s1348 = smul.f32 %s1332, %s1340
        %v1349 = vstv %s1348
        %v1350 = vmul.f32 %v1347, %v1349
        %v1351 = vadd.f32 %v1346, %v1350
        %1352 = vst.msk [vmem:[%s6 + $0x1] sm:$0x1] %vm1344, %v1351
      $region52: #{down_dc_forward.4} parent=39 // pred_fallthru
        _
      %p1353 = scmp.lt.s32.totalorder %s18, 1
      %s1354 = scalar_select %p1353, %s18, 1
      %s1355 = smul.addr %s1354, 8
      %s1356 = smul.addr %s1355, 8
      %s1357 = scalar_lea.vmem %s5, %s1356
      // Predicated region
      $region53: #{down_dc_forward.4} parent=39 // pred_check
        %p1358 = pneg %p146
      $region54: #{down_dc_forward.4} parent=39 // pred_check_branch
        %1360 = sbr.rel (%p1358) target = $region56
      $region55: #{down_dc_forward.4} parent=39 // pred_region
        _
      $region56: #{down_dc_forward.4} parent=39 // pred_fallthru
        _
      // Predicated region
      $region57: #{down_dc_forward.4} parent=39 // pred_check
        %p1361 = pneg %p167
      $region58: #{down_dc_forward.4} parent=39 // pred_check_branch
        %1363 = sbr.rel (%p1361) target = $region60
      $region59: #{down_dc_forward.4} parent=39 // pred_region
        _
      $region60: #{down_dc_forward.4} parent=39 // pred_fallthru
        _
      // Predicated region
      $region61: #{down_dc_forward.4} parent=39 // pred_check
        %p1364 = pneg %p167
      $region62: #{down_dc_forward.4} parent=39 // pred_check_branch
        %1366 = sbr.rel (%p1364) target = $region64
      $region63: #{down_dc_forward.4} parent=39 // pred_region
        _
      $region64: #{down_dc_forward.4} parent=39 // pred_fallthru
        _
    $region40: #{down_dc_forward.4} parent=5 // pred_fallthru
      _
    %p1367 = scmp.le.s32.totalorder 2, %s13
    // Predicated region
    $region65: #{down_dc_forward.4} parent=5 // pred_check
      %p1368 = pneg %p1367
    $region66: #{down_dc_forward.4} parent=5 // pred_check_branch
      %1370 = sbr.rel (%p1368) target = $region68
    $region67: #{down_dc_forward.4} parent=5 // pred_region
      %s1371 = ssub.s32 %s13, 2
      // Predicated region
      $region69: #{down_dc_forward.4} parent=67 // pred_check
        %p1372 = pneg %p152
      $region70: #{down_dc_forward.4} parent=67 // pred_check_branch
        %1374 = sbr.rel (%p1372) target = $region72
      $region71: #{down_dc_forward.4} parent=67 // pred_region
        %p1375 = scmp.lt.s32.totalorder %s19, 1
        %s1376 = scalar_select %p1375, %s19, 1
        %s1377 = smul.addr %s1376, 8
        %s1378 = smul.addr %s1377, 8
        %s1379 = scalar_lea.vmem %s5, %s1378
      $region72: #{down_dc_forward.4} parent=67 // pred_fallthru
        _
    $region68: #{down_dc_forward.4} parent=5 // pred_fallthru
      _
  $region6: #{down_dc_forward.4} parent=0 // loop_footer
    %s17 = sadd.s32 1, %s13
  $region7: #{down_dc_forward.4} parent=0 // loop_footer_branch
    %12 = sbr.rel target = $region3
  $region8: #{down_dc_forward.4} parent=0 // loop_exit
    _

// kernel: down_dc_forward.3
$region0: #{down_dc_forward.3}
  #allocation0 [shape = 'u32[]', space=smem, size = 0x4, offset = 0x4, fixed_abs, tag = 'smem constant byte address 0x4 - core index']
  #allocation1 [shape = 'u32[144,128]{1,0:T(1,128)}', space=vmem, size = 0x12000, scoped, tag = 'internal scratch']
  #allocation2 [shape = 'f32[10,10,4]{2,1,0:T(8,128)}', space=vmem, size = 0x14000, scoped, tag = 'scratch operand']
  %s0 = inlined_call_operand.vmem [shape: f32[16,2,8,2,4], index: 0, kind: input, shape index: {}]
  %s1 = inlined_call_operand.vmem [shape: bf16[3,3,4,8], index: 1, kind: input, shape index: {}]
  %s2 = inlined_call_operand.vmem [shape: f32[1,8], index: 2, kind: input, shape index: {}]
  %s3 = inlined_call_operand.vmem [shape: f32[2,8,8,8], index: 3, kind: output, shape index: {0}]
  %s4 = inlined_call_operand.vmem [shape: f32[2,8], index: 4, kind: output, shape index: {1}]
  %5 = xla_tuple %s3, %s4
  %s6 = sld [smem:[#allocation0]]
  $region65: #{down_dc_forward.3} parent=0
    _
  %s8 = ssub.s32 1, %s6
  %s9 = scalar_select 0, %s8, %s6
  loop: start=0, step=1, limit=4
  $region2: #{down_dc_forward.3} parent=0 // loop_pre_header
    _
  $region3: #{down_dc_forward.3} parent=0 // loop_header
    %s11 = sphi 0, %s15
    %p12 = scmp.ge.s32.totalorder %s11, 4
    %s21 = sphi 0, %s23
    %s24 = sphi 0, %s21
    %s25 = sphi 0, %s24
    %s41 = sphi 0, %s25
    %s45 = sphi 0, %s45
    %s47 = sphi 0, %s45
    %s48 = sphi 0, %s47
    %s62 = sphi 0, %s48
    %s66 = sphi 0, %s66
    %s68 = sphi 0, %s66
    %s69 = sphi 0, %s68
    %s83 = sphi 0, %s69
    %s89 = sphi 0, %s91
    %s92 = sphi 0, %s89
    %s93 = sphi 0, %s92
    %s109 = sphi 0, %s93
    %s113 = sphi 0, %s113
    %s115 = sphi 0, %s113
    %s116 = sphi 0, %s115
    %s130 = sphi 0, %s116
  $region4: #{down_dc_forward.3} parent=0 // loop_header_branch
    %14 = sbr.rel (%p12) target = $region8
  $region5: #{down_dc_forward.3} parent=0 // loop_body
    %s16 = ssub.s32 %s11, 1
    %s17 = ssub.s32 %s11, 2
    %s18 = sadd.s32 %s11, 1
    %s19 = ssub.s32 %s11, %s18
    %p20 = scmp.eq.s32.totalorder %s19, 0
    %s22 = sadd.s32 %s21, 1
    %s23 = scalar_select %p20, %s21, %s22
    %p26 = pneg %p20
    %p27 = scmp.eq.s32.totalorder %s11, 1
    %p28 = por %p26, %p27
    %p29 = scmp.ne.s32.totalorder %s21, %s24
    %p30 = scmp.eq.s32.totalorder %s11, 0
    %p31 = por %p29, %p30
    %p32 = scmp.ne.s32.totalorder %s21, %s24
    %p33 = scmp.eq.s32.totalorder %s16, 1
    %p34 = por %p32, %p33
    %p35 = scmp.ne.s32.totalorder %s24, %s25
    %p36 = scmp.eq.s32.totalorder %s16, 0
    %p37 = por %p35, %p36
    %p38 = scmp.ne.s32.totalorder %s24, %s25
    %p39 = scmp.eq.s32.totalorder %s17, 1
    %p40 = por %p38, %p39
    %p42 = scmp.ne.s32.totalorder %s25, %s41
    %p43 = scmp.eq.s32.totalorder %s17, 0
    %p44 = por %p42, %p43
    %s46 = sadd.s32 %s45, 1
    %p49 = scmp.eq.s32.totalorder %s11, 1
    %p50 = scmp.ne.s32.totalorder %s45, %s47
    %p51 = scmp.eq.s32.totalorder %s11, 0
    %p52 = por %p50, %p51
    %p53 = scmp.ne.s32.totalorder %s45, %s47
    %p54 = scmp.eq.s32.totalorder %s16, 1
    %p55 = por %p53, %p54
    %p56 = scmp.ne.s32.totalorder %s47, %s48
    %p57 = scmp.eq.s32.totalorder %s16, 0
    %p58 = por %p56, %p57
    %p59 = scmp.ne.s32.totalorder %s47, %s48
    %p60 = scmp.eq.s32.totalorder %s17, 1
    %p61 = por %p59, %p60
    %p63 = scmp.ne.s32.totalorder %s48, %s62
    %p64 = scmp.eq.s32.totalorder %s17, 0
    %p65 = por %p63, %p64
    %s67 = sadd.s32 %s66, 1
    %p70 = scmp.eq.s32.totalorder %s11, 1
    %p71 = scmp.ne.s32.totalorder %s66, %s68
    %p72 = scmp.eq.s32.totalorder %s11, 0
    %p73 = por %p71, %p72
    %p74 = scmp.ne.s32.totalorder %s66, %s68
    %p75 = scmp.eq.s32.totalorder %s16, 1
    %p76 = por %p74, %p75
    %p77 = scmp.ne.s32.totalorder %s68, %s69
    %p78 = scmp.eq.s32.totalorder %s16, 0
    %p79 = por %p77, %p78
    %p80 = scmp.ne.s32.totalorder %s68, %s69
    %p81 = scmp.eq.s32.totalorder %s17, 1
    %p82 = por %p80, %p81
    %p84 = scmp.ne.s32.totalorder %s69, %s83
    %p85 = scmp.eq.s32.totalorder %s17, 0
    %p86 = por %p84, %p85
    %s87 = ssub.s32 %s11, %s18
    %p88 = scmp.eq.s32.totalorder %s87, 0
    %s90 = sadd.s32 %s89, 1
    %s91 = scalar_select %p88, %s89, %s90
    %p94 = pneg %p88
    %p95 = scmp.eq.s32.totalorder %s11, 1
    %p96 = por %p94, %p95
    %p97 = scmp.ne.s32.totalorder %s89, %s92
    %p98 = scmp.eq.s32.totalorder %s11, 0
    %p99 = por %p97, %p98
    %p100 = scmp.ne.s32.totalorder %s89, %s92
    %p101 = scmp.eq.s32.totalorder %s16, 1
    %p102 = por %p100, %p101
    %p103 = scmp.ne.s32.totalorder %s92, %s93
    %p104 = scmp.eq.s32.totalorder %s16, 0
    %p105 = por %p103, %p104
    %p106 = scmp.ne.s32.totalorder %s92, %s93
    %p107 = scmp.eq.s32.totalorder %s17, 1
    %p108 = por %p106, %p107
    %p110 = scmp.ne.s32.totalorder %s93, %s109
    %p111 = scmp.eq.s32.totalorder %s17, 0
    %p112 = por %p110, %p111
    %s114 = sadd.s32 %s113, 1
    %p117 = scmp.eq.s32.totalorder %s11, 1
    %p118 = scmp.ne.s32.totalorder %s113, %s115
    %p119 = scmp.eq.s32.totalorder %s11, 0
    %p120 = por %p118, %p119
    %p121 = scmp.ne.s32.totalorder %s113, %s115
    %p122 = scmp.eq.s32.totalorder %s16, 1
    %p123 = por %p121, %p122
    %p124 = scmp.ne.s32.totalorder %s115, %s116
    %p125 = scmp.eq.s32.totalorder %s16, 0
    %p126 = por %p124, %p125
    %p127 = scmp.ne.s32.totalorder %s115, %s116
    %p128 = scmp.eq.s32.totalorder %s17, 1
    %p129 = por %p127, %p128
    %p131 = scmp.ne.s32.totalorder %s116, %s130
    %p132 = scmp.eq.s32.totalorder %s17, 0
    %p133 = por %p131, %p132
    %p134 = scmp.le.s32.totalorder 1, %s11
    %p135 = scmp.lt.s32.totalorder %s11, 3
    %p136 = pnand %p134, %p135
    %p137 = pneg %p136
    // Predicated region
    $region9: #{down_dc_forward.3} parent=5 // pred_check
      _
    $region10: #{down_dc_forward.3} parent=5 // pred_check_branch
      %139 = sbr.rel (%p136) target = $region12
    $region11: #{down_dc_forward.3} parent=5 // pred_region
      %s140 = ssub.s32 %s11, 1
      // Predicated region
      $region13: #{down_dc_forward.3} parent=11 // pred_check
        %p141 = pneg %p58
      $region14: #{down_dc_forward.3} parent=11 // pred_check_branch
        %143 = sbr.rel (%p141) target = $region16
      $region15: #{down_dc_forward.3} parent=11 // pred_region
        _
      $region16: #{down_dc_forward.3} parent=11 // pred_fallthru
        _
      // Predicated region
      $region17: #{down_dc_forward.3} parent=11 // pred_check
        %p144 = pneg %p79
      $region18: #{down_dc_forward.3} parent=11 // pred_check_branch
        %146 = sbr.rel (%p144) target = $region20
      $region19: #{down_dc_forward.3} parent=11 // pred_region
        _
      $region20: #{down_dc_forward.3} parent=11 // pred_fallthru
        _
    $region12: #{down_dc_forward.3} parent=5 // pred_fallthru
      _
    %p147 = scmp.lt.s32.totalorder %s11, 2
    // Predicated region
    $region21: #{down_dc_forward.3} parent=5 // pred_check
      %p148 = pneg %p147
    $region22: #{down_dc_forward.3} parent=5 // pred_check_branch
      %150 = sbr.rel (%p148) target = $region24
    $region23: #{down_dc_forward.3} parent=5 // pred_region
      // Predicated region
      $region25: #{down_dc_forward.3} parent=23 // pred_check
        %p151 = pneg %p31
      $region26: #{down_dc_forward.3} parent=23 // pred_check_branch
        %153 = sbr.rel (%p151) target = $region28
      $region27: #{down_dc_forward.3} parent=23 // pred_region
        %s154 = smul.u32 8, %s11
        %p155 = scmp.lt.s32.totalorder %s154, 15
        %s156 = scalar_select %p155, %s154, 15
        %s157 = smul.addr %s156, 16
        %s158 = smul.addr %s157, 2
        %s159 = scalar_lea.vmem %s0, %s158
        %s160 = smul.u32 8, %s11
      $region28: #{down_dc_forward.3} parent=23 // pred_fallthru
        _
    $region24: #{down_dc_forward.3} parent=5 // pred_fallthru
      _
    %p161 = scmp.le.s32.totalorder 1, %s11
    %p162 = scmp.lt.s32.totalorder %s11, 3
    %p163 = pnand %p161, %p162
    %p164 = pneg %p163
    // Predicated region
    $region29: #{down_dc_forward.3} parent=5 // pred_check
      _
    $region30: #{down_dc_forward.3} parent=5 // pred_check_branch
      %166 = sbr.rel (%p163) target = $region32
    $region31: #{down_dc_forward.3} parent=5 // pred_region
      %s167 = ssub.s32 %s11, 1
      %s168 = smul.u32 8, %s16
      %p169 = scmp.lt.s32.totalorder %s168, 15
      %s170 = scalar_select %p169, %s168, 15
      %s171 = smul.addr %s170, 16
      %s172 = smul.addr %s171, 2
      %s173 = scalar_lea.vmem %s0, %s172
      %p174 = pneg %p37
      %p175 = pneg %p34
      %p176 = pneg %p58
      %p177 = pneg %p55
      %p178 = pneg %p79
      %p179 = pneg %p76
      %p180 = pneg %p105
      %p181 = pneg %p102
      %p182 = scmp.lt.s32.totalorder %s16, 1
      %s183 = scalar_select %p182, %s16, 1
      %s184 = smul.addr %s183, 8
      %s185 = smul.addr %s184, 8
      %s186 = scalar_lea.vmem %s3, %s185
      %p187 = pneg %p126
      %p188 = pneg %p123
      %s189 = smul.u32 8, %s16
      %p190 = scmp.lt.s32.totalorder %s189, 15
      %s191 = scalar_select %p190, %s189, 15
      %s192 = smul.addr %s191, 16
      %s193 = smul.addr %s192, 2
      %s194 = scalar_lea.vmem %s0, %s193
      %s195 = smul.u32 8, %s16
      %p196 = scmp.lt.s32.totalorder %s16, 1
      %s197 = scalar_select %p196, %s16, 1
      %s198 = smul.addr %s197, 8
      %s199 = smul.addr %s198, 8
      %s200 = scalar_lea.vmem %s3, %s199
      %p202 = scmp.eq.s32.totalorder %s16, 0
      // Predicated region
      $region33: #{down_dc_forward.3} parent=31 // pred_check
        %p203 = pneg %p202
      $region34: #{down_dc_forward.3} parent=31 // pred_check_branch
        %205 = sbr.rel (%p203) target = $region36
      $region35: #{down_dc_forward.3} parent=31 // pred_region
        %vm206 = vcmask 31744
        %207 = vst.msk [vmem:[#allocation2] sm:$0xff] %vm206, 0.0
        %vm208 = vcmask 25600
        %209 = vst.msk [vmem:[#allocation2 + $0x8] sm:$0x3] %vm208, 0.0
        %s210 = scalar_lea.vmem [#allocation2], 144
        %211 = vst.msk [vmem:[%s210] sm:$0xff] %vm206, 0.0
        %212 = vst.msk [vmem:[%s210 + $0x8] sm:$0x3] %vm208, 0.0
        %s213 = scalar_lea.vmem [#allocation2], 16
        %vm214 = vcmask 24576
        %215 = vst.msk [vmem:[%s213] sm:$0x1] %vm214, 0.0
        %216 = vst.msk [vmem:[%s213 + $0x10] sm:$0x1] %vm214, 0.0
        %217 = vst.msk [vmem:[%s213 + $0x20] sm:$0x1] %vm214, 0.0
        %218 = vst.msk [vmem:[%s213 + $0x30] sm:$0x1] %vm214, 0.0
        %219 = vst.msk [vmem:[%s213 + $0x40] sm:$0x1] %vm214, 0.0
        %220 = vst.msk [vmem:[%s213 + $0x50] sm:$0x1] %vm214, 0.0
        %221 = vst.msk [vmem:[%s213 + $0x60] sm:$0x1] %vm214, 0.0
        %222 = vst.msk [vmem:[%s213 + $0x70] sm:$0x1] %vm214, 0.0
        %223 = vst.msk [vmem:[%s213 + $0x9] sm:$0x1] %vm214, 0.0
        %224 = vst.msk [vmem:[%s213 + $0x19] sm:$0x1] %vm214, 0.0
        %225 = vst.msk [vmem:[%s213 + $0x29] sm:$0x1] %vm214, 0.0
        %226 = vst.msk [vmem:[%s213 + $0x39] sm:$0x1] %vm214, 0.0
        %227 = vst.msk [vmem:[%s213 + $0x49] sm:$0x1] %vm214, 0.0
        %228 = vst.msk [vmem:[%s213 + $0x59] sm:$0x1] %vm214, 0.0
        %229 = vst.msk [vmem:[%s213 + $0x69] sm:$0x1] %vm214, 0.0
        %230 = vst.msk [vmem:[%s213 + $0x79] sm:$0x1] %vm214, 0.0
      $region36: #{down_dc_forward.3} parent=31 // pred_fallthru
        _
      %v231 = vld [vmem:[%s194] sm:$0x1]
      %v232 = vld [vmem:[%s194 + $0x2] sm:$0x1]
      %v233 = vld [vmem:[%s194 + $0x4] sm:$0x1]
      %v234 = vld [vmem:[%s194 + $0x6] sm:$0x1]
      %v235 = vld [vmem:[%s194 + $0x8] sm:$0x1]
      %v236 = vld [vmem:[%s194 + $0xa] sm:$0x1]
      %v237 = vld [vmem:[%s194 + $0xc] sm:$0x1]
      %v238 = vld [vmem:[%s194 + $0xe] sm:$0x1]
      %v239 = vld [vmem:[%s194 + $0x20] sm:$0x1]
      %v240 = vld [vmem:[%s194 + $0x22] sm:$0x1]
      %v241 = vld [vmem:[%s194 + $0x24] sm:$0x1]
      %v242 = vld [vmem:[%s194 + $0x26] sm:$0x1]
      %v243 = vld [vmem:[%s194 + $0x28] sm:$0x1]
      %v244 = vld [vmem:[%s194 + $0x2a] sm:$0x1]
      %v245 = vld [vmem:[%s194 + $0x2c] sm:$0x1]
      %v246 = vld [vmem:[%s194 + $0x2e] sm:$0x1]
      %v247 = vld [vmem:[%s194 + $0x40] sm:$0x1]
      %v248 = vld [vmem:[%s194 + $0x42] sm:$0x1]
      %v249 = vld [vmem:[%s194 + $0x44] sm:$0x1]
      %v250 = vld [vmem:[%s194 + $0x46] sm:$0x1]
      %v251 = vld [vmem:[%s194 + $0x48] sm:$0x1]
      %v252 = vld [vmem:[%s194 + $0x4a] sm:$0x1]
      %v253 = vld [vmem:[%s194 + $0x4c] sm:$0x1]
      %v254 = vld [vmem:[%s194 + $0x4e] sm:$0x1]
      %v255 = vld [vmem:[%s194 + $0x60] sm:$0x1]
      %v256 = vld [vmem:[%s194 + $0x62] sm:$0x1]
      %v257 = vld [vmem:[%s194 + $0x64] sm:$0x1]
      %v258 = vld [vmem:[%s194 + $0x66] sm:$0x1]
      %v259 = vld [vmem:[%s194 + $0x68] sm:$0x1]
      %v260 = vld [vmem:[%s194 + $0x6a] sm:$0x1]
      %v261 = vld [vmem:[%s194 + $0x6c] sm:$0x1]
      %v262 = vld [vmem:[%s194 + $0x6e] sm:$0x1]
      %v263 = vld [vmem:[%s194 + $0x80] sm:$0x1]
      %v264 = vld [vmem:[%s194 + $0x82] sm:$0x1]
      %v265 = vld [vmem:[%s194 + $0x84] sm:$0x1]
      %v266 = vld [vmem:[%s194 + $0x86] sm:$0x1]
      %v267 = vld [vmem:[%s194 + $0x88] sm:$0x1]
      %v268 = vld [vmem:[%s194 + $0x8a] sm:$0x1]
      %v269 = vld [vmem:[%s194 + $0x8c] sm:$0x1]
      %v270 = vld [vmem:[%s194 + $0x8e] sm:$0x1]
      %v271 = vld [vmem:[%s194 + $0xa0] sm:$0x1]
      %v272 = vld [vmem:[%s194 + $0xa2] sm:$0x1]
      %v273 = vld [vmem:[%s194 + $0xa4] sm:$0x1]
      %v274 = vld [vmem:[%s194 + $0xa6] sm:$0x1]
      %v275 = vld [vmem:[%s194 + $0xa8] sm:$0x1]
      %v276 = vld [vmem:[%s194 + $0xaa] sm:$0x1]
      %v277 = vld [vmem:[%s194 + $0xac] sm:$0x1]
      %v278 = vld [vmem:[%s194 + $0xae] sm:$0x1]
      %v279 = vld [vmem:[%s194 + $0xc0] sm:$0x1]
      %v280 = vld [vmem:[%s194 + $0xc2] sm:$0x1]
      %v281 = vld [vmem:[%s194 + $0xc4] sm:$0x1]
      %v282 = vld [vmem:[%s194 + $0xc6] sm:$0x1]
      %v283 = vld [vmem:[%s194 + $0xc8] sm:$0x1]
      %v284 = vld [vmem:[%s194 + $0xca] sm:$0x1]
      %v285 = vld [vmem:[%s194 + $0xcc] sm:$0x1]
      %v286 = vld [vmem:[%s194 + $0xce] sm:$0x1]
      %v287 = vld [vmem:[%s194 + $0xe0] sm:$0x1]
      %v288 = vld [vmem:[%s194 + $0xe2] sm:$0x1]
      %v289 = vld [vmem:[%s194 + $0xe4] sm:$0x1]
      %v290 = vld [vmem:[%s194 + $0xe6] sm:$0x1]
      %v291 = vld [vmem:[%s194 + $0xe8] sm:$0x1]
      %v292 = vld [vmem:[%s194 + $0xea] sm:$0x1]
      %v293 = vld [vmem:[%s194 + $0xec] sm:$0x1]
      %v294 = vld [vmem:[%s194 + $0xee] sm:$0x1]
      %v295 = vld [vmem:[%s194 + $0x1] sm:$0x1]
      %v296 = vld [vmem:[%s194 + $0x3] sm:$0x1]
      %v297 = vld [vmem:[%s194 + $0x5] sm:$0x1]
      %v298 = vld [vmem:[%s194 + $0x7] sm:$0x1]
      %v299 = vld [vmem:[%s194 + $0x9] sm:$0x1]
      %v300 = vld [vmem:[%s194 + $0xb] sm:$0x1]
      %v301 = vld [vmem:[%s194 + $0xd] sm:$0x1]
      %v302 = vld [vmem:[%s194 + $0xf] sm:$0x1]
      %v303 = vld [vmem:[%s194 + $0x21] sm:$0x1]
      %v304 = vld [vmem:[%s194 + $0x23] sm:$0x1]
      %v305 = vld [vmem:[%s194 + $0x25] sm:$0x1]
      %v306 = vld [vmem:[%s194 + $0x27] sm:$0x1]
      %v307 = vld [vmem:[%s194 + $0x29] sm:$0x1]
      %v308 = vld [vmem:[%s194 + $0x2b] sm:$0x1]
      %v309 = vld [vmem:[%s194 + $0x2d] sm:$0x1]
      %v310 = vld [vmem:[%s194 + $0x2f] sm:$0x1]
      %v311 = vld [vmem:[%s194 + $0x41] sm:$0x1]
      %v312 = vld [vmem:[%s194 + $0x43] sm:$0x1]
      %v313 = vld [vmem:[%s194 + $0x45] sm:$0x1]
      %v314 = vld [vmem:[%s194 + $0x47] sm:$0x1]
      %v315 = vld [vmem:[%s194 + $0x49] sm:$0x1]
      %v316 = vld [vmem:[%s194 + $0x4b] sm:$0x1]
      %v317 = vld [vmem:[%s194 + $0x4d] sm:$0x1]
      %v318 = vld [vmem:[%s194 + $0x4f] sm:$0x1]
      %v319 = vld [vmem:[%s194 + $0x61] sm:$0x1]
      %v320 = vld [vmem:[%s194 + $0x63] sm:$0x1]
      %v321 = vld [vmem:[%s194 + $0x65] sm:$0x1]
      %v322 = vld [vmem:[%s194 + $0x67] sm:$0x1]
      %v323 = vld [vmem:[%s194 + $0x69] sm:$0x1]
      %v324 = vld [vmem:[%s194 + $0x6b] sm:$0x1]
      %v325 = vld [vmem:[%s194 + $0x6d] sm:$0x1]
      %v326 = vld [vmem:[%s194 + $0x6f] sm:$0x1]
      %v327 = vld [vmem:[%s194 + $0x81] sm:$0x1]
      %v328 = vld [vmem:[%s194 + $0x83] sm:$0x1]
      %v329 = vld [vmem:[%s194 + $0x85] sm:$0x1]
      %v330 = vld [vmem:[%s194 + $0x87] sm:$0x1]
      %v331 = vld [vmem:[%s194 + $0x89] sm:$0x1]
      %v332 = vld [vmem:[%s194 + $0x8b] sm:$0x1]
      %v333 = vld [vmem:[%s194 + $0x8d] sm:$0x1]
      %v334 = vld [vmem:[%s194 + $0x8f] sm:$0x1]
      %v335 = vld [vmem:[%s194 + $0xa1] sm:$0x1]
      %v336 = vld [vmem:[%s194 + $0xa3] sm:$0x1]
      %v337 = vld [vmem:[%s194 + $0xa5] sm:$0x1]
      %v338 = vld [vmem:[%s194 + $0xa7] sm:$0x1]
      %v339 = vld [vmem:[%s194 + $0xa9] sm:$0x1]
      %v340 = vld [vmem:[%s194 + $0xab] sm:$0x1]
      %v341 = vld [vmem:[%s194 + $0xad] sm:$0x1]
      %v342 = vld [vmem:[%s194 + $0xaf] sm:$0x1]
      %v343 = vld [vmem:[%s194 + $0xc1] sm:$0x1]
      %v344 = vld [vmem:[%s194 + $0xc3] sm:$0x1]
      %v345 = vld [vmem:[%s194 + $0xc5] sm:$0x1]
      %v346 = vld [vmem:[%s194 + $0xc7] sm:$0x1]
      %v347 = vld [vmem:[%s194 + $0xc9] sm:$0x1]
      %v348 = vld [vmem:[%s194 + $0xcb] sm:$0x1]
      %v349 = vld [vmem:[%s194 + $0xcd] sm:$0x1]
      %v350 = vld [vmem:[%s194 + $0xcf] sm:$0x1]
      %v351 = vld [vmem:[%s194 + $0xe1] sm:$0x1]
      %v352 = vld [vmem:[%s194 + $0xe3] sm:$0x1]
      %v353 = vld [vmem:[%s194 + $0xe5] sm:$0x1]
      %v354 = vld [vmem:[%s194 + $0xe7] sm:$0x1]
      %v355 = vld [vmem:[%s194 + $0xe9] sm:$0x1]
      %v356 = vld [vmem:[%s194 + $0xeb] sm:$0x1]
      %v357 = vld [vmem:[%s194 + $0xed] sm:$0x1]
      %v358 = vld [vmem:[%s194 + $0xef] sm:$0x1]
      %s359 = scalar_lea.vmem %s194, 16
      %v360 = vld [vmem:[%s359] sm:$0x1]
      %v361 = vld [vmem:[%s359 + $0x2] sm:$0x1]
      %v362 = vld [vmem:[%s359 + $0x4] sm:$0x1]
      %v363 = vld [vmem:[%s359 + $0x6] sm:$0x1]
      %v364 = vld [vmem:[%s359 + $0x8] sm:$0x1]
      %v365 = vld [vmem:[%s359 + $0xa] sm:$0x1]
      %v366 = vld [vmem:[%s359 + $0xc] sm:$0x1]
      %v367 = vld [vmem:[%s359 + $0xe] sm:$0x1]
      %v368 = vld [vmem:[%s359 + $0x20] sm:$0x1]
      %v369 = vld [vmem:[%s359 + $0x22] sm:$0x1]
      %v370 = vld [vmem:[%s359 + $0x24] sm:$0x1]
      %v371 = vld [vmem:[%s359 + $0x26] sm:$0x1]
      %v372 = vld [vmem:[%s359 + $0x28] sm:$0x1]
      %v373 = vld [vmem:[%s359 + $0x2a] sm:$0x1]
      %v374 = vld [vmem:[%s359 + $0x2c] sm:$0x1]
      %v375 = vld [vmem:[%s359 + $0x2e] sm:$0x1]
      %v376 = vld [vmem:[%s359 + $0x40] sm:$0x1]
      %v377 = vld [vmem:[%s359 + $0x42] sm:$0x1]
      %v378 = vld [vmem:[%s359 + $0x44] sm:$0x1]
      %v379 = vld [vmem:[%s359 + $0x46] sm:$0x1]
      %v380 = vld [vmem:[%s359 + $0x48] sm:$0x1]
      %v381 = vld [vmem:[%s359 + $0x4a] sm:$0x1]
      %v382 = vld [vmem:[%s359 + $0x4c] sm:$0x1]
      %v383 = vld [vmem:[%s359 + $0x4e] sm:$0x1]
      %v384 = vld [vmem:[%s359 + $0x60] sm:$0x1]
      %v385 = vld [vmem:[%s359 + $0x62] sm:$0x1]
      %v386 = vld [vmem:[%s359 + $0x64] sm:$0x1]
      %v387 = vld [vmem:[%s359 + $0x66] sm:$0x1]
      %v388 = vld [vmem:[%s359 + $0x68] sm:$0x1]
      %v389 = vld [vmem:[%s359 + $0x6a] sm:$0x1]
      %v390 = vld [vmem:[%s359 + $0x6c] sm:$0x1]
      %v391 = vld [vmem:[%s359 + $0x6e] sm:$0x1]
      %v392 = vld [vmem:[%s359 + $0x80] sm:$0x1]
      %v393 = vld [vmem:[%s359 + $0x82] sm:$0x1]
      %v394 = vld [vmem:[%s359 + $0x84] sm:$0x1]
      %v395 = vld [vmem:[%s359 + $0x86] sm:$0x1]
      %v396 = vld [vmem:[%s359 + $0x88] sm:$0x1]
      %v397 = vld [vmem:[%s359 + $0x8a] sm:$0x1]
      %v398 = vld [vmem:[%s359 + $0x8c] sm:$0x1]
      %v399 = vld [vmem:[%s359 + $0x8e] sm:$0x1]
      %v400 = vld [vmem:[%s359 + $0xa0] sm:$0x1]
      %v401 = vld [vmem:[%s359 + $0xa2] sm:$0x1]
      %v402 = vld [vmem:[%s359 + $0xa4] sm:$0x1]
      %v403 = vld [vmem:[%s359 + $0xa6] sm:$0x1]
      %v404 = vld [vmem:[%s359 + $0xa8] sm:$0x1]
      %v405 = vld [vmem:[%s359 + $0xaa] sm:$0x1]
      %v406 = vld [vmem:[%s359 + $0xac] sm:$0x1]
      %v407 = vld [vmem:[%s359 + $0xae] sm:$0x1]
      %v408 = vld [vmem:[%s359 + $0xc0] sm:$0x1]
      %v409 = vld [vmem:[%s359 + $0xc2] sm:$0x1]
      %v410 = vld [vmem:[%s359 + $0xc4] sm:$0x1]
      %v411 = vld [vmem:[%s359 + $0xc6] sm:$0x1]
      %v412 = vld [vmem:[%s359 + $0xc8] sm:$0x1]
      %v413 = vld [vmem:[%s359 + $0xca] sm:$0x1]
      %v414 = vld [vmem:[%s359 + $0xcc] sm:$0x1]
      %v415 = vld [vmem:[%s359 + $0xce] sm:$0x1]
      %v416 = vld [vmem:[%s359 + $0xe0] sm:$0x1]
      %v417 = vld [vmem:[%s359 + $0xe2] sm:$0x1]
      %v418 = vld [vmem:[%s359 + $0xe4] sm:$0x1]
      %v419 = vld [vmem:[%s359 + $0xe6] sm:$0x1]
      %v420 = vld [vmem:[%s359 + $0xe8] sm:$0x1]
      %v421 = vld [vmem:[%s359 + $0xea] sm:$0x1]
      %v422 = vld [vmem:[%s359 + $0xec] sm:$0x1]
      %v423 = vld [vmem:[%s359 + $0xee] sm:$0x1]
      %v424 = vld [vmem:[%s359 + $0x1] sm:$0x1]
      %v425 = vld [vmem:[%s359 + $0x3] sm:$0x1]
      %v426 = vld [vmem:[%s359 + $0x5] sm:$0x1]
      %v427 = vld [vmem:[%s359 + $0x7] sm:$0x1]
      %v428 = vld [vmem:[%s359 + $0x9] sm:$0x1]
      %v429 = vld [vmem:[%s359 + $0xb] sm:$0x1]
      %v430 = vld [vmem:[%s359 + $0xd] sm:$0x1]
      %v431 = vld [vmem:[%s359 + $0xf] sm:$0x1]
      %v432 = vld [vmem:[%s359 + $0x21] sm:$0x1]
      %v433 = vld [vmem:[%s359 + $0x23] sm:$0x1]
      %v434 = vld [vmem:[%s359 + $0x25] sm:$0x1]
      %v435 = vld [vmem:[%s359 + $0x27] sm:$0x1]
      %v436 = vld [vmem:[%s359 + $0x29] sm:$0x1]
      %v437 = vld [vmem:[%s359 + $0x2b] sm:$0x1]
      %v438 = vld [vmem:[%s359 + $0x2d] sm:$0x1]
      %v439 = vld [vmem:[%s359 + $0x2f] sm:$0x1]
      %v440 = vld [vmem:[%s359 + $0x41] sm:$0x1]
      %v441 = vld [vmem:[%s359 + $0x43] sm:$0x1]
      %v442 = vld [vmem:[%s359 + $0x45] sm:$0x1]
      %v443 = vld [vmem:[%s359 + $0x47] sm:$0x1]
      %v444 = vld [vmem:[%s359 + $0x49] sm:$0x1]
      %v445 = vld [vmem:[%s359 + $0x4b] sm:$0x1]
      %v446 = vld [vmem:[%s359 + $0x4d] sm:$0x1]
      %v447 = vld [vmem:[%s359 + $0x4f] sm:$0x1]
      %v448 = vld [vmem:[%s359 + $0x61] sm:$0x1]
      %v449 = vld [vmem:[%s359 + $0x63] sm:$0x1]
      %v450 = vld [vmem:[%s359 + $0x65] sm:$0x1]
      %v451 = vld [vmem:[%s359 + $0x67] sm:$0x1]
      %v452 = vld [vmem:[%s359 + $0x69] sm:$0x1]
      %v453 = vld [vmem:[%s359 + $0x6b] sm:$0x1]
      %v454 = vld [vmem:[%s359 + $0x6d] sm:$0x1]
      %v455 = vld [vmem:[%s359 + $0x6f] sm:$0x1]
      %v456 = vld [vmem:[%s359 + $0x81] sm:$0x1]
      %v457 = vld [vmem:[%s359 + $0x83] sm:$0x1]
      %v458 = vld [vmem:[%s359 + $0x85] sm:$0x1]
      %v459 = vld [vmem:[%s359 + $0x87] sm:$0x1]
      %v460 = vld [vmem:[%s359 + $0x89] sm:$0x1]
      %v461 = vld [vmem:[%s359 + $0x8b] sm:$0x1]
      %v462 = vld [vmem:[%s359 + $0x8d] sm:$0x1]
      %v463 = vld [vmem:[%s359 + $0x8f] sm:$0x1]
      %v464 = vld [vmem:[%s359 + $0xa1] sm:$0x1]
      %v465 = vld [vmem:[%s359 + $0xa3] sm:$0x1]
      %v466 = vld [vmem:[%s359 + $0xa5] sm:$0x1]
      %v467 = vld [vmem:[%s359 + $0xa7] sm:$0x1]
      %v468 = vld [vmem:[%s359 + $0xa9] sm:$0x1]
      %v469 = vld [vmem:[%s359 + $0xab] sm:$0x1]
      %v470 = vld [vmem:[%s359 + $0xad] sm:$0x1]
      %v471 = vld [vmem:[%s359 + $0xaf] sm:$0x1]
      %v472 = vld [vmem:[%s359 + $0xc1] sm:$0x1]
      %v473 = vld [vmem:[%s359 + $0xc3] sm:$0x1]
      %v474 = vld [vmem:[%s359 + $0xc5] sm:$0x1]
      %v475 = vld [vmem:[%s359 + $0xc7] sm:$0x1]
      %v476 = vld [vmem:[%s359 + $0xc9] sm:$0x1]
      %v477 = vld [vmem:[%s359 + $0xcb] sm:$0x1]
      %v478 = vld [vmem:[%s359 + $0xcd] sm:$0x1]
      %v479 = vld [vmem:[%s359 + $0xcf] sm:$0x1]
      %v480 = vld [vmem:[%s359 + $0xe1] sm:$0x1]
      %v481 = vld [vmem:[%s359 + $0xe3] sm:$0x1]
      %v482 = vld [vmem:[%s359 + $0xe5] sm:$0x1]
      %v483 = vld [vmem:[%s359 + $0xe7] sm:$0x1]
      %v484 = vld [vmem:[%s359 + $0xe9] sm:$0x1]
      %v485 = vld [vmem:[%s359 + $0xeb] sm:$0x1]
      %v486 = vld [vmem:[%s359 + $0xed] sm:$0x1]
      %v487 = vld [vmem:[%s359 + $0xef] sm:$0x1]
      %v488 = vmax.f32 %v231, %v295
      %v489 = vmax.f32 %v232, %v296
      %v490 = vmax.f32 %v233, %v297
      %v491 = vmax.f32 %v234, %v298
      %v492 = vmax.f32 %v235, %v299
      %v493 = vmax.f32 %v236, %v300
      %v494 = vmax.f32 %v237, %v301
      %v495 = vmax.f32 %v238, %v302
      %v496 = vmax.f32 %v239, %v303
      %v497 = vmax.f32 %v240, %v304
      %v498 = vmax.f32 %v241, %v305
      %v499 = vmax.f32 %v242, %v306
      %v500 = vmax.f32 %v243, %v307
      %v501 = vmax.f32 %v244, %v308
      %v502 = vmax.f32 %v245, %v309
      %v503 = vmax.f32 %v246, %v310
      %v504 = vmax.f32 %v247, %v311
      %v505 = vmax.f32 %v248, %v312
      %v506 = vmax.f32 %v249, %v313
      %v507 = vmax.f32 %v250, %v314
      %v508 = vmax.f32 %v251, %v315
      %v509 = vmax.f32 %v252, %v316
      %v510 = vmax.f32 %v253, %v317
      %v511 = vmax.f32 %v254, %v318
      %v512 = vmax.f32 %v255, %v319
      %v513 = vmax.f32 %v256, %v320
      %v514 = vmax.f32 %v257, %v321
      %v515 = vmax.f32 %v258, %v322
      %v516 = vmax.f32 %v259, %v323
      %v517 = vmax.f32 %v260, %v324
      %v518 = vmax.f32 %v261, %v325
      %v519 = vmax.f32 %v262, %v326
      %v520 = vmax.f32 %v263, %v327
      %v521 = vmax.f32 %v264, %v328
      %v522 = vmax.f32 %v265, %v329
      %v523 = vmax.f32 %v266, %v330
      %v524 = vmax.f32 %v267, %v331
      %v525 = vmax.f32 %v268, %v332
      %v526 = vmax.f32 %v269, %v333
      %v527 = vmax.f32 %v270, %v334
      %v528 = vmax.f32 %v271, %v335
      %v529 = vmax.f32 %v272, %v336
      %v530 = vmax.f32 %v273, %v337
      %v531 = vmax.f32 %v274, %v338
      %v532 = vmax.f32 %v275, %v339
      %v533 = vmax.f32 %v276, %v340
      %v534 = vmax.f32 %v277, %v341
      %v535 = vmax.f32 %v278, %v342
      %v536 = vmax.f32 %v279, %v343
      %v537 = vmax.f32 %v280, %v344
      %v538 = vmax.f32 %v281, %v345
      %v539 = vmax.f32 %v282, %v346
      %v540 = vmax.f32 %v283, %v347
      %v541 = vmax.f32 %v284, %v348
      %v542 = vmax.f32 %v285, %v349
      %v543 = vmax.f32 %v286, %v350
      %v544 = vmax.f32 %v287, %v351
      %v545 = vmax.f32 %v288, %v352
      %v546 = vmax.f32 %v289, %v353
      %v547 = vmax.f32 %v290, %v354
      %v548 = vmax.f32 %v291, %v355
      %v549 = vmax.f32 %v292, %v356
      %v550 = vmax.f32 %v293, %v357
      %v551 = vmax.f32 %v294, %v358
      %v552 = vmax.f32 %v360, %v424
      %v553 = vmax.f32 %v361, %v425
      %v554 = vmax.f32 %v362, %v426
      %v555 = vmax.f32 %v363, %v427
      %v556 = vmax.f32 %v364, %v428
      %v557 = vmax.f32 %v365, %v429
      %v558 = vmax.f32 %v366, %v430
      %v559 = vmax.f32 %v367, %v431
      %v560 = vmax.f32 %v368, %v432
      %v561 = vmax.f32 %v369, %v433
      %v562 = vmax.f32 %v370, %v434
      %v563 = vmax.f32 %v371, %v435
      %v564 = vmax.f32 %v372, %v436
      %v565 = vmax.f32 %v373, %v437
      %v566 = vmax.f32 %v374, %v438
      %v567 = vmax.f32 %v375, %v439
      %v568 = vmax.f32 %v376, %v440
      %v569 = vmax.f32 %v377, %v441
      %v570 = vmax.f32 %v378, %v442
      %v571 = vmax.f32 %v379, %v443
      %v572 = vmax.f32 %v380, %v444
      %v573 = vmax.f32 %v381, %v445
      %v574 = vmax.f32 %v382, %v446
      %v575 = vmax.f32 %v383, %v447
      %v576 = vmax.f32 %v384, %v448
      %v577 = vmax.f32 %v385, %v449
      %v578 = vmax.f32 %v386, %v450
      %v579 = vmax.f32 %v387, %v451
      %v580 = vmax.f32 %v388, %v452
      %v581 = vmax.f32 %v389, %v453
      %v582 = vmax.f32 %v390, %v454
      %v583 = vmax.f32 %v391, %v455
      %v584 = vmax.f32 %v392, %v456
      %v585 = vmax.f32 %v393, %v457
      %v586 = vmax.f32 %v394, %v458
      %v587 = vmax.f32 %v395, %v459
      %v588 = vmax.f32 %v396, %v460
      %v589 = vmax.f32 %v397, %v461
      %v590 = vmax.f32 %v398, %v462
      %v591 = vmax.f32 %v399, %v463
      %v592 = vmax.f32 %v400, %v464
      %v593 = vmax.f32 %v401, %v465
      %v594 = vmax.f32 %v402, %v466
      %v595 = vmax.f32 %v403, %v467
      %v596 = vmax.f32 %v404, %v468
      %v597 = vmax.f32 %v405, %v469
      %v598 = vmax.f32 %v406, %v470
      %v599 = vmax.f32 %v407, %v471
      %v600 = vmax.f32 %v408, %v472
      %v601 = vmax.f32 %v409, %v473
      %v602 = vmax.f32 %v410, %v474
      %v603 = vmax.f32 %v411, %v475
      %v604 = vmax.f32 %v412, %v476
      %v605 = vmax.f32 %v413, %v477
      %v606 = vmax.f32 %v414, %v478
      %v607 = vmax.f32 %v415, %v479
      %v608 = vmax.f32 %v416, %v480
      %v609 = vmax.f32 %v417, %v481
      %v610 = vmax.f32 %v418, %v482
      %v611 = vmax.f32 %v419, %v483
      %v612 = vmax.f32 %v420, %v484
      %v613 = vmax.f32 %v421, %v485
      %v614 = vmax.f32 %v422, %v486
      %v615 = vmax.f32 %v423, %v487
      %v616 = vmax.f32 %v488, %v552
      %v617 = vmax.f32 %v489, %v553
      %v618 = vmax.f32 %v490, %v554
      %v619 = vmax.f32 %v491, %v555
      %v620 = vmax.f32 %v492, %v556
      %v621 = vmax.f32 %v493, %v557
      %v622 = vmax.f32 %v494, %v558
      %v623 = vmax.f32 %v495, %v559
      %v624 = vmax.f32 %v496, %v560
      %v625 = vmax.f32 %v497, %v561
      %v626 = vmax.f32 %v498, %v562
      %v627 = vmax.f32 %v499, %v563
      %v628 = vmax.f32 %v500, %v564
      %v629 = vmax.f32 %v501, %v565
      %v630 = vmax.f32 %v502, %v566
      %v631 = vmax.f32 %v503, %v567
      %v632 = vmax.f32 %v504, %v568
      %v633 = vmax.f32 %v505, %v569
      %v634 = vmax.f32 %v506, %v570
      %v635 = vmax.f32 %v507, %v571
      %v636 = vmax.f32 %v508, %v572
      %v637 = vmax.f32 %v509, %v573
      %v638 = vmax.f32 %v510, %v574
      %v639 = vmax.f32 %v511, %v575
      %v640 = vmax.f32 %v512, %v576
      %v641 = vmax.f32 %v513, %v577
      %v642 = vmax.f32 %v514, %v578
      %v643 = vmax.f32 %v515, %v579
      %v644 = vmax.f32 %v516, %v580
      %v645 = vmax.f32 %v517, %v581
      %v646 = vmax.f32 %v518, %v582
      %v647 = vmax.f32 %v519, %v583
      %v648 = vmax.f32 %v520, %v584
      %v649 = vmax.f32 %v521, %v585
      %v650 = vmax.f32 %v522, %v586
      %v651 = vmax.f32 %v523, %v587
      %v652 = vmax.f32 %v524, %v588
      %v653 = vmax.f32 %v525, %v589
      %v654 = vmax.f32 %v526, %v590
      %v655 = vmax.f32 %v527, %v591
      %v656 = vmax.f32 %v528, %v592
      %v657 = vmax.f32 %v529, %v593
      %v658 = vmax.f32 %v530, %v594
      %v659 = vmax.f32 %v531, %v595
      %v660 = vmax.f32 %v532, %v596
      %v661 = vmax.f32 %v533, %v597
      %v662 = vmax.f32 %v534, %v598
      %v663 = vmax.f32 %v535, %v599
      %v664 = vmax.f32 %v536, %v600
      %v665 = vmax.f32 %v537, %v601
      %v666 = vmax.f32 %v538, %v602
      %v667 = vmax.f32 %v539, %v603
      %v668 = vmax.f32 %v540, %v604
      %v669 = vmax.f32 %v541, %v605
      %v670 = vmax.f32 %v542, %v606
      %v671 = vmax.f32 %v543, %v607
      %v672 = vmax.f32 %v544, %v608
      %v673 = vmax.f32 %v545, %v609
      %v674 = vmax.f32 %v546, %v610
      %v675 = vmax.f32 %v547, %v611
      %v676 = vmax.f32 %v548, %v612
      %v677 = vmax.f32 %v549, %v613
      %v678 = vmax.f32 %v550, %v614
      %v679 = vmax.f32 %v551, %v615
      %v744 = vrot.slane %v617, 7
      %vm745 = vcmask 1041409
      %v746 = vsel %vm745, %v744, %v616
      %v747 = vrot.slane %v618, 6
      %vm748 = vcmask 1042434
      %v749 = vsel %vm748, %v747, %v746
      %v750 = vrot.slane %v619, 5
      %vm751 = vcmask 1043459
      %v752 = vsel %vm751, %v750, %v749
      %v753 = vrot.slane %v620, 4
      %vm754 = vcmask 1044484
      %v755 = vsel %vm754, %v753, %v752
      %v756 = vrot.slane %v621, 3
      %vm757 = vcmask 1045509
      %v758 = vsel %vm757, %v756, %v755
      %v759 = vrot.slane %v622, 2
      %vm760 = vcmask 1046534
      %v761 = vsel %vm760, %v759, %v758
      %v762 = vrot.slane %v623, 1
      %vm763 = vcmask 1047559
      %v764 = vsel %vm763, %v762, %v761
      %v765 = vrot.slane %v625, 7
      %v766 = vsel %vm745, %v765, %v624
      %v767 = vrot.slane %v626, 6
      %v768 = vsel %vm748, %v767, %v766
      %v769 = vrot.slane %v627, 5
      %v770 = vsel %vm751, %v769, %v768
      %v771 = vrot.slane %v628, 4
      %v772 = vsel %vm754, %v771, %v770
      %v773 = vrot.slane %v629, 3
      %v774 = vsel %vm757, %v773, %v772
      %v775 = vrot.slane %v630, 2
      %v776 = vsel %vm760, %v775, %v774
      %v777 = vrot.slane %v631, 1
      %v778 = vsel %vm763, %v777, %v776
      %v779 = vrot.slane %v633, 7
      %v780 = vsel %vm745, %v779, %v632
      %v781 = vrot.slane %v634, 6
      %v782 = vsel %vm748, %v781, %v780
      %v783 = vrot.slane %v635, 5
      %v784 = vsel %vm751, %v783, %v782
      %v785 = vrot.slane %v636, 4
      %v786 = vsel %vm754, %v785, %v784
      %v787 = vrot.slane %v637, 3
      %v788 = vsel %vm757, %v787, %v786
      %v789 = vrot.slane %v638, 2
      %v790 = vsel %vm760, %v789, %v788
      %v791 = vrot.slane %v639, 1
      %v792 = vsel %vm763, %v791, %v790
      %v793 = vrot.slane %v641, 7
      %v794 = vsel %vm745, %v793, %v640
      %v795 = vrot.slane %v642, 6
      %v796 = vsel %vm748, %v795, %v794
      %v797 = vrot.slane %v643, 5
      %v798 = vsel %vm751, %v797, %v796
      %v799 = vrot.slane %v644, 4
      %v800 = vsel %vm754, %v799, %v798
      %v801 = vrot.slane %v645, 3
      %v802 = vsel %vm757, %v801, %v800
      %v803 = vrot.slane %v646, 2
      %v804 = vsel %vm760, %v803, %v802
      %v805 = vrot.slane %v647, 1
      %v806 = vsel %vm763, %v805, %v804
      %v807 = vrot.slane %v649, 7
      %v808 = vsel %vm745, %v807, %v648
      %v809 = vrot.slane %v650, 6
      %v810 = vsel %vm748, %v809, %v808
      %v811 = vrot.slane %v651, 5
      %v812 = vsel %vm751, %v811, %v810
      %v813 = vrot.slane %v652, 4
      %v814 = vsel %vm754, %v813, %v812
      %v815 = vrot.slane %v653, 3
      %v816 = vsel %vm757, %v815, %v814
      %v817 = vrot.slane %v654, 2
      %v818 = vsel %vm760, %v817, %v816
      %v819 = vrot.slane %v655, 1
      %v820 = vsel %vm763, %v819, %v818
      %v821 = vrot.slane %v657, 7
      %v822 = vsel %vm745, %v821, %v656
      %v823 = vrot.slane %v658, 6
      %v824 = vsel %vm748, %v823, %v822
      %v825 = vrot.slane %v659, 5
      %v826 = vsel %vm751, %v825, %v824
      %v827 = vrot.slane %v660, 4
      %v828 = vsel %vm754, %v827, %v826
      %v829 = vrot.slane %v661, 3
      %v830 = vsel %vm757, %v829, %v828
      %v831 = vrot.slane %v662, 2
      %v832 = vsel %vm760, %v831, %v830
      %v833 = vrot.slane %v663, 1
      %v834 = vsel %vm763, %v833, %v832
      %v835 = vrot.slane %v665, 7
      %v836 = vsel %vm745, %v835, %v664
      %v837 = vrot.slane %v666, 6
      %v838 = vsel %vm748, %v837, %v836
      %v839 = vrot.slane %v667, 5
      %v840 = vsel %vm751, %v839, %v838
      %v841 = vrot.slane %v668, 4
      %v842 = vsel %vm754, %v841, %v840
      %v843 = vrot.slane %v669, 3
      %v844 = vsel %vm757, %v843, %v842
      %v845 = vrot.slane %v670, 2
      %v846 = vsel %vm760, %v845, %v844
      %v847 = vrot.slane %v671, 1
      %v848 = vsel %vm763, %v847, %v846
      %v849 = vrot.slane %v673, 7
      %v850 = vsel %vm745, %v849, %v672
      %v851 = vrot.slane %v674, 6
      %v852 = vsel %vm748, %v851, %v850
      %v853 = vrot.slane %v675, 5
      %v854 = vsel %vm751, %v853, %v852
      %v855 = vrot.slane %v676, 4
      %v856 = vsel %vm754, %v855, %v854
      %v857 = vrot.slane %v677, 3
      %v858 = vsel %vm757, %v857, %v856
      %v859 = vrot.slane %v678, 2
      %v860 = vsel %vm760, %v859, %v858
      %v861 = vrot.slane %v679, 1
      %v862 = vsel %vm763, %v861, %v860
      %s871 = scalar_lea.vmem [#allocation2], 16
      %vm872 = vcmask 31744
      %873 = vst.msk [vmem:[%s871 + $0x1] sm:$0xff] %vm872, %v764
      %874 = vst.msk [vmem:[%s871 + $0x11] sm:$0xff] %vm872, %v778
      %875 = vst.msk [vmem:[%s871 + $0x21] sm:$0xff] %vm872, %v792
      %876 = vst.msk [vmem:[%s871 + $0x31] sm:$0xff] %vm872, %v806
      %877 = vst.msk [vmem:[%s871 + $0x41] sm:$0xff] %vm872, %v820
      %878 = vst.msk [vmem:[%s871 + $0x51] sm:$0xff] %vm872, %v834
      %879 = vst.msk [vmem:[%s871 + $0x61] sm:$0xff] %vm872, %v848
      %880 = vst.msk [vmem:[%s871 + $0x71] sm:$0xff] %vm872, %v862
      %v881 = vld [vmem:[#allocation2] sm:$0xff]
      %v882 = vld [vmem:[#allocation2 + $0x10] sm:$0xff]
      %v883 = vld [vmem:[#allocation2 + $0x20] sm:$0xff]
      %v884 = vld [vmem:[#allocation2 + $0x30] sm:$0xff]
      %v885 = vld [vmem:[#allocation2 + $0x40] sm:$0xff]
      %v886 = vld [vmem:[#allocation2 + $0x50] sm:$0xff]
      %v887 = vld [vmem:[#allocation2 + $0x60] sm:$0xff]
      %v888 = vld [vmem:[#allocation2 + $0x70] sm:$0xff]
      %v889 = vpack.c.bf16 %v882, %v881
      %v890 = vpack.c.bf16 %v884, %v883
      %v891 = vpack.c.bf16 %v886, %v885
      %v892 = vpack.c.bf16 %v888, %v887
      %v893 = vld [vmem:[%s1] sm:$0x3]
      %v894 = vld [vmem:[#allocation2 + $0x1] sm:$0xff]
      %v895 = vld [vmem:[#allocation2 + $0x11] sm:$0xff]
      %v896 = vld [vmem:[#allocation2 + $0x21] sm:$0xff]
      %v897 = vld [vmem:[#allocation2 + $0x31] sm:$0xff]
      %v898 = vld [vmem:[#allocation2 + $0x41] sm:$0xff]
      %v899 = vld [vmem:[#allocation2 + $0x51] sm:$0xff]
      %v900 = vld [vmem:[#allocation2 + $0x61] sm:$0xff]
      %v901 = vld [vmem:[#allocation2 + $0x71] sm:$0xff]
      %v902 = vpack.c.bf16 %v895, %v894
      %v903 = vpack.c.bf16 %v897, %v896
      %v904 = vpack.c.bf16 %v899, %v898
      %v905 = vpack.c.bf16 %v901, %v900
      %s906 = scalar_lea.vmem %s1, 2
      %v907 = vld [vmem:[%s906] sm:$0x3]
      %v909 = vsel %vm872, %v902, 0
      %v912 = vsel %vm872, %v903, 0
      %v915 = vsel %vm872, %v904, 0
      %v918 = vsel %vm872, %v905, 0
      %vm920 = vcmask 1041408
      %v922 = vsel %vm920, %v907, 0
      %924 = vmatprep.subr.bf16.mxu0 0
      %925 = vmatpush1.bf16.msra.mxu0 0
      %926 = vmatprep.subr.bf16.mxu0 0
      %927 = vmatpush1.bf16.msra.mxu0 0
      %928 = vmatprep.subr.bf16.mxu0 0
      %929 = vmatpush1.bf16.msra.mxu0 0
      %930 = vmatprep.subr.bf16.mxu0 0
      %931 = vmatpush1.bf16.msra.mxu0 0
      %932 = vmatprep.subr.bf16.mxu0 0
      %933 = vmatpush1.bf16.msra.mxu0 0
      %934 = vmatprep.subr.bf16.mxu0 0
      %935 = vmatpush1.bf16.msra.mxu0 0
      %936 = vmatprep.subr.bf16.mxu0 0
      %937 = vmatpush1.bf16.msra.mxu0 0
      %938 = vmatprep.subr.bf16.mxu0 0
      %939 = vmatpush1.bf16.msra.mxu0 %v922
      %940 = vmatprep.subr.bf16.mxu0 0
      %941 = vmatpush2.bf16.msra.mxu0 0
      %942 = vmatprep.subr.bf16.mxu0 0
      %943 = vmatpush2.bf16.msra.mxu0 0
      %944 = vmatprep.subr.bf16.mxu0 0
      %945 = vmatpush2.bf16.msra.mxu0 0
      %946 = vmatprep.subr.bf16.mxu0 0
      %947 = vmatpush2.bf16.msra.mxu0 0
      %948 = vmatprep.subr.bf16.mxu0 0
      %949 = vmatpush2.bf16.msra.mxu0 0
      %950 = vmatprep.subr.bf16.mxu0 0
      %951 = vmatpush2.bf16.msra.mxu0 0
      %952 = vmatprep.subr.bf16.mxu0 0
      %953 = vmatpush2.bf16.msra.mxu0 0
      %954 = vmatprep.subr.bf16.mxu0 0
      %955 = vmatpush2.bf16.msra.mxu0 0
      %956 = vmatprep.mubr.bf16.mxu0 0
      %957 = vmatmul.mubr.bf16.gmra.mxu0 %v909
      %v958 = vpop.f32.mrf.mxu0
      %v959 = vadd.f32 0.0, %v958
      %v960 = vpop.f32.mrf.mxu0
      %v961 = vpop.f32.mrf.mxu0
      %v962 = vadd.f32 0.0, %v961
      %v963 = vpop.f32.mrf.mxu0
      %964 = vmatprep.mubr.bf16.mxu0 0
      %965 = vmatmul.mubr.bf16.gmra.mxu0 %v912
      %v966 = vpop.f32.mrf.mxu0
      %v967 = vadd.f32 0.0, %v966
      %v968 = vpop.f32.mrf.mxu0
      %v969 = vpop.f32.mrf.mxu0
      %v970 = vadd.f32 0.0, %v969
      %v971 = vpop.f32.mrf.mxu0
      %972 = vmatprep.mubr.bf16.mxu0 0
      %973 = vmatmul.mubr.bf16.gmra.mxu0 %v915
      %v974 = vpop.f32.mrf.mxu0
      %v975 = vadd.f32 0.0, %v974
      %v976 = vpop.f32.mrf.mxu0
      %v977 = vpop.f32.mrf.mxu0
      %v978 = vadd.f32 0.0, %v977
      %v979 = vpop.f32.mrf.mxu0
      %980 = vmatprep.mubr.bf16.mxu0 0
      %981 = vmatmul.mubr.bf16.gmra.mxu0 %v918
      %v982 = vpop.f32.mrf.mxu0
      %v983 = vadd.f32 0.0, %v982
      %v984 = vpop.f32.mrf.mxu0
      %v985 = vpop.f32.mrf.mxu0
      %v986 = vadd.f32 0.0, %v985
      %v987 = vpop.f32.mrf.mxu0
      %988 = vdwg.mxu0
      %v990 = vsel %vm872, %v889, 0
      %v993 = vsel %vm872, %v890, 0
      %v996 = vsel %vm872, %v891, 0
      %v999 = vsel %vm872, %v892, 0
      %v1002 = vsel %vm920, %v893, 0
      %1004 = vmatprep.subr.bf16.mxu0 0
      %1005 = vmatpush1.bf16.msra.mxu0 0
      %1006 = vmatprep.subr.bf16.mxu0 0
      %1007 = vmatpush1.bf16.msra.mxu0 0
      %1008 = vmatprep.subr.bf16.mxu0 0
      %1009 = vmatpush1.bf16.msra.mxu0 0
      %1010 = vmatprep.subr.bf16.mxu0 0
      %1011 = vmatpush1.bf16.msra.mxu0 0
      %1012 = vmatprep.subr.bf16.mxu0 0
      %1013 = vmatpush1.bf16.msra.mxu0 0
      %1014 = vmatprep.subr.bf16.mxu0 0
      %1015 = vmatpush1.bf16.msra.mxu0 0
      %1016 = vmatprep.subr.bf16.mxu0 0
      %1017 = vmatpush1.bf16.msra.mxu0 0
      %1018 = vmatprep.subr.bf16.mxu0 0
      %1019 = vmatpush1.bf16.msra.mxu0 %v1002
      %1020 = vmatprep.subr.bf16.mxu0 0
      %1021 = vmatpush2.bf16.msra.mxu0 0
      %1022 = vmatprep.subr.bf16.mxu0 0
      %1023 = vmatpush2.bf16.msra.mxu0 0
      %1024 = vmatprep.subr.bf16.mxu0 0
      %1025 = vmatpush2.bf16.msra.mxu0 0
      %1026 = vmatprep.subr.bf16.mxu0 0
      %1027 = vmatpush2.bf16.msra.mxu0 0
      %1028 = vmatprep.subr.bf16.mxu0 0
      %1029 = vmatpush2.bf16.msra.mxu0 0
      %1030 = vmatprep.subr.bf16.mxu0 0
      %1031 = vmatpush2.bf16.msra.mxu0 0
      %1032 = vmatprep.subr.bf16.mxu0 0
      %1033 = vmatpush2.bf16.msra.mxu0 0
      %1034 = vmatprep.subr.bf16.mxu0 0
      %1035 = vmatpush2.bf16.msra.mxu0 0
      %1036 = vmatprep.mubr.bf16.mxu0 0
      %1037 = vmatmul.mubr.bf16.gmra.mxu0 %v990
      %v1038 = vpop.f32.mrf.mxu0
      %v1039 = vadd.f32 %v959, %v1038
      %v1040 = vpop.f32.mrf.mxu0
      %v1041 = vpop.f32.mrf.mxu0
      %v1042 = vadd.f32 %v962, %v1041
      %v1043 = vpop.f32.mrf.mxu0
      %1044 = vmatprep.mubr.bf16.mxu0 0
      %1045 = vmatmul.mubr.bf16.gmra.mxu0 %v993
      %v1046 = vpop.f32.mrf.mxu0
      %v1047 = vadd.f32 %v967, %v1046
      %v1048 = vpop.f32.mrf.mxu0
      %v1049 = vpop.f32.mrf.mxu0
      %v1050 = vadd.f32 %v970, %v1049
      %v1051 = vpop.f32.mrf.mxu0
      %1052 = vmatprep.mubr.bf16.mxu0 0
      %1053 = vmatmul.mubr.bf16.gmra.mxu0 %v996
      %v1054 = vpop.f32.mrf.mxu0
      %v1055 = vadd.f32 %v975, %v1054
      %v1056 = vpop.f32.mrf.mxu0
      %v1057 = vpop.f32.mrf.mxu0
      %v1058 = vadd.f32 %v978, %v1057
      %v1059 = vpop.f32.mrf.mxu0
      %1060 = vmatprep.mubr.bf16.mxu0 0
      %1061 = vmatmul.mubr.bf16.gmra.mxu0 %v999
      %v1062 = vpop.f32.mrf.mxu0
      %v1063 = vadd.f32 %v983, %v1062
      %v1064 = vpop.f32.mrf.mxu0
      %v1065 = vpop.f32.mrf.mxu0
      %v1066 = vadd.f32 %v986, %v1065
      %v1067 = vpop.f32.mrf.mxu0
      %1068 = vdwg.mxu0
      %v1069 = vld [vmem:[#allocation2 + $0x2] sm:$0xff]
      %v1070 = vld [vmem:[#allocation2 + $0x12] sm:$0xff]
      %v1071 = vld [vmem:[#allocation2 + $0x22] sm:$0xff]
      %v1072 = vld [vmem:[#allocation2 + $0x32] sm:$0xff]
      %v1073 = vld [vmem:[#allocation2 + $0x42] sm:$0xff]
      %v1074 = vld [vmem:[#allocation2 + $0x52] sm:$0xff]
      %v1075 = vld [vmem:[#allocation2 + $0x62] sm:$0xff]
      %v1076 = vld [vmem:[#allocation2 + $0x72] sm:$0xff]
      %v1077 = vpack.c.bf16 %v1070, %v1069
      %v1078 = vpack.c.bf16 %v1072, %v1071
      %v1079 = vpack.c.bf16 %v1074, %v1073
      %v1080 = vpack.c.bf16 %v1076, %v1075
      %s1081 = scalar_lea.vmem %s1, 4
      %v1082 = vld [vmem:[%s1081] sm:$0x3]
      %v1084 = vsel %vm872, %v1077, 0
      %v1087 = vsel %vm872, %v1078, 0
      %v1090 = vsel %vm872, %v1079, 0
      %v1093 = vsel %vm872, %v1080, 0
      %v1096 = vsel %vm920, %v1082, 0
      %1098 = vmatprep.subr.bf16.mxu0 0
      %1099 = vmatpush1.bf16.msra.mxu0 0
      %1100 = vmatprep.subr.bf16.mxu0 0
      %1101 = vmatpush1.bf16.msra.mxu0 0
      %1102 = vmatprep.subr.bf16.mxu0 0
      %1103 = vmatpush1.bf16.msra.mxu0 0
      %1104 = vmatprep.subr.bf16.mxu0 0
      %1105 = vmatpush1.bf16.msra.mxu0 0
      %1106 = vmatprep.subr.bf16.mxu0 0
      %1107 = vmatpush1.bf16.msra.mxu0 0
      %1108 = vmatprep.subr.bf16.mxu0 0
      %1109 = vmatpush1.bf16.msra.mxu0 0
      %1110 = vmatprep.subr.bf16.mxu0 0
      %1111 = vmatpush1.bf16.msra.mxu0 0
      %1112 = vmatprep.subr.bf16.mxu0 0
      %1113 = vmatpush1.bf16.msra.mxu0 %v1096
      %1114 = vmatprep.subr.bf16.mxu0 0
      %1115 = vmatpush2.bf16.msra.mxu0 0
      %1116 = vmatprep.subr.bf16.mxu0 0
      %1117 = vmatpush2.bf16.msra.mxu0 0
      %1118 = vmatprep.subr.bf16.mxu0 0
      %1119 = vmatpush2.bf16.msra.mxu0 0
      %1120 = vmatprep.subr.bf16.mxu0 0
      %1121 = vmatpush2.bf16.msra.mxu0 0
      %1122 = vmatprep.subr.bf16.mxu0 0
      %1123 = vmatpush2.bf16.msra.mxu0 0
      %1124 = vmatprep.subr.bf16.mxu0 0
      %1125 = vmatpush2.bf16.msra.mxu0 0
      %1126 = vmatprep.subr.bf16.mxu0 0
      %1127 = vmatpush2.bf16.msra.mxu0 0
      %1128 = vmatprep.subr.bf16.mxu0 0
      %1129 = vmatpush2.bf16.msra.mxu0 0
      %1130 = vmatprep.mubr.bf16.mxu0 0
      %1131 = vmatmul.mubr.bf16.gmra.mxu0 %v1084
      %v1132 = vpop.f32.mrf.mxu0
      %v1133 = vadd.f32 0.0, %v1132
      %v1134 = vpop.f32.mrf.mxu0
      %v1135 = vpop.f32.mrf.mxu0
      %v1136 = vadd.f32 0.0, %v1135
      %v1137 = vpop.f32.mrf.mxu0
      %1138 = vmatprep.mubr.bf16.mxu0 0
      %1139 = vmatmul.mubr.bf16.gmra.mxu0 %v1087
      %v1140 = vpop.f32.mrf.mxu0
      %v1141 = vadd.f32 0.0, %v1140
      %v1142 = vpop.f32.mrf.mxu0
      %v1143 = vpop.f32.mrf.mxu0
      %v1144 = vadd.f32 0.0, %v1143
      %v1145 = vpop.f32.mrf.mxu0
      %1146 = vmatprep.mubr.bf16.mxu0 0
      %1147 = vmatmul.mubr.bf16.gmra.mxu0 %v1090
      %v1148 = vpop.f32.mrf.mxu0
      %v1149 = vadd.f32 0.0, %v1148
      %v1150 = vpop.f32.mrf.mxu0
      %v1151 = vpop.f32.mrf.mxu0
      %v1152 = vadd.f32 0.0, %v1151
      %v1153 = vpop.f32.mrf.mxu0
      %1154 = vmatprep.mubr.bf16.mxu0 0
      %1155 = vmatmul.mubr.bf16.gmra.mxu0 %v1093
      %v1156 = vpop.f32.mrf.mxu0
      %v1157 = vadd.f32 0.0, %v1156
      %v1158 = vpop.f32.mrf.mxu0
      %v1159 = vpop.f32.mrf.mxu0
      %v1160 = vadd.f32 0.0, %v1159
      %v1161 = vpop.f32.mrf.mxu0
      %1162 = vdwg.mxu0
      %v1163 = vadd.f32 %v1039, %v1133
      %v1164 = vadd.f32 %v1042, %v1136
      %v1165 = vadd.f32 %v1047, %v1141
      %v1166 = vadd.f32 %v1050, %v1144
      %v1167 = vadd.f32 %v1055, %v1149
      %v1168 = vadd.f32 %v1058, %v1152
      %v1169 = vadd.f32 %v1063, %v1157
      %v1170 = vadd.f32 %v1066, %v1160
      %v1171 = vld [vmem:[%s871] sm:$0xff]
      %v1172 = vld [vmem:[%s871 + $0x10] sm:$0xff]
      %v1173 = vld [vmem:[%s871 + $0x20] sm:$0xff]
      %v1174 = vld [vmem:[%s871 + $0x30] sm:$0xff]
      %v1175 = vld [vmem:[%s871 + $0x40] sm:$0xff]
      %v1176 = vld [vmem:[%s871 + $0x50] sm:$0xff]
      %v1177 = vld [vmem:[%s871 + $0x60] sm:$0xff]
      %v1178 = vld [vmem:[%s871 + $0x70] sm:$0xff]
      %v1179 = vpack.c.bf16 %v1172, %v1171
      %v1180 = vpack.c.bf16 %v1174, %v1173
      %v1181 = vpack.c.bf16 %v1176, %v1175
      %v1182 = vpack.c.bf16 %v1178, %v1177
      %s1183 = scalar_lea.vmem %s1, 6
      %v1184 = vld [vmem:[%s1183] sm:$0x3]
      %v1186 = vsel %vm872, %v1179, 0
      %v1189 = vsel %vm872, %v1180, 0
      %v1192 = vsel %vm872, %v1181, 0
      %v1195 = vsel %vm872, %v1182, 0
      %v1198 = vsel %vm920, %v1184, 0
      %1200 = vmatprep.subr.bf16.mxu0 0
      %1201 = vmatpush1.bf16.msra.mxu0 0
      %1202 = vmatprep.subr.bf16.mxu0 0
      %1203 = vmatpush1.bf16.msra.mxu0 0
      %1204 = vmatprep.subr.bf16.mxu0 0
      %1205 = vmatpush1.bf16.msra.mxu0 0
      %1206 = vmatprep.subr.bf16.mxu0 0
      %1207 = vmatpush1.bf16.msra.mxu0 0
      %1208 = vmatprep.subr.bf16.mxu0 0
      %1209 = vmatpush1.bf16.msra.mxu0 0
      %1210 = vmatprep.subr.bf16.mxu0 0
      %1211 = vmatpush1.bf16.msra.mxu0 0
      %1212 = vmatprep.subr.bf16.mxu0 0
      %1213 = vmatpush1.bf16.msra.mxu0 0
      %1214 = vmatprep.subr.bf16.mxu0 0
      %1215 = vmatpush1.bf16.msra.mxu0 %v1198
      %1216 = vmatprep.subr.bf16.mxu0 0
      %1217 = vmatpush2.bf16.msra.mxu0 0
      %1218 = vmatprep.subr.bf16.mxu0 0
      %1219 = vmatpush2.bf16.msra.mxu0 0
      %1220 = vmatprep.subr.bf16.mxu0 0
      %1221 = vmatpush2.bf16.msra.mxu0 0
      %1222 = vmatprep.subr.bf16.mxu0 0
      %1223 = vmatpush2.bf16.msra.mxu0 0
      %1224 = vmatprep.subr.bf16.mxu0 0
      %1225 = vmatpush2.bf16.msra.mxu0 0
      %1226 = vmatprep.subr.bf16.mxu0 0
      %1227 = vmatpush2.bf16.msra.mxu0 0
      %1228 = vmatprep.subr.bf16.mxu0 0
      %1229 = vmatpush2.bf16.msra.mxu0 0
      %1230 = vmatprep.subr.bf16.mxu0 0
      %1231 = vmatpush2.bf16.msra.mxu0 0
      %1232 = vmatprep.mubr.bf16.mxu0 0
      %1233 = vmatmul.mubr.bf16.gmra.mxu0 %v1186
      %v1234 = vpop.f32.mrf.mxu0
      %v1235 = vadd.f32 0.0, %v1234
      %v1236 = vpop.f32.mrf.mxu0
      %v1237 = vpop.f32.mrf.mxu0
      %v1238 = vadd.f32 0.0, %v1237
      %v1239 = vpop.f32.mrf.mxu0
      %1240 = vmatprep.mubr.bf16.mxu0 0
      %1241 = vmatmul.mubr.bf16.gmra.mxu0 %v1189
      %v1242 = vpop.f32.mrf.mxu0
      %v1243 = vadd.f32 0.0, %v1242
      %v1244 = vpop.f32.mrf.mxu0
      %v1245 = vpop.f32.mrf.mxu0
      %v1246 = vadd.f32 0.0, %v1245
      %v1247 = vpop.f32.mrf.mxu0
      %1248 = vmatprep.mubr.bf16.mxu0 0
      %1249 = vmatmul.mubr.bf16.gmra.mxu0 %v1192
      %v1250 = vpop.f32.mrf.mxu0
      %v1251 = vadd.f32 0.0, %v1250
      %v1252 = vpop.f32.mrf.mxu0
      %v1253 = vpop.f32.mrf.mxu0
      %v1254 = vadd.f32 0.0, %v1253
      %v1255 = vpop.f32.mrf.mxu0
      %1256 = vmatprep.mubr.bf16.mxu0 0
      %1257 = vmatmul.mubr.bf16.gmra.mxu0 %v1195
      %v1258 = vpop.f32.mrf.mxu0
      %v1259 = vadd.f32 0.0, %v1258
      %v1260 = vpop.f32.mrf.mxu0
      %v1261 = vpop.f32.mrf.mxu0
      %v1262 = vadd.f32 0.0, %v1261
      %v1263 = vpop.f32.mrf.mxu0
      %1264 = vdwg.mxu0
      %v1265 = vadd.f32 %v1163, %v1235
      %v1266 = vadd.f32 %v1164, %v1238
      %v1267 = vadd.f32 %v1165, %v1243
      %v1268 = vadd.f32 %v1166, %v1246
      %v1269 = vadd.f32 %v1167, %v1251
      %v1270 = vadd.f32 %v1168, %v1254
      %v1271 = vadd.f32 %v1169, %v1259
      %v1272 = vadd.f32 %v1170, %v1262
      %v1273 = vld [vmem:[%s871 + $0x1] sm:$0xff]
      %v1274 = vld [vmem:[%s871 + $0x11] sm:$0xff]
      %v1275 = vld [vmem:[%s871 + $0x21] sm:$0xff]
      %v1276 = vld [vmem:[%s871 + $0x31] sm:$0xff]
      %v1277 = vld [vmem:[%s871 + $0x41] sm:$0xff]
      %v1278 = vld [vmem:[%s871 + $0x51] sm:$0xff]
      %v1279 = vld [vmem:[%s871 + $0x61] sm:$0xff]
      %v1280 = vld [vmem:[%s871 + $0x71] sm:$0xff]
      %v1281 = vpack.c.bf16 %v1274, %v1273
      %v1282 = vpack.c.bf16 %v1276, %v1275
      %v1283 = vpack.c.bf16 %v1278, %v1277
      %v1284 = vpack.c.bf16 %v1280, %v1279
      %s1285 = scalar_lea.vmem %s1, 8
      %v1286 = vld [vmem:[%s1285] sm:$0x3]
      %v1288 = vsel %vm872, %v1281, 0
      %v1291 = vsel %vm872, %v1282, 0
      %v1294 = vsel %vm872, %v1283, 0
      %v1297 = vsel %vm872, %v1284, 0
      %v1300 = vsel %vm920, %v1286, 0
      %1302 = vmatprep.subr.bf16.mxu0 0
      %1303 = vmatpush1.bf16.msra.mxu0 0
      %1304 = vmatprep.subr.bf16.mxu0 0
      %1305 = vmatpush1.bf16.msra.mxu0 0
      %1306 = vmatprep.subr.bf16.mxu0 0
      %1307 = vmatpush1.bf16.msra.mxu0 0
      %1308 = vmatprep.subr.bf16.mxu0 0
      %1309 = vmatpush1.bf16.msra.mxu0 0
      %1310 = vmatprep.subr.bf16.mxu0 0
      %1311 = vmatpush1.bf16.msra.mxu0 0
      %1312 = vmatprep.subr.bf16.mxu0 0
      %1313 = vmatpush1.bf16.msra.mxu0 0
      %1314 = vmatprep.subr.bf16.mxu0 0
      %1315 = vmatpush1.bf16.msra.mxu0 0
      %1316 = vmatprep.subr.bf16.mxu0 0
      %1317 = vmatpush1.bf16.msra.mxu0 %v1300
      %1318 = vmatprep.subr.bf16.mxu0 0
      %1319 = vmatpush2.bf16.msra.mxu0 0
      %1320 = vmatprep.subr.bf16.mxu0 0
      %1321 = vmatpush2.bf16.msra.mxu0 0
      %1322 = vmatprep.subr.bf16.mxu0 0
      %1323 = vmatpush2.bf16.msra.mxu0 0
      %1324 = vmatprep.subr.bf16.mxu0 0
      %1325 = vmatpush2.bf16.msra.mxu0 0
      %1326 = vmatprep.subr.bf16.mxu0 0
      %1327 = vmatpush2.bf16.msra.mxu0 0
      %1328 = vmatprep.subr.bf16.mxu0 0
      %1329 = vmatpush2.bf16.msra.mxu0 0
      %1330 = vmatprep.subr.bf16.mxu0 0
      %1331 = vmatpush2.bf16.msra.mxu0 0
      %1332 = vmatprep.subr.bf16.mxu0 0
      %1333 = vmatpush2.bf16.msra.mxu0 0
      %1334 = vmatprep.mubr.bf16.mxu0 0
      %1335 = vmatmul.mubr.bf16.gmra.mxu0 %v1288
      %v1336 = vpop.f32.mrf.mxu0
      %v1337 = vadd.f32 0.0, %v1336
      %v1338 = vpop.f32.mrf.mxu0
      %v1339 = vpop.f32.mrf.mxu0
      %v1340 = vadd.f32 0.0, %v1339
      %v1341 = vpop.f32.mrf.mxu0
      %1342 = vmatprep.mubr.bf16.mxu0 0
      %1343 = vmatmul.mubr.bf16.gmra.mxu0 %v1291
      %v1344 = vpop.f32.mrf.mxu0
      %v1345 = vadd.f32 0.0, %v1344
      %v1346 = vpop.f32.mrf.mxu0
      %v1347 = vpop.f32.mrf.mxu0
      %v1348 = vadd.f32 0.0, %v1347
      %v1349 = vpop.f32.mrf.mxu0
      %1350 = vmatprep.mubr.bf16.mxu0 0
      %1351 = vmatmul.mubr.bf16.gmra.mxu0 %v1294
      %v1352 = vpop.f32.mrf.mxu0
      %v1353 = vadd.f32 0.0, %v1352
      %v1354 = vpop.f32.mrf.mxu0
      %v1355 = vpop.f32.mrf.mxu0
      %v1356 = vadd.f32 0.0, %v1355
      %v1357 = vpop.f32.mrf.mxu0
      %1358 = vmatprep.mubr.bf16.mxu0 0
      %1359 = vmatmul.mubr.bf16.gmra.mxu0 %v1297
      %v1360 = vpop.f32.mrf.mxu0
      %v1361 = vadd.f32 0.0, %v1360
      %v1362 = vpop.f32.mrf.mxu0
      %v1363 = vpop.f32.mrf.mxu0
      %v1364 = vadd.f32 0.0, %v1363
      %v1365 = vpop.f32.mrf.mxu0
      %1366 = vdwg.mxu0
      %v1367 = vadd.f32 %v1265, %v1337
      %v1368 = vadd.f32 %v1266, %v1340
      %v1369 = vadd.f32 %v1267, %v1345
      %v1370 = vadd.f32 %v1268, %v1348
      %v1371 = vadd.f32 %v1269, %v1353
      %v1372 = vadd.f32 %v1270, %v1356
      %v1373 = vadd.f32 %v1271, %v1361
      %v1374 = vadd.f32 %v1272, %v1364
      %v1375 = vld [vmem:[%s871 + $0x2] sm:$0xff]
      %v1376 = vld [vmem:[%s871 + $0x12] sm:$0xff]
      %v1377 = vld [vmem:[%s871 + $0x22] sm:$0xff]
      %v1378 = vld [vmem:[%s871 + $0x32] sm:$0xff]
      %v1379 = vld [vmem:[%s871 + $0x42] sm:$0xff]
      %v1380 = vld [vmem:[%s871 + $0x52] sm:$0xff]
      %v1381 = vld [vmem:[%s871 + $0x62] sm:$0xff]
      %v1382 = vld [vmem:[%s871 + $0x72] sm:$0xff]
      %v1383 = vpack.c.bf16 %v1376, %v1375
      %v1384 = vpack.c.bf16 %v1378, %v1377
      %v1385 = vpack.c.bf16 %v1380, %v1379
      %v1386 = vpack.c.bf16 %v1382, %v1381
      %s1387 = scalar_lea.vmem %s1, 10
      %v1388 = vld [vmem:[%s1387] sm:$0x3]
      %v1390 = vsel %vm872, %v1383, 0
      %v1393 = vsel %vm872, %v1384, 0
      %v1396 = vsel %vm872, %v1385, 0
      %v1399 = vsel %vm872, %v1386, 0
      %v1402 = vsel %vm920, %v1388, 0
      %1404 = vmatprep.subr.bf16.mxu0 0
      %1405 = vmatpush1.bf16.msra.mxu0 0
      %1406 = vmatprep.subr.bf16.mxu0 0
      %1407 = vmatpush1.bf16.msra.mxu0 0
      %1408 = vmatprep.subr.bf16.mxu0 0
      %1409 = vmatpush1.bf16.msra.mxu0 0
      %1410 = vmatprep.subr.bf16.mxu0 0
      %1411 = vmatpush1.bf16.msra.mxu0 0
      %1412 = vmatprep.subr.bf16.mxu0 0
      %1413 = vmatpush1.bf16.msra.mxu0 0
      %1414 = vmatprep.subr.bf16.mxu0 0
      %1415 = vmatpush1.bf16.msra.mxu0 0
      %1416 = vmatprep.subr.bf16.mxu0 0
      %1417 = vmatpush1.bf16.msra.mxu0 0
      %1418 = vmatprep.subr.bf16.mxu0 0
      %1419 = vmatpush1.bf16.msra.mxu0 %v1402
      %1420 = vmatprep.subr.bf16.mxu0 0
      %1421 = vmatpush2.bf16.msra.mxu0 0
      %1422 = vmatprep.subr.bf16.mxu0 0
      %1423 = vmatpush2.bf16.msra.mxu0 0
      %1424 = vmatprep.subr.bf16.mxu0 0
      %1425 = vmatpush2.bf16.msra.mxu0 0
      %1426 = vmatprep.subr.bf16.mxu0 0
      %1427 = vmatpush2.bf16.msra.mxu0 0
      %1428 = vmatprep.subr.bf16.mxu0 0
      %1429 = vmatpush2.bf16.msra.mxu0 0
      %1430 = vmatprep.subr.bf16.mxu0 0
      %1431 = vmatpush2.bf16.msra.mxu0 0
      %1432 = vmatprep.subr.bf16.mxu0 0
      %1433 = vmatpush2.bf16.msra.mxu0 0
      %1434 = vmatprep.subr.bf16.mxu0 0
      %1435 = vmatpush2.bf16.msra.mxu0 0
      %1436 = vmatprep.mubr.bf16.mxu0 0
      %1437 = vmatmul.mubr.bf16.gmra.mxu0 %v1390
      %v1438 = vpop.f32.mrf.mxu0
      %v1439 = vadd.f32 0.0, %v1438
      %v1440 = vpop.f32.mrf.mxu0
      %v1441 = vpop.f32.mrf.mxu0
      %v1442 = vadd.f32 0.0, %v1441
      %v1443 = vpop.f32.mrf.mxu0
      %1444 = vmatprep.mubr.bf16.mxu0 0
      %1445 = vmatmul.mubr.bf16.gmra.mxu0 %v1393
      %v1446 = vpop.f32.mrf.mxu0
      %v1447 = vadd.f32 0.0, %v1446
      %v1448 = vpop.f32.mrf.mxu0
      %v1449 = vpop.f32.mrf.mxu0
      %v1450 = vadd.f32 0.0, %v1449
      %v1451 = vpop.f32.mrf.mxu0
      %1452 = vmatprep.mubr.bf16.mxu0 0
      %1453 = vmatmul.mubr.bf16.gmra.mxu0 %v1396
      %v1454 = vpop.f32.mrf.mxu0
      %v1455 = vadd.f32 0.0, %v1454
      %v1456 = vpop.f32.mrf.mxu0
      %v1457 = vpop.f32.mrf.mxu0
      %v1458 = vadd.f32 0.0, %v1457
      %v1459 = vpop.f32.mrf.mxu0
      %1460 = vmatprep.mubr.bf16.mxu0 0
      %1461 = vmatmul.mubr.bf16.gmra.mxu0 %v1399
      %v1462 = vpop.f32.mrf.mxu0
      %v1463 = vadd.f32 0.0, %v1462
      %v1464 = vpop.f32.mrf.mxu0
      %v1465 = vpop.f32.mrf.mxu0
      %v1466 = vadd.f32 0.0, %v1465
      %v1467 = vpop.f32.mrf.mxu0
      %1468 = vdwg.mxu0
      %v1469 = vadd.f32 %v1367, %v1439
      %v1470 = vadd.f32 %v1368, %v1442
      %v1471 = vadd.f32 %v1369, %v1447
      %v1472 = vadd.f32 %v1370, %v1450
      %v1473 = vadd.f32 %v1371, %v1455
      %v1474 = vadd.f32 %v1372, %v1458
      %v1475 = vadd.f32 %v1373, %v1463
      %v1476 = vadd.f32 %v1374, %v1466
      %s1477 = scalar_lea.vmem [#allocation2], 32
      %v1478 = vld [vmem:[%s1477] sm:$0xff]
      %v1479 = vld [vmem:[%s1477 + $0x10] sm:$0xff]
      %v1480 = vld [vmem:[%s1477 + $0x20] sm:$0xff]
      %v1481 = vld [vmem:[%s1477 + $0x30] sm:$0xff]
      %v1482 = vld [vmem:[%s1477 + $0x40] sm:$0xff]
      %v1483 = vld [vmem:[%s1477 + $0x50] sm:$0xff]
      %v1484 = vld [vmem:[%s1477 + $0x60] sm:$0xff]
      %v1485 = vld [vmem:[%s1477 + $0x70] sm:$0xff]
      %v1486 = vpack.c.bf16 %v1479, %v1478
      %v1487 = vpack.c.bf16 %v1481, %v1480
      %v1488 = vpack.c.bf16 %v1483, %v1482
      %v1489 = vpack.c.bf16 %v1485, %v1484
      %s1490 = scalar_lea.vmem %s1, 12
      %v1491 = vld [vmem:[%s1490] sm:$0x3]
      %v1493 = vsel %vm872, %v1486, 0
      %v1496 = vsel %vm872, %v1487, 0
      %v1499 = vsel %vm872, %v1488, 0
      %v1502 = vsel %vm872, %v1489, 0
      %v1505 = vsel %vm920, %v1491, 0
      %1507 = vmatprep.subr.bf16.mxu0 0
      %1508 = vmatpush1.bf16.msra.mxu0 0
      %1509 = vmatprep.subr.bf16.mxu0 0
      %1510 = vmatpush1.bf16.msra.mxu0 0
      %1511 = vmatprep.subr.bf16.mxu0 0
      %1512 = vmatpush1.bf16.msra.mxu0 0
      %1513 = vmatprep.subr.bf16.mxu0 0
      %1514 = vmatpush1.bf16.msra.mxu0 0
      %1515 = vmatprep.subr.bf16.mxu0 0
      %1516 = vmatpush1.bf16.msra.mxu0 0
      %1517 = vmatprep.subr.bf16.mxu0 0
      %1518 = vmatpush1.bf16.msra.mxu0 0
      %1519 = vmatprep.subr.bf16.mxu0 0
      %1520 = vmatpush1.bf16.msra.mxu0 0
      %1521 = vmatprep.subr.bf16.mxu0 0
      %1522 = vmatpush1.bf16.msra.mxu0 %v1505
      %1523 = vmatprep.subr.bf16.mxu0 0
      %1524 = vmatpush2.bf16.msra.mxu0 0
      %1525 = vmatprep.subr.bf16.mxu0 0
      %1526 = vmatpush2.bf16.msra.mxu0 0
      %1527 = vmatprep.subr.bf16.mxu0 0
      %1528 = vmatpush2.bf16.msra.mxu0 0
      %1529 = vmatprep.subr.bf16.mxu0 0
      %1530 = vmatpush2.bf16.msra.mxu0 0
      %1531 = vmatprep.subr.bf16.mxu0 0
      %1532 = vmatpush2.bf16.msra.mxu0 0
      %1533 = vmatprep.subr.bf16.mxu0 0
      %1534 = vmatpush2.bf16.msra.mxu0 0
      %1535 = vmatprep.subr.bf16.mxu0 0
      %1536 = vmatpush2.bf16.msra.mxu0 0
      %1537 = vmatprep.subr.bf16.mxu0 0
      %1538 = vmatpush2.bf16.msra.mxu0 0
      %1539 = vmatprep.mubr.bf16.mxu0 0
      %1540 = vmatmul.mubr.bf16.gmra.mxu0 %v1493
      %v1541 = vpop.f32.mrf.mxu0
      %v1542 = vadd.f32 0.0, %v1541
      %v1543 = vpop.f32.mrf.mxu0
      %v1544 = vpop.f32.mrf.mxu0
      %v1545 = vadd.f32 0.0, %v1544
      %v1546 = vpop.f32.mrf.mxu0
      %1547 = vmatprep.mubr.bf16.mxu0 0
      %1548 = vmatmul.mubr.bf16.gmra.mxu0 %v1496
      %v1549 = vpop.f32.mrf.mxu0
      %v1550 = vadd.f32 0.0, %v1549
      %v1551 = vpop.f32.mrf.mxu0
      %v1552 = vpop.f32.mrf.mxu0
      %v1553 = vadd.f32 0.0, %v1552
      %v1554 = vpop.f32.mrf.mxu0
      %1555 = vmatprep.mubr.bf16.mxu0 0
      %1556 = vmatmul.mubr.bf16.gmra.mxu0 %v1499
      %v1557 = vpop.f32.mrf.mxu0
      %v1558 = vadd.f32 0.0, %v1557
      %v1559 = vpop.f32.mrf.mxu0
      %v1560 = vpop.f32.mrf.mxu0
      %v1561 = vadd.f32 0.0, %v1560
      %v1562 = vpop.f32.mrf.mxu0
      %1563 = vmatprep.mubr.bf16.mxu0 0
      %1564 = vmatmul.mubr.bf16.gmra.mxu0 %v1502
      %v1565 = vpop.f32.mrf.mxu0
      %v1566 = vadd.f32 0.0, %v1565
      %v1567 = vpop.f32.mrf.mxu0
      %v1568 = vpop.f32.mrf.mxu0
      %v1569 = vadd.f32 0.0, %v1568
      %v1570 = vpop.f32.mrf.mxu0
      %1571 = vdwg.mxu0
      %v1572 = vadd.f32 %v1469, %v1542
      %v1573 = vadd.f32 %v1470, %v1545
      %v1574 = vadd.f32 %v1471, %v1550
      %v1575 = vadd.f32 %v1472, %v1553
      %v1576 = vadd.f32 %v1473, %v1558
      %v1577 = vadd.f32 %v1474, %v1561
      %v1578 = vadd.f32 %v1475, %v1566
      %v1579 = vadd.f32 %v1476, %v1569
      %v1580 = vld [vmem:[%s1477 + $0x1] sm:$0xff]
      %v1581 = vld [vmem:[%s1477 + $0x11] sm:$0xff]
      %v1582 = vld [vmem:[%s1477 + $0x21] sm:$0xff]
      %v1583 = vld [vmem:[%s1477 + $0x31] sm:$0xff]
      %v1584 = vld [vmem:[%s1477 + $0x41] sm:$0xff]
      %v1585 = vld [vmem:[%s1477 + $0x51] sm:$0xff]
      %v1586 = vld [vmem:[%s1477 + $0x61] sm:$0xff]
      %v1587 = vld [vmem:[%s1477 + $0x71] sm:$0xff]
      %v1588 = vpack.c.bf16 %v1581, %v1580
      %v1589 = vpack.c.bf16 %v1583, %v1582
      %v1590 = vpack.c.bf16 %v1585, %v1584
      %v1591 = vpack.c.bf16 %v1587, %v1586
      %s1592 = scalar_lea.vmem %s1, 14
      %v1593 = vld [vmem:[%s1592] sm:$0x3]
      %v1595 = vsel %vm872, %v1588, 0
      %v1598 = vsel %vm872, %v1589, 0
      %v1601 = vsel %vm872, %v1590, 0
      %v1604 = vsel %vm872, %v1591, 0
      %v1607 = vsel %vm920, %v1593, 0
      %1609 = vmatprep.subr.bf16.mxu0 0
      %1610 = vmatpush1.bf16.msra.mxu0 0
      %1611 = vmatprep.subr.bf16.mxu0 0
      %1612 = vmatpush1.bf16.msra.mxu0 0
      %1613 = vmatprep.subr.bf16.mxu0 0
      %1614 = vmatpush1.bf16.msra.mxu0 0
      %1615 = vmatprep.subr.bf16.mxu0 0
      %1616 = vmatpush1.bf16.msra.mxu0 0
      %1617 = vmatprep.subr.bf16.mxu0 0
      %1618 = vmatpush1.bf16.msra.mxu0 0
      %1619 = vmatprep.subr.bf16.mxu0 0
      %1620 = vmatpush1.bf16.msra.mxu0 0
      %1621 = vmatprep.subr.bf16.mxu0 0
      %1622 = vmatpush1.bf16.msra.mxu0 0
      %1623 = vmatprep.subr.bf16.mxu0 0
      %1624 = vmatpush1.bf16.msra.mxu0 %v1607
      %1625 = vmatprep.subr.bf16.mxu0 0
      %1626 = vmatpush2.bf16.msra.mxu0 0
      %1627 = vmatprep.subr.bf16.mxu0 0
      %1628 = vmatpush2.bf16.msra.mxu0 0
      %1629 = vmatprep.subr.bf16.mxu0 0
      %1630 = vmatpush2.bf16.msra.mxu0 0
      %1631 = vmatprep.subr.bf16.mxu0 0
      %1632 = vmatpush2.bf16.msra.mxu0 0
      %1633 = vmatprep.subr.bf16.mxu0 0
      %1634 = vmatpush2.bf16.msra.mxu0 0
      %1635 = vmatprep.subr.bf16.mxu0 0
      %1636 = vmatpush2.bf16.msra.mxu0 0
      %1637 = vmatprep.subr.bf16.mxu0 0
      %1638 = vmatpush2.bf16.msra.mxu0 0
      %1639 = vmatprep.subr.bf16.mxu0 0
      %1640 = vmatpush2.bf16.msra.mxu0 0
      %1641 = vmatprep.mubr.bf16.mxu0 0
      %1642 = vmatmul.mubr.bf16.gmra.mxu0 %v1595
      %v1643 = vpop.f32.mrf.mxu0
      %v1644 = vadd.f32 0.0, %v1643
      %v1645 = vpop.f32.mrf.mxu0
      %v1646 = vpop.f32.mrf.mxu0
      %v1647 = vadd.f32 0.0, %v1646
      %v1648 = vpop.f32.mrf.mxu0
      %1649 = vmatprep.mubr.bf16.mxu0 0
      %1650 = vmatmul.mubr.bf16.gmra.mxu0 %v1598
      %v1651 = vpop.f32.mrf.mxu0
      %v1652 = vadd.f32 0.0, %v1651
      %v1653 = vpop.f32.mrf.mxu0
      %v1654 = vpop.f32.mrf.mxu0
      %v1655 = vadd.f32 0.0, %v1654
      %v1656 = vpop.f32.mrf.mxu0
      %1657 = vmatprep.mubr.bf16.mxu0 0
      %1658 = vmatmul.mubr.bf16.gmra.mxu0 %v1601
      %v1659 = vpop.f32.mrf.mxu0
      %v1660 = vadd.f32 0.0, %v1659
      %v1661 = vpop.f32.mrf.mxu0
      %v1662 = vpop.f32.mrf.mxu0
      %v1663 = vadd.f32 0.0, %v1662
      %v1664 = vpop.f32.mrf.mxu0
      %1665 = vmatprep.mubr.bf16.mxu0 0
      %1666 = vmatmul.mubr.bf16.gmra.mxu0 %v1604
      %v1667 = vpop.f32.mrf.mxu0
      %v1668 = vadd.f32 0.0, %v1667
      %v1669 = vpop.f32.mrf.mxu0
      %v1670 = vpop.f32.mrf.mxu0
      %v1671 = vadd.f32 0.0, %v1670
      %v1672 = vpop.f32.mrf.mxu0
      %1673 = vdwg.mxu0
      %v1674 = vadd.f32 %v1572, %v1644
      %v1675 = vadd.f32 %v1573, %v1647
      %v1676 = vadd.f32 %v1574, %v1652
      %v1677 = vadd.f32 %v1575, %v1655
      %v1678 = vadd.f32 %v1576, %v1660
      %v1679 = vadd.f32 %v1577, %v1663
      %v1680 = vadd.f32 %v1578, %v1668
      %v1681 = vadd.f32 %v1579, %v1671
      %v1682 = vld [vmem:[%s1477 + $0x2] sm:$0xff]
      %v1683 = vld [vmem:[%s1477 + $0x12] sm:$0xff]
      %v1684 = vld [vmem:[%s1477 + $0x22] sm:$0xff]
      %v1685 = vld [vmem:[%s1477 + $0x32] sm:$0xff]
      %v1686 = vld [vmem:[%s1477 + $0x42] sm:$0xff]
      %v1687 = vld [vmem:[%s1477 + $0x52] sm:$0xff]
      %v1688 = vld [vmem:[%s1477 + $0x62] sm:$0xff]
      %v1689 = vld [vmem:[%s1477 + $0x72] sm:$0xff]
      %v1690 = vpack.c.bf16 %v1683, %v1682
      %v1691 = vpack.c.bf16 %v1685, %v1684
      %v1692 = vpack.c.bf16 %v1687, %v1686
      %v1693 = vpack.c.bf16 %v1689, %v1688
      %s1694 = scalar_lea.vmem %s1, 16
      %v1695 = vld [vmem:[%s1694] sm:$0x3]
      %v1697 = vsel %vm872, %v1690, 0
      %v1700 = vsel %vm872, %v1691, 0
      %v1703 = vsel %vm872, %v1692, 0
      %v1706 = vsel %vm872, %v1693, 0
      %v1709 = vsel %vm920, %v1695, 0
      %1711 = vmatprep.subr.bf16.mxu0 0
      %1712 = vmatpush1.bf16.msra.mxu0 0
      %1713 = vmatprep.subr.bf16.mxu0 0
      %1714 = vmatpush1.bf16.msra.mxu0 0
      %1715 = vmatprep.subr.bf16.mxu0 0
      %1716 = vmatpush1.bf16.msra.mxu0 0
      %1717 = vmatprep.subr.bf16.mxu0 0
      %1718 = vmatpush1.bf16.msra.mxu0 0
      %1719 = vmatprep.subr.bf16.mxu0 0
      %1720 = vmatpush1.bf16.msra.mxu0 0
      %1721 = vmatprep.subr.bf16.mxu0 0
      %1722 = vmatpush1.bf16.msra.mxu0 0
      %1723 = vmatprep.subr.bf16.mxu0 0
      %1724 = vmatpush1.bf16.msra.mxu0 0
      %1725 = vmatprep.subr.bf16.mxu0 0
      %1726 = vmatpush1.bf16.msra.mxu0 %v1709
      %1727 = vmatprep.subr.bf16.mxu0 0
      %1728 = vmatpush2.bf16.msra.mxu0 0
      %1729 = vmatprep.subr.bf16.mxu0 0
      %1730 = vmatpush2.bf16.msra.mxu0 0
      %1731 = vmatprep.subr.bf16.mxu0 0
      %1732 = vmatpush2.bf16.msra.mxu0 0
      %1733 = vmatprep.subr.bf16.mxu0 0
      %1734 = vmatpush2.bf16.msra.mxu0 0
      %1735 = vmatprep.subr.bf16.mxu0 0
      %1736 = vmatpush2.bf16.msra.mxu0 0
      %1737 = vmatprep.subr.bf16.mxu0 0
      %1738 = vmatpush2.bf16.msra.mxu0 0
      %1739 = vmatprep.subr.bf16.mxu0 0
      %1740 = vmatpush2.bf16.msra.mxu0 0
      %1741 = vmatprep.subr.bf16.mxu0 0
      %1742 = vmatpush2.bf16.msra.mxu0 0
      %1743 = vmatprep.mubr.bf16.mxu0 0
      %1744 = vmatmul.mubr.bf16.gmra.mxu0 %v1697
      %v1745 = vpop.f32.mrf.mxu0
      %v1746 = vadd.f32 0.0, %v1745
      %v1747 = vpop.f32.mrf.mxu0
      %v1748 = vpop.f32.mrf.mxu0
      %v1749 = vadd.f32 0.0, %v1748
      %v1750 = vpop.f32.mrf.mxu0
      %1751 = vmatprep.mubr.bf16.mxu0 0
      %1752 = vmatmul.mubr.bf16.gmra.mxu0 %v1700
      %v1753 = vpop.f32.mrf.mxu0
      %v1754 = vadd.f32 0.0, %v1753
      %v1755 = vpop.f32.mrf.mxu0
      %v1756 = vpop.f32.mrf.mxu0
      %v1757 = vadd.f32 0.0, %v1756
      %v1758 = vpop.f32.mrf.mxu0
      %1759 = vmatprep.mubr.bf16.mxu0 0
      %1760 = vmatmul.mubr.bf16.gmra.mxu0 %v1703
      %v1761 = vpop.f32.mrf.mxu0
      %v1762 = vadd.f32 0.0, %v1761
      %v1763 = vpop.f32.mrf.mxu0
      %v1764 = vpop.f32.mrf.mxu0
      %v1765 = vadd.f32 0.0, %v1764
      %v1766 = vpop.f32.mrf.mxu0
      %1767 = vmatprep.mubr.bf16.mxu0 0
      %1768 = vmatmul.mubr.bf16.gmra.mxu0 %v1706
      %v1769 = vpop.f32.mrf.mxu0
      %v1770 = vadd.f32 0.0, %v1769
      %v1771 = vpop.f32.mrf.mxu0
      %v1772 = vpop.f32.mrf.mxu0
      %v1773 = vadd.f32 0.0, %v1772
      %v1774 = vpop.f32.mrf.mxu0
      %1775 = vdwg.mxu0
      %v1776 = vadd.f32 %v1674, %v1746
      %v1777 = vadd.f32 %v1675, %v1749
      %v1778 = vadd.f32 %v1676, %v1754
      %v1779 = vadd.f32 %v1677, %v1757
      %v1780 = vadd.f32 %v1678, %v1762
      %v1781 = vadd.f32 %v1679, %v1765
      %v1782 = vadd.f32 %v1680, %v1770
      %v1783 = vadd.f32 %v1681, %v1773
      %v1784 = vld [vmem:[%s2] sm:$0x1]
      %v1786 = vlaneseq
      %v1787 = vshrl.u32 %v1786, 7
      %v1788 = vsub.s32 0, %v1787
      %v1789 = vrot.slane %v1784, %v1788
      %v1791 = vadd.f32 %v1776, %v1789
      %v1792 = vadd.f32 %v1777, %v1789
      %v1793 = vadd.f32 %v1778, %v1789
      %v1794 = vadd.f32 %v1779, %v1789
      %v1795 = vadd.f32 %v1780, %v1789
      %v1796 = vadd.f32 %v1781, %v1789
      %v1797 = vadd.f32 %v1782, %v1789
      %v1798 = vadd.f32 %v1783, %v1789
      %vm1799 = vcmask 64512
      %1800 = vst.msk [vmem:[%s200] sm:$0xff] %vm1799, %v1791
      %1801 = vst.msk [vmem:[%s200 + $0x8] sm:$0xff] %vm1799, %v1792
      %1802 = vst.msk [vmem:[%s200 + $0x10] sm:$0xff] %vm1799, %v1793
      %1803 = vst.msk [vmem:[%s200 + $0x18] sm:$0xff] %vm1799, %v1794
      %1804 = vst.msk [vmem:[%s200 + $0x20] sm:$0xff] %vm1799, %v1795
      %1805 = vst.msk [vmem:[%s200 + $0x28] sm:$0xff] %vm1799, %v1796
      %1806 = vst.msk [vmem:[%s200 + $0x30] sm:$0xff] %vm1799, %v1797
      %1807 = vst.msk [vmem:[%s200 + $0x38] sm:$0xff] %vm1799, %v1798
      %v1808 = vsel %vm1799, %v1791, 0.0
      %v1809 = vsel %vm1799, %v1792, 0.0
      %v1810 = vadd.f32 %v1808, %v1809
      %v1811 = vsel %vm1799, %v1793, 0.0
      %v1812 = vadd.f32 %v1810, %v1811
      %v1813 = vsel %vm1799, %v1794, 0.0
      %v1814 = vadd.f32 %v1812, %v1813
      %v1815 = vsel %vm1799, %v1795, 0.0
      %v1816 = vadd.f32 %v1814, %v1815
      %v1817 = vsel %vm1799, %v1796, 0.0
      %v1818 = vadd.f32 %v1816, %v1817
      %v1819 = vsel %vm1799, %v1797, 0.0
      %v1820 = vadd.f32 %v1818, %v1819
      %v1821 = vsel %vm1799, %v1798, 0.0
      %v1822 = vadd.f32 %v1820, %v1821
      %v1823 = vrot.slane %v1822, 4
      %v1824 = vadd.f32 %v1822, %v1823
      %v1825 = vrot.slane %v1824, 2
      %v1826 = vadd.f32 %v1824, %v1825
      %v1827 = vrot.slane %v1826, 1
      %v1828 = vadd.f32 %v1826, %v1827
      %v1829 = vmul.f32 %v1828, 0.015625
      %v1830 = vsub.f32 %v1791, %v1829
      %v1831 = vsub.f32 %v1792, %v1829
      %v1832 = vsub.f32 %v1793, %v1829
      %v1833 = vsub.f32 %v1794, %v1829
      %v1834 = vsub.f32 %v1795, %v1829
      %v1835 = vsub.f32 %v1796, %v1829
      %v1836 = vsub.f32 %v1797, %v1829
      %v1837 = vsub.f32 %v1798, %v1829
      %v1838 = vmul.f32 %v1830, %v1830
      %v1839 = vmul.f32 %v1831, %v1831
      %v1840 = vmul.f32 %v1832, %v1832
      %v1841 = vmul.f32 %v1833, %v1833
      %v1842 = vmul.f32 %v1834, %v1834
      %v1843 = vmul.f32 %v1835, %v1835
      %v1844 = vmul.f32 %v1836, %v1836
      %v1845 = vmul.f32 %v1837, %v1837
      %v1846 = vsel %vm1799, %v1838, 0.0
      %v1847 = vsel %vm1799, %v1839, 0.0
      %v1848 = vadd.f32 %v1846, %v1847
      %v1849 = vsel %vm1799, %v1840, 0.0
      %v1850 = vadd.f32 %v1848, %v1849
      %v1851 = vsel %vm1799, %v1841, 0.0
      %v1852 = vadd.f32 %v1850, %v1851
      %v1853 = vsel %vm1799, %v1842, 0.0
      %v1854 = vadd.f32 %v1852, %v1853
      %v1855 = vsel %vm1799, %v1843, 0.0
      %v1856 = vadd.f32 %v1854, %v1855
      %v1857 = vsel %vm1799, %v1844, 0.0
      %v1858 = vadd.f32 %v1856, %v1857
      %v1859 = vsel %vm1799, %v1845, 0.0
      %v1860 = vadd.f32 %v1858, %v1859
      %v1861 = vrot.slane %v1860, 4
      %v1862 = vadd.f32 %v1860, %v1861
      %v1863 = vrot.slane %v1862, 2
      %v1864 = vadd.f32 %v1862, %v1863
      %v1865 = vrot.slane %v1864, 1
      %v1866 = vadd.f32 %v1864, %v1865
      // Predicated region
      $region37: #{down_dc_forward.3} parent=31 // pred_check
        %p1867 = pneg %p202
      $region38: #{down_dc_forward.3} parent=31 // pred_check_branch
        %1869 = sbr.rel (%p1867) target = $region40
      $region39: #{down_dc_forward.3} parent=31 // pred_region
        %vm1870 = vcmask 57344
        %1871 = vst.msk [vmem:[%s4] sm:$0x1] %vm1870, %v1829
        %1872 = vst.msk [vmem:[%s4 + $0x1] sm:$0x1] %vm1870, %v1866
      $region40: #{down_dc_forward.3} parent=31 // pred_fallthru
        _
      %p1873 = scmp.gt.s32.totalorder %s16, 0
      // Predicated region
      $region41: #{down_dc_forward.3} parent=31 // pred_check
        %p1874 = pneg %p1873
      $region42: #{down_dc_forward.3} parent=31 // pred_check_branch
        %1876 = sbr.rel (%p1874) target = $region44
      $region43: #{down_dc_forward.3} parent=31 // pred_region
        %s1877 = scvt.s32.f32 %s16
        %s1878 = smul.f32 %s1877, 64.0
        %v1879 = vld [vmem:[%s4] sm:$0x1]
        %v1880 = vld [vmem:[%s4 + $0x1] sm:$0x1]
        %v1881 = vsub.f32 %v1829, %v1879
        %s1882 = sadd.f32 %s1878, 64.0
        %v1883 = vstv %s1882
        %v1884 = vrcp.pop %v1883
        %s1885 = vtos %v1884
        %s1886 = smul.f32 64.0, %s1885
        %v1887 = vstv %s1886
        %v1888 = vmul.f32 %v1881, %v1887
        %v1889 = vadd.f32 %v1879, %v1888
        %vm1890 = vcmask 57344
        %1891 = vst.msk [vmem:[%s4] sm:$0x1] %vm1890, %v1889
        %v1892 = vadd.f32 %v1880, %v1866
        %v1893 = vmul.f32 %v1881, %v1881
        %s1894 = smul.f32 %s1878, %s1886
        %v1895 = vstv %s1894
        %v1896 = vmul.f32 %v1893, %v1895
        %v1897 = vadd.f32 %v1892, %v1896
        %1898 = vst.msk [vmem:[%s4 + $0x1] sm:$0x1] %vm1890, %v1897
      $region44: #{down_dc_forward.3} parent=31 // pred_fallthru
        _
      %p1899 = scmp.lt.s32.totalorder %s16, 1
      %s1900 = scalar_select %p1899, %s16, 1
      %s1901 = smul.addr %s1900, 8
      %s1902 = smul.addr %s1901, 8
      %s1903 = scalar_lea.vmem %s3, %s1902
      // Predicated region
      $region45: #{down_dc_forward.3} parent=31 // pred_check
        %p1904 = pneg %p102
      $region46: #{down_dc_forward.3} parent=31 // pred_check_branch
        %1906 = sbr.rel (%p1904) target = $region48
      $region47: #{down_dc_forward.3} parent=31 // pred_region
        _
      $region48: #{down_dc_forward.3} parent=31 // pred_fallthru
        _
      // Predicated region
      $region49: #{down_dc_forward.3} parent=31 // pred_check
        %p1907 = pneg %p123
      $region50: #{down_dc_forward.3} parent=31 // pred_check_branch
        %1909 = sbr.rel (%p1907) target = $region52
      $region51: #{down_dc_forward.3} parent=31 // pred_region
        _
      $region52: #{down_dc_forward.3} parent=31 // pred_fallthru
        _
      // Predicated region
      $region53: #{down_dc_forward.3} parent=31 // pred_check
        %p1910 = pneg %p123
      $region54: #{down_dc_forward.3} parent=31 // pred_check_branch
        %1912 = sbr.rel (%p1910) target = $region56
      $region55: #{down_dc_forward.3} parent=31 // pred_region
        _
      $region56: #{down_dc_forward.3} parent=31 // pred_fallthru
        _
    $region32: #{down_dc_forward.3} parent=5 // pred_fallthru
      _
    %p1913 = scmp.le.s32.totalorder 2, %s11
    // Predicated region
    $region57: #{down_dc_forward.3} parent=5 // pred_check
      %p1914 = pneg %p1913
    $region58: #{down_dc_forward.3} parent=5 // pred_check_branch
      %1916 = sbr.rel (%p1914) target = $region60
    $region59: #{down_dc_forward.3} parent=5 // pred_region
      %s1917 = ssub.s32 %s11, 2
      // Predicated region
      $region61: #{down_dc_forward.3} parent=59 // pred_check
        %p1918 = pneg %p108
      $region62: #{down_dc_forward.3} parent=59 // pred_check_branch
        %1920 = sbr.rel (%p1918) target = $region64
      $region63: #{down_dc_forward.3} parent=59 // pred_region
        %p1921 = scmp.lt.s32.totalorder %s17, 1
        %s1922 = scalar_select %p1921, %s17, 1
        %s1923 = smul.addr %s1922, 8
        %s1924 = smul.addr %s1923, 8
        %s1925 = scalar_lea.vmem %s3, %s1924
      $region64: #{down_dc_forward.3} parent=59 // pred_fallthru
        _
    $region60: #{down_dc_forward.3} parent=5 // pred_fallthru
      _
  $region6: #{down_dc_forward.3} parent=0 // loop_footer
    %s15 = sadd.s32 1, %s11
  $region7: #{down_dc_forward.3} parent=0 // loop_footer_branch
    %10 = sbr.rel target = $region3
  $region8: #{down_dc_forward.3} parent=0 // loop_exit
    _

</llo_original>
